<compile_context>
chip_gen: v5e
topology: v5e:2x2
jax: 0.10.0
libtpu: 0.0.40
codegen_flags: <defaults>
</compile_context>

<pallas_src>
import numpy as np
import jax
import jax.numpy as jnp
from jax import lax
from jax.experimental import pallas as pl
from jax.experimental.pallas import tpu as pltpu


# ---------------------------------------------------------------------------
# offline unfolding of (transposed) convolutions into  sum_t (S_t @ X) @ W_t
# ---------------------------------------------------------------------------
def _unfold_conv(w, b, h_in, w_in, stride, pad):
    """torch Conv2d weight (Cout,Cin,k,k) -> (S taps, W-unfolded taps, bias row)."""
    c_out, c_in, k, _ = w.shape
    h_out = (h_in + 2 * pad - k) // stride + 1
    w_out = (w_in + 2 * pad - k) // stride + 1
    S = np.zeros((k, h_out, h_in), np.float32)
    for ky in range(k):
        for ho in range(h_out):
            hi = ho * stride + ky - pad
            if 0 <= hi < h_in:
                S[ky, ho, hi] = 1.0
    W = np.zeros((k, w_in * c_in, w_out * c_out), np.float32)
    for ky in range(k):
        for kx in range(k):
            for wo in range(w_out):
                wi = wo * stride + kx - pad
                if 0 <= wi < w_in:
                    W[ky, wi * c_in:(wi + 1) * c_in, wo * c_out:(wo + 1) * c_out] = \
                        w[:, :, ky, kx].T
    brow = None
    if b is not None:
        brow = np.tile(b.reshape(1, 1, c_out), (1, w_out, 1)).reshape(1, w_out * c_out)
        brow = brow.astype(np.float32)
    return S, W, brow, h_out, w_out


def _unfold_convT(w, b, h_in, w_in, stride, pad):
    """torch ConvTranspose2d weight (Cin,Cout,k,k) -> (row-scatter taps, W-unfolded taps, bias)."""
    c_in, c_out, k, _ = w.shape
    h_out = (h_in - 1) * stride - 2 * pad + k
    w_out = (w_in - 1) * stride - 2 * pad + k
    R = np.zeros((k, h_out, h_in), np.float32)
    for ky in range(k):
        for hi in range(h_in):
            ho = hi * stride - pad + ky
            if 0 <= ho < h_out:
                R[ky, ho, hi] = 1.0
    W = np.zeros((k, w_in * c_in, w_out * c_out), np.float32)
    for ky in range(k):
        for kx in range(k):
            for wi in range(w_in):
                wo = wi * stride - pad + kx
                if 0 <= wo < w_out:
                    W[ky, wi * c_in:(wi + 1) * c_in, wo * c_out:(wo + 1) * c_out] = \
                        w[:, :, ky, kx]
    brow = np.tile(b.reshape(1, 1, c_out), (1, w_out, 1)).reshape(1, w_out * c_out)
    return R, W, brow.astype(np.float32), h_out, w_out


# ---------------------------------------------------------------------------
# the single fused Pallas kernel (one grid step == one sample)
# ---------------------------------------------------------------------------
def _vae_kernel(x_ref, eps_ref,
                s1_ref, w1_ref, b1_ref,
                s2_ref, w2_ref, b2_ref,
                s3_ref, w3_ref, b3_ref,
                wr3e_ref, wr1e_ref,
                wlat_ref, blat_ref,
                wd1_ref, bd1_ref,
                wr3d_ref, wr1d_ref,
                r1_ref, wt1_ref, bt1_ref,
                r2_ref, wt2_ref, bt2_ref,
                xhat_ref, mu_ref, lv_ref):
    f32 = jnp.float32

    def dot(a, b):
        return jnp.dot(a, b, preferred_element_type=f32)

    def conv(x, s_ref, w_ref, b_ref=None, pre=()):
        """sum over row taps of (S_t @ x) @ W_t  (+ bias)."""
        ntap = w_ref.shape[len(pre)]
        acc = None
        for t in range(ntap):
            term = dot(dot(s_ref[t], x), w_ref[pre + (t,)])
            acc = term if acc is None else acc + term
        if b_ref is not None:
            acc = acc + b_ref[...]
        return acc

    def res_stack(h, wr3_ref, wr1_ref):
        for l in range(wr3_ref.shape[0]):
            t = jnp.maximum(h, 0.0)
            u = jnp.maximum(conv(t, s3_ref, wr3_ref, pre=(l,)), 0.0)   # 3x3, no bias
            h = h + dot(u, wr1_ref[l])                                 # 1x1, no bias
        return jnp.maximum(h, 0.0)                                     # stack-final ReLU

    # -------------------------- encoder --------------------------
    x = x_ref[...]                                                     # (H, W) = (16, 16)
    h = jnp.maximum(conv(x, s1_ref, w1_ref, b1_ref), 0.0)              # (8, 128)
    h = jnp.maximum(conv(h, s2_ref, w2_ref, b2_ref), 0.0)              # (4, 128)
    h = conv(h, s3_ref, w3_ref, b3_ref)                                # (4, 128)
    h = res_stack(h, wr3e_ref, wr1e_ref)                               # (4, 128)

    # --------------- latent: mu | logvar | reparameterize ---------------
    lat = dot(h, wlat_ref[...]) + blat_ref[...]                        # (4, 64) = [mu | lv]
    half = lat.shape[1] // 2
    mu = lat[:, :half]
    lv = lat[:, half:]
    z = mu + eps_ref[...] * jnp.exp(0.5 * lv)                          # exp -> EUP
    mu_ref[...] = mu
    lv_ref[...] = lv

    # -------------------------- decoder --------------------------
    d = conv(z, s3_ref, wd1_ref, bd1_ref)                              # (4, 128)
    d = res_stack(d, wr3d_ref, wr1d_ref)                               # (4, 128)
    d = jnp.maximum(conv(d, r1_ref, wt1_ref, bt1_ref), 0.0)            # convT1 -> (8, 128)
    xhat_ref[...] = conv(d, r2_ref, wt2_ref, bt2_ref)                  # convT2 -> (16, 16)


_PARAM_ORDER = ['s1', 'w1', 'b1', 's2', 'w2', 'b2', 's3', 'w3', 'b3',
                'wr3e', 'wr1e', 'wlat', 'blat', 'wd1', 'bd1',
                'wr3d', 'wr1d', 'r1', 'wt1', 'bt1', 'r2', 'wt2', 'bt2']


def _per_sample_spec(shape):
    return pl.BlockSpec((None,) + tuple(shape[1:]), lambda b: (b, 0, 0))


def _const_spec(shape):
    nd = len(shape)
    return pl.BlockSpec(tuple(shape), lambda b, _nd=nd: (0,) * _nd)


@jax.jit
def vae_forward(packed, x_nchw, eps_nchw):
    B, Cin, H, W = x_nchw.shape
    assert Cin == 1
    latent, Hl, Wl = eps_nchw.shape[1], eps_nchw.shape[2], eps_nchw.shape[3]

    # C_in == 1: NCHW flat already is the (H, W*C) slab the kernel wants.
    x2d = x_nchw.reshape(B, H, W).astype(jnp.float32)
    eps2d = jnp.transpose(eps_nchw, (0, 2, 3, 1)).reshape(B, Hl, Wl * latent)
    eps2d = eps2d.astype(jnp.float32)
    # TODO(synk): eps could be drawn in-kernel via pltpu.prng_seed + stateful_normal to drop
    # this (tiny) input stream; kept external so the reparameterization is bit-reproducible.

    consts = [packed[k] for k in _PARAM_ORDER]
    in_specs = [_per_sample_spec(x2d.shape), _per_sample_spec(eps2d.shape)]
    in_specs += [_const_spec(c.shape) for c in consts]

    out_shape = (
        jax.ShapeDtypeStruct((B, H, W), jnp.float32),              # x_hat  (H, W*1)
        jax.ShapeDtypeStruct((B, Hl, Wl * latent), jnp.float32),   # mu     (H, W*Z)
        jax.ShapeDtypeStruct((B, Hl, Wl * latent), jnp.float32),   # logvar (H, W*Z)
    )
    out_specs = (
        pl.BlockSpec((None, H, W), lambda b: (b, 0, 0)),
        pl.BlockSpec((None, Hl, Wl * latent), lambda b: (b, 0, 0)),
        pl.BlockSpec((None, Hl, Wl * latent), lambda b: (b, 0, 0)),
    )

    xhat2d, mu2d, lv2d = pl.pallas_call(
        _vae_kernel,
        out_shape=out_shape,
        grid=(B,),
        in_specs=in_specs,
        out_specs=out_specs,
        compiler_params=pltpu.CompilerParams(dimension_semantics=("parallel",)),
    )(x2d, eps2d, *consts)

    x_hat = xhat2d.reshape(B, 1, H, W)
    mu = mu2d.reshape(B, Hl, Wl, latent).transpose(0, 3, 1, 2)
    logvar = lv2d.reshape(B, Hl, Wl, latent).transpose(0, 3, 1, 2)
    return x_hat, mu, logvar


# ---------------------------------------------------------------------------
# parameter init (PyTorch-style) + one-time offline packing
# ---------------------------------------------------------------------------
def init_params(key, h_dim, res_h_dim, n_res_layers, latent_dim):
    keys = iter(jax.random.split(key, 64))

    def conv_p(cout, cin, k, bias=True):
        fan_in = cin * k * k
        bound = 1.0 / np.sqrt(fan_in)
        w = jax.random.uniform(next(keys), (cout, cin, k, k), jnp.float32, -bound, bound)
        b = (jax.random.uniform(next(keys), (cout,), jnp.float32, -bound, bound)
             if bias else None)
        return w, b

    def convT_p(cin, cout, k):
        fan_in = cout * k * k
        bound = 1.0 / np.sqrt(fan_in)
        w = jax.random.uniform(next(keys), (cin, cout, k, k), jnp.float32, -bound, bound)
        b = jax.random.uniform(next(keys), (cout,), jnp.float32, -bound, bound)
        return w, b

    p = {}
    p['e_w1'], p['e_b1'] = conv_p(h_dim // 2, 1, 4)
    p['e_w2'], p['e_b2'] = conv_p(h_dim, h_dim // 2, 4)
    p['e_w3'], p['e_b3'] = conv_p(h_dim, h_dim, 3)
    p['e_res'] = [(conv_p(res_h_dim, h_dim, 3, bias=False)[0],
                   conv_p(h_dim, res_h_dim, 1, bias=False)[0])
                  for _ in range(n_res_layers)]
    p['mu_w'], p['mu_b'] = conv_p(latent_dim, h_dim, 1)
    p['lv_w'], p['lv_b'] = conv_p(latent_dim, h_dim, 1)
    p['d_w1'], p['d_b1'] = conv_p(h_dim, latent_dim, 3)
    p['d_res'] = [(conv_p(res_h_dim, h_dim, 3, bias=False)[0],
                   conv_p(h_dim, res_h_dim, 1, bias=False)[0])
                  for _ in range(n_res_layers)]
    p['d_wt1'], p['d_bt1'] = convT_p(h_dim, h_dim // 2, 4)
    p['d_wt2'], p['d_bt2'] = convT_p(h_dim // 2, 1, 4)
    return p


def prepare_params(p, in_hw=(16, 16)):
    """One-time packing of every layer into (row-tap matrices, W-unfolded weights, bias rows)."""
    f = lambda a: np.asarray(a, np.float32)
    H, W = in_hw
    assert H % 4 == 0 and W % 4 == 0

    s1, w1, b1, H1, W1 = _unfold_conv(f(p['e_w1']), f(p['e_b1']), H, W, 2, 1)
    s2, w2, b2, H2, W2 = _unfold_conv(f(p['e_w2']), f(p['e_b2']), H1, W1, 2, 1)
    s3, w3, b3, H3, W3 = _unfold_conv(f(p['e_w3']), f(p['e_b3']), H2, W2, 1, 1)
    assert (H3, W3) == (H2, W2)

    def res_pack(layers):
        assert len(layers) >= 1
        w3s, w1s = [], []
        for (wc3, wc1) in layers:
            _, wt3, _, _, _ = _unfold_conv(f(wc3), None, H2, W2, 1, 1)   # 3x3, no bias
            _, wt1, _, _, _ = _unfold_conv(f(wc1), None, H2, W2, 1, 0)   # 1x1, no bias
            w3s.append(wt3)
            w1s.append(wt1[0])
        return np.stack(w3s, 0), np.stack(w1s, 0)

    wr3e, wr1e = res_pack(p['e_res'])
    _, wmu, bmu, _, _ = _unfold_conv(f(p['mu_w']), f(p['mu_b']), H2, W2, 1, 0)
    _, wlv, blv, _, _ = _unfold_conv(f(p['lv_w']), f(p['lv_b']), H2, W2, 1, 0)
    wlat = np.concatenate([wmu[0], wlv[0]], axis=1)      # columns = [mu | logvar]
    blat = np.concatenate([bmu, blv], axis=1)

    _, wd1, bd1, _, _ = _unfold_conv(f(p['d_w1']), f(p['d_b1']), H2, W2, 1, 1)
    wr3d, wr1d = res_pack(p['d_res'])
    r1, wt1, bt1, H4, W4 = _unfold_convT(f(p['d_wt1']), f(p['d_bt1']), H2, W2, 2, 1)
    r2, wt2, bt2, H5, W5 = _unfold_convT(f(p['d_wt2']), f(p['d_bt2']), H4, W4, 2, 1)
    assert (H5, W5) == (H, W)

    packed = dict(s1=s1, w1=w1, b1=b1, s2=s2, w2=w2, b2=b2, s3=s3, w3=w3, b3=b3,
                  wr3e=wr3e, wr1e=wr1e, wlat=wlat, blat=blat, wd1=wd1, bd1=bd1,
                  wr3d=wr3d, wr1d=wr1d, r1=r1, wt1=wt1, bt1=bt1, r2=r2, wt2=wt2, bt2=bt2)
    return {k: jnp.asarray(v) for k, v in packed.items()}


# ---------------------------------------------------------------------------
# pure-JAX f32 reference (requested by the review) for a tolerance assert
# ---------------------------------------------------------------------------
@jax.jit
def vae_reference(p, x, eps):
    HI = lax.Precision.HIGHEST
    dn = ('NCHW', 'OIHW', 'NCHW')

    def conv(x, w, b, s, pad):
        y = lax.conv_general_dilated(x, w, (s, s), [(pad, pad), (pad, pad)],
                                     dimension_numbers=dn, precision=HI)
        return y if b is None else y + b.reshape(1, -1, 1, 1)

    def convT(x, w, b, s, pad):
        k = w.shape[-1]
        w_t = jnp.transpose(w, (1, 0, 2, 3))[:, :, ::-1, ::-1]
        y = lax.conv_general_dilated(x, w_t, (1, 1), [(k - 1 - pad, k - 1 - pad)] * 2,
                                     lhs_dilation=(s, s), dimension_numbers=dn,
                                     precision=HI)
        return y + b.reshape(1, -1, 1, 1)

    def res_stack(h, layers):
        for (w3, w1) in layers:
            t = jax.nn.relu(h)
            t = conv(t, w3, None, 1, 1)
            t = jax.nn.relu(t)
            t = conv(t, w1, None, 1, 0)
            h = h + t
        return jax.nn.relu(h)

    h = jax.nn.relu(conv(x, p['e_w1'], p['e_b1'], 2, 1))
    h = jax.nn.relu(conv(h, p['e_w2'], p['e_b2'], 2, 1))
    h = conv(h, p['e_w3'], p['e_b3'], 1, 1)
    h = res_stack(h, p['e_res'])
    mu = conv(h, p['mu_w'], p['mu_b'], 1, 0)
    logvar = conv(h, p['lv_w'], p['lv_b'], 1, 0)
    z = mu + eps * jnp.exp(0.5 * logvar)
    d = conv(z, p['d_w1'], p['d_b1'], 1, 1)
    d = res_stack(d, p['d_res'])
    d = jax.nn.relu(convT(d, p['d_wt1'], p['d_bt1'], 2, 1))
    x_hat = convT(d, p['d_wt2'], p['d_bt2'], 2, 1)
    return x_hat, mu, logvar


if __name__ == "__main__":
    h_dim, res_h_dim, n_res_layers, latent_dim = 32, 16, 2, 8
    key = jax.random.PRNGKey(0)
    k_param, k_x, k_eps = jax.random.split(key, 3)

    raw_params = init_params(k_param, h_dim, res_h_dim, n_res_layers, latent_dim)
    packed = prepare_params(raw_params, in_hw=(16, 16))        # one-time packing

    x = jax.random.normal(k_x, (2, 1, 16, 16), jnp.float32)    # NCHW, 1-channel input
    eps = jax.random.normal(k_eps, (2, latent_dim, 4, 4), jnp.float32)  # randn_like(std)

    x_hat, mu, logvar = vae_forward(packed, x, eps)
    jax.block_until_ready((x_hat, mu, logvar))

    # correctness vs. pure-JAX f32 reference
    x_hat_r, mu_r, logvar_r = vae_reference(raw_params, x, eps)
    np.testing.assert_allclose(np.asarray(mu), np.asarray(mu_r), atol=3e-2, rtol=3e-2)
    np.testing.assert_allclose(np.asarray(logvar), np.asarray(logvar_r), atol=3e-2, rtol=3e-2)
    np.testing.assert_allclose(np.asarray(x_hat), np.asarray(x_hat_r), atol=3e-2, rtol=3e-2)

    assert x_hat.shape == x.shape, (x_hat.shape, x.shape)
    assert mu.shape == (2, latent_dim, 4, 4) and logvar.shape == mu.shape
    print("KERNEL_OK")
</pallas_src>

<mosaic_0001>
module attributes {stable_mosaic.version = 11 : i64} {
  func.func @_vae_kernel(%arg0: i32, %arg1: memref<1x16x16xf32, #tpu.memory_space<vmem>>, %arg2: memref<1x4x32xf32, #tpu.memory_space<vmem>>, %arg3: memref<4x8x16xf32, #tpu.memory_space<vmem>>, %arg4: memref<4x16x128xf32, #tpu.memory_space<vmem>>, %arg5: memref<1x128xf32, #tpu.memory_space<vmem>>, %arg6: memref<4x4x8xf32, #tpu.memory_space<vmem>>, %arg7: memref<4x128x128xf32, #tpu.memory_space<vmem>>, %arg8: memref<1x128xf32, #tpu.memory_space<vmem>>, %arg9: memref<3x4x4xf32, #tpu.memory_space<vmem>>, %arg10: memref<3x128x128xf32, #tpu.memory_space<vmem>>, %arg11: memref<1x128xf32, #tpu.memory_space<vmem>>, %arg12: memref<2x3x128x64xf32, #tpu.memory_space<vmem>>, %arg13: memref<2x64x128xf32, #tpu.memory_space<vmem>>, %arg14: memref<128x64xf32, #tpu.memory_space<vmem>>, %arg15: memref<1x64xf32, #tpu.memory_space<vmem>>, %arg16: memref<3x32x128xf32, #tpu.memory_space<vmem>>, %arg17: memref<1x128xf32, #tpu.memory_space<vmem>>, %arg18: memref<2x3x128x64xf32, #tpu.memory_space<vmem>>, %arg19: memref<2x64x128xf32, #tpu.memory_space<vmem>>, %arg20: memref<4x8x4xf32, #tpu.memory_space<vmem>>, %arg21: memref<4x128x128xf32, #tpu.memory_space<vmem>>, %arg22: memref<1x128xf32, #tpu.memory_space<vmem>>, %arg23: memref<4x16x8xf32, #tpu.memory_space<vmem>>, %arg24: memref<4x128x16xf32, #tpu.memory_space<vmem>>, %arg25: memref<1x16xf32, #tpu.memory_space<vmem>>, %arg26: memref<1x16x16xf32, #tpu.memory_space<vmem>>, %arg27: memref<1x4x32xf32, #tpu.memory_space<vmem>>, %arg28: memref<1x4x32xf32, #tpu.memory_space<vmem>>) attributes {dimension_semantics = [#tpu.dimension_semantics<parallel>], iteration_bounds = array<i64: 2>, scalar_prefetch = 0 : i64, scratch_operands = 0 : i64, tpu.core_type = #tpu.core_type<tc>, window_params = [{transform_indices = @transform_0, window_bounds = array<i64: 1, 16, 16>}, {transform_indices = @transform_1, window_bounds = array<i64: 1, 4, 32>}, {pipeline_mode = #tpu.pipeline_mode<synchronous>, transform_indices = @transform_2, window_bounds = array<i64: 4, 8, 16>}, {pipeline_mode = #tpu.pipeline_mode<synchronous>, transform_indices = @transform_3, window_bounds = array<i64: 4, 16, 128>}, {pipeline_mode = #tpu.pipeline_mode<synchronous>, transform_indices = @transform_4, window_bounds = array<i64: 1, 128>}, {pipeline_mode = #tpu.pipeline_mode<synchronous>, transform_indices = @transform_5, window_bounds = array<i64: 4, 4, 8>}, {pipeline_mode = #tpu.pipeline_mode<synchronous>, transform_indices = @transform_6, window_bounds = array<i64: 4, 128, 128>}, {pipeline_mode = #tpu.pipeline_mode<synchronous>, transform_indices = @transform_7, window_bounds = array<i64: 1, 128>}, {pipeline_mode = #tpu.pipeline_mode<synchronous>, transform_indices = @transform_8, window_bounds = array<i64: 3, 4, 4>}, {pipeline_mode = #tpu.pipeline_mode<synchronous>, transform_indices = @transform_9, window_bounds = array<i64: 3, 128, 128>}, {pipeline_mode = #tpu.pipeline_mode<synchronous>, transform_indices = @transform_10, window_bounds = array<i64: 1, 128>}, {pipeline_mode = #tpu.pipeline_mode<synchronous>, transform_indices = @transform_11, window_bounds = array<i64: 2, 3, 128, 64>}, {pipeline_mode = #tpu.pipeline_mode<synchronous>, transform_indices = @transform_12, window_bounds = array<i64: 2, 64, 128>}, {pipeline_mode = #tpu.pipeline_mode<synchronous>, transform_indices = @transform_13, window_bounds = array<i64: 128, 64>}, {pipeline_mode = #tpu.pipeline_mode<synchronous>, transform_indices = @transform_14, window_bounds = array<i64: 1, 64>}, {pipeline_mode = #tpu.pipeline_mode<synchronous>, transform_indices = @transform_15, window_bounds = array<i64: 3, 32, 128>}, {pipeline_mode = #tpu.pipeline_mode<synchronous>, transform_indices = @transform_16, window_bounds = array<i64: 1, 128>}, {pipeline_mode = #tpu.pipeline_mode<synchronous>, transform_indices = @transform_17, window_bounds = array<i64: 2, 3, 128, 64>}, {pipeline_mode = #tpu.pipeline_mode<synchronous>, transform_indices = @transform_18, window_bounds = array<i64: 2, 64, 128>}, {pipeline_mode = #tpu.pipeline_mode<synchronous>, transform_indices = @transform_19, window_bounds = array<i64: 4, 8, 4>}, {pipeline_mode = #tpu.pipeline_mode<synchronous>, transform_indices = @transform_20, window_bounds = array<i64: 4, 128, 128>}, {pipeline_mode = #tpu.pipeline_mode<synchronous>, transform_indices = @transform_21, window_bounds = array<i64: 1, 128>}, {pipeline_mode = #tpu.pipeline_mode<synchronous>, transform_indices = @transform_22, window_bounds = array<i64: 4, 16, 8>}, {pipeline_mode = #tpu.pipeline_mode<synchronous>, transform_indices = @transform_23, window_bounds = array<i64: 4, 128, 16>}, {pipeline_mode = #tpu.pipeline_mode<synchronous>, transform_indices = @transform_24, window_bounds = array<i64: 1, 16>}, {transform_indices = @transform_25, window_bounds = array<i64: 1, 16, 16>}, {transform_indices = @transform_26, window_bounds = array<i64: 1, 4, 32>}, {transform_indices = @transform_27, window_bounds = array<i64: 1, 4, 32>}]} {
    %c0 = arith.constant 0 : index
    %c0_0 = arith.constant 0 : index
    %c0_1 = arith.constant 0 : index
    %0 = vector.load %arg1[%c0, %c0_0, %c0_1] : memref<1x16x16xf32, #tpu.memory_space<vmem>>, vector<1x16x16xf32>
    %1 = vector.shape_cast %0 : vector<1x16x16xf32> to vector<16x16xf32>
    %c0_2 = arith.constant 0 : index
    %c0_3 = arith.constant 0 : index
    %c0_4 = arith.constant 0 : index
    %2 = vector.load %arg3[%c0_2, %c0_3, %c0_4] : memref<4x8x16xf32, #tpu.memory_space<vmem>>, vector<1x8x16xf32>
    %3 = vector.shape_cast %2 : vector<1x8x16xf32> to vector<8x16xf32>
    %cst = arith.constant dense<0.000000e+00> : vector<8x16xf32>
    %4 = tpu.matmul %3, %1, %cst {dimension_numbers = #tpu.dot_dimension_numbers<[1], [0], [0], [1], [0, 0, 1, 1], [], []>} : vector<8x16xf32>, vector<16x16xf32>, vector<8x16xf32> -> vector<8x16xf32>
    %c0_5 = arith.constant 0 : index
    %c0_6 = arith.constant 0 : index
    %c0_7 = arith.constant 0 : index
    %5 = vector.load %arg4[%c0_5, %c0_6, %c0_7] : memref<4x16x128xf32, #tpu.memory_space<vmem>>, vector<1x16x128xf32>
    %6 = vector.shape_cast %5 : vector<1x16x128xf32> to vector<16x128xf32>
    %cst_8 = arith.constant dense<0.000000e+00> : vector<8x128xf32>
    %7 = tpu.matmul %4, %6, %cst_8 {dimension_numbers = #tpu.dot_dimension_numbers<[1], [0], [0], [1], [0, 0, 1, 1], [], []>} : vector<8x16xf32>, vector<16x128xf32>, vector<8x128xf32> -> vector<8x128xf32>
    %c1 = arith.constant 1 : index
    %c0_9 = arith.constant 0 : index
    %c0_10 = arith.constant 0 : index
    %8 = vector.load %arg3[%c1, %c0_9, %c0_10] : memref<4x8x16xf32, #tpu.memory_space<vmem>>, vector<1x8x16xf32>
    %9 = vector.shape_cast %8 : vector<1x8x16xf32> to vector<8x16xf32>
    %cst_11 = arith.constant dense<0.000000e+00> : vector<8x16xf32>
    %10 = tpu.matmul %9, %1, %cst_11 {dimension_numbers = #tpu.dot_dimension_numbers<[1], [0], [0], [1], [0, 0, 1, 1], [], []>} : vector<8x16xf32>, vector<16x16xf32>, vector<8x16xf32> -> vector<8x16xf32>
    %c1_12 = arith.constant 1 : index
    %c0_13 = arith.constant 0 : index
    %c0_14 = arith.constant 0 : index
    %11 = vector.load %arg4[%c1_12, %c0_13, %c0_14] : memref<4x16x128xf32, #tpu.memory_space<vmem>>, vector<1x16x128xf32>
    %12 = vector.shape_cast %11 : vector<1x16x128xf32> to vector<16x128xf32>
    %cst_15 = arith.constant dense<0.000000e+00> : vector<8x128xf32>
    %13 = tpu.matmul %10, %12, %cst_15 {dimension_numbers = #tpu.dot_dimension_numbers<[1], [0], [0], [1], [0, 0, 1, 1], [], []>} : vector<8x16xf32>, vector<16x128xf32>, vector<8x128xf32> -> vector<8x128xf32>
    %14 = arith.addf %7, %13 : vector<8x128xf32>
    %c2 = arith.constant 2 : index
    %c0_16 = arith.constant 0 : index
    %c0_17 = arith.constant 0 : index
    %15 = vector.load %arg3[%c2, %c0_16, %c0_17] : memref<4x8x16xf32, #tpu.memory_space<vmem>>, vector<1x8x16xf32>
    %16 = vector.shape_cast %15 : vector<1x8x16xf32> to vector<8x16xf32>
    %cst_18 = arith.constant dense<0.000000e+00> : vector<8x16xf32>
    %17 = tpu.matmul %16, %1, %cst_18 {dimension_numbers = #tpu.dot_dimension_numbers<[1], [0], [0], [1], [0, 0, 1, 1], [], []>} : vector<8x16xf32>, vector<16x16xf32>, vector<8x16xf32> -> vector<8x16xf32>
    %c2_19 = arith.constant 2 : index
    %c0_20 = arith.constant 0 : index
    %c0_21 = arith.constant 0 : index
    %18 = vector.load %arg4[%c2_19, %c0_20, %c0_21] : memref<4x16x128xf32, #tpu.memory_space<vmem>>, vector<1x16x128xf32>
    %19 = vector.shape_cast %18 : vector<1x16x128xf32> to vector<16x128xf32>
    %cst_22 = arith.constant dense<0.000000e+00> : vector<8x128xf32>
    %20 = tpu.matmul %17, %19, %cst_22 {dimension_numbers = #tpu.dot_dimension_numbers<[1], [0], [0], [1], [0, 0, 1, 1], [], []>} : vector<8x16xf32>, vector<16x128xf32>, vector<8x128xf32> -> vector<8x128xf32>
    %21 = arith.addf %14, %20 : vector<8x128xf32>
    %c3 = arith.constant 3 : index
    %c0_23 = arith.constant 0 : index
    %c0_24 = arith.constant 0 : index
    %22 = vector.load %arg3[%c3, %c0_23, %c0_24] : memref<4x8x16xf32, #tpu.memory_space<vmem>>, vector<1x8x16xf32>
    %23 = vector.shape_cast %22 : vector<1x8x16xf32> to vector<8x16xf32>
    %cst_25 = arith.constant dense<0.000000e+00> : vector<8x16xf32>
    %24 = tpu.matmul %23, %1, %cst_25 {dimension_numbers = #tpu.dot_dimension_numbers<[1], [0], [0], [1], [0, 0, 1, 1], [], []>} : vector<8x16xf32>, vector<16x16xf32>, vector<8x16xf32> -> vector<8x16xf32>
    %c3_26 = arith.constant 3 : index
    %c0_27 = arith.constant 0 : index
    %c0_28 = arith.constant 0 : index
    %25 = vector.load %arg4[%c3_26, %c0_27, %c0_28] : memref<4x16x128xf32, #tpu.memory_space<vmem>>, vector<1x16x128xf32>
    %26 = vector.shape_cast %25 : vector<1x16x128xf32> to vector<16x128xf32>
    %cst_29 = arith.constant dense<0.000000e+00> : vector<8x128xf32>
    %27 = tpu.matmul %24, %26, %cst_29 {dimension_numbers = #tpu.dot_dimension_numbers<[1], [0], [0], [1], [0, 0, 1, 1], [], []>} : vector<8x16xf32>, vector<16x128xf32>, vector<8x128xf32> -> vector<8x128xf32>
    %28 = arith.addf %21, %27 : vector<8x128xf32>
    %c0_30 = arith.constant 0 : index
    %c0_31 = arith.constant 0 : index
    %29 = vector.load %arg5[%c0_30, %c0_31] : memref<1x128xf32, #tpu.memory_space<vmem>>, vector<1x128xf32>
    %30 = vector.broadcast %29 : vector<1x128xf32> to vector<8x128xf32>
    %31 = arith.addf %28, %30 : vector<8x128xf32>
    %cst_32 = arith.constant 0.000000e+00 : f32
    %32 = vector.broadcast %cst_32 : f32 to vector<8x128xf32>
    %33 = arith.maximumf %31, %32 : vector<8x128xf32>
    %c0_33 = arith.constant 0 : index
    %c0_34 = arith.constant 0 : index
    %c0_35 = arith.constant 0 : index
    %34 = vector.load %arg6[%c0_33, %c0_34, %c0_35] : memref<4x4x8xf32, #tpu.memory_space<vmem>>, vector<1x4x8xf32>
    %35 = vector.shape_cast %34 : vector<1x4x8xf32> to vector<4x8xf32>
    %cst_36 = arith.constant dense<0.000000e+00> : vector<4x128xf32>
    %36 = tpu.matmul %35, %33, %cst_36 {dimension_numbers = #tpu.dot_dimension_numbers<[1], [0], [0], [1], [0, 0, 1, 1], [], []>} : vector<4x8xf32>, vector<8x128xf32>, vector<4x128xf32> -> vector<4x128xf32>
    %c0_37 = arith.constant 0 : index
    %c0_38 = arith.constant 0 : index
    %c0_39 = arith.constant 0 : index
    %37 = vector.load %arg7[%c0_37, %c0_38, %c0_39] : memref<4x128x128xf32, #tpu.memory_space<vmem>>, vector<1x128x128xf32>
    %38 = vector.shape_cast %37 : vector<1x128x128xf32> to vector<128x128xf32>
    %cst_40 = arith.constant dense<0.000000e+00> : vector<4x128xf32>
    %39 = tpu.matmul %36, %38, %cst_40 {dimension_numbers = #tpu.dot_dimension_numbers<[1], [0], [0], [1], [0, 0, 1, 1], [], []>} : vector<4x128xf32>, vector<128x128xf32>, vector<4x128xf32> -> vector<4x128xf32>
    %c1_41 = arith.constant 1 : index
    %c0_42 = arith.constant 0 : index
    %c0_43 = arith.constant 0 : index
    %40 = vector.load %arg6[%c1_41, %c0_42, %c0_43] : memref<4x4x8xf32, #tpu.memory_space<vmem>>, vector<1x4x8xf32>
    %41 = vector.shape_cast %40 : vector<1x4x8xf32> to vector<4x8xf32>
    %cst_44 = arith.constant dense<0.000000e+00> : vector<4x128xf32>
    %42 = tpu.matmul %41, %33, %cst_44 {dimension_numbers = #tpu.dot_dimension_numbers<[1], [0], [0], [1], [0, 0, 1, 1], [], []>} : vector<4x8xf32>, vector<8x128xf32>, vector<4x128xf32> -> vector<4x128xf32>
    %c1_45 = arith.constant 1 : index
    %c0_46 = arith.constant 0 : index
    %c0_47 = arith.constant 0 : index
    %43 = vector.load %arg7[%c1_45, %c0_46, %c0_47] : memref<4x128x128xf32, #tpu.memory_space<vmem>>, vector<1x128x128xf32>
    %44 = vector.shape_cast %43 : vector<1x128x128xf32> to vector<128x128xf32>
    %cst_48 = arith.constant dense<0.000000e+00> : vector<4x128xf32>
    %45 = tpu.matmul %42, %44, %cst_48 {dimension_numbers = #tpu.dot_dimension_numbers<[1], [0], [0], [1], [0, 0, 1, 1], [], []>} : vector<4x128xf32>, vector<128x128xf32>, vector<4x128xf32> -> vector<4x128xf32>
    %46 = arith.addf %39, %45 : vector<4x128xf32>
    %c2_49 = arith.constant 2 : index
    %c0_50 = arith.constant 0 : index
    %c0_51 = arith.constant 0 : index
    %47 = vector.load %arg6[%c2_49, %c0_50, %c0_51] : memref<4x4x8xf32, #tpu.memory_space<vmem>>, vector<1x4x8xf32>
    %48 = vector.shape_cast %47 : vector<1x4x8xf32> to vector<4x8xf32>
    %cst_52 = arith.constant dense<0.000000e+00> : vector<4x128xf32>
    %49 = tpu.matmul %48, %33, %cst_52 {dimension_numbers = #tpu.dot_dimension_numbers<[1], [0], [0], [1], [0, 0, 1, 1], [], []>} : vector<4x8xf32>, vector<8x128xf32>, vector<4x128xf32> -> vector<4x128xf32>
    %c2_53 = arith.constant 2 : index
    %c0_54 = arith.constant 0 : index
    %c0_55 = arith.constant 0 : index
    %50 = vector.load %arg7[%c2_53, %c0_54, %c0_55] : memref<4x128x128xf32, #tpu.memory_space<vmem>>, vector<1x128x128xf32>
    %51 = vector.shape_cast %50 : vector<1x128x128xf32> to vector<128x128xf32>
    %cst_56 = arith.constant dense<0.000000e+00> : vector<4x128xf32>
    %52 = tpu.matmul %49, %51, %cst_56 {dimension_numbers = #tpu.dot_dimension_numbers<[1], [0], [0], [1], [0, 0, 1, 1], [], []>} : vector<4x128xf32>, vector<128x128xf32>, vector<4x128xf32> -> vector<4x128xf32>
    %53 = arith.addf %46, %52 : vector<4x128xf32>
    %c3_57 = arith.constant 3 : index
    %c0_58 = arith.constant 0 : index
    %c0_59 = arith.constant 0 : index
    %54 = vector.load %arg6[%c3_57, %c0_58, %c0_59] : memref<4x4x8xf32, #tpu.memory_space<vmem>>, vector<1x4x8xf32>
    %55 = vector.shape_cast %54 : vector<1x4x8xf32> to vector<4x8xf32>
    %cst_60 = arith.constant dense<0.000000e+00> : vector<4x128xf32>
    %56 = tpu.matmul %55, %33, %cst_60 {dimension_numbers = #tpu.dot_dimension_numbers<[1], [0], [0], [1], [0, 0, 1, 1], [], []>} : vector<4x8xf32>, vector<8x128xf32>, vector<4x128xf32> -> vector<4x128xf32>
    %c3_61 = arith.constant 3 : index
    %c0_62 = arith.constant 0 : index
    %c0_63 = arith.constant 0 : index
    %57 = vector.load %arg7[%c3_61, %c0_62, %c0_63] : memref<4x128x128xf32, #tpu.memory_space<vmem>>, vector<1x128x128xf32>
    %58 = vector.shape_cast %57 : vector<1x128x128xf32> to vector<128x128xf32>
    %cst_64 = arith.constant dense<0.000000e+00> : vector<4x128xf32>
    %59 = tpu.matmul %56, %58, %cst_64 {dimension_numbers = #tpu.dot_dimension_numbers<[1], [0], [0], [1], [0, 0, 1, 1], [], []>} : vector<4x128xf32>, vector<128x128xf32>, vector<4x128xf32> -> vector<4x128xf32>
    %60 = arith.addf %53, %59 : vector<4x128xf32>
    %c0_65 = arith.constant 0 : index
    %c0_66 = arith.constant 0 : index
    %61 = vector.load %arg8[%c0_65, %c0_66] : memref<1x128xf32, #tpu.memory_space<vmem>>, vector<1x128xf32>
    %62 = vector.broadcast %61 : vector<1x128xf32> to vector<4x128xf32>
    %63 = arith.addf %60, %62 : vector<4x128xf32>
    %cst_67 = arith.constant 0.000000e+00 : f32
    %64 = vector.broadcast %cst_67 : f32 to vector<4x128xf32>
    %65 = arith.maximumf %63, %64 : vector<4x128xf32>
    %c0_68 = arith.constant 0 : index
    %c0_69 = arith.constant 0 : index
    %c0_70 = arith.constant 0 : index
    %66 = vector.load %arg9[%c0_68, %c0_69, %c0_70] : memref<3x4x4xf32, #tpu.memory_space<vmem>>, vector<1x4x4xf32>
    %67 = vector.shape_cast %66 : vector<1x4x4xf32> to vector<4x4xf32>
    %cst_71 = arith.constant dense<0.000000e+00> : vector<4x128xf32>
    %68 = tpu.matmul %67, %65, %cst_71 {dimension_numbers = #tpu.dot_dimension_numbers<[1], [0], [0], [1], [0, 0, 1, 1], [], []>} : vector<4x4xf32>, vector<4x128xf32>, vector<4x128xf32> -> vector<4x128xf32>
    %c0_72 = arith.constant 0 : index
    %c0_73 = arith.constant 0 : index
    %c0_74 = arith.constant 0 : index
    %69 = vector.load %arg10[%c0_72, %c0_73, %c0_74] : memref<3x128x128xf32, #tpu.memory_space<vmem>>, vector<1x128x128xf32>
    %70 = vector.shape_cast %69 : vector<1x128x128xf32> to vector<128x128xf32>
    %cst_75 = arith.constant dense<0.000000e+00> : vector<4x128xf32>
    %71 = tpu.matmul %68, %70, %cst_75 {dimension_numbers = #tpu.dot_dimension_numbers<[1], [0], [0], [1], [0, 0, 1, 1], [], []>} : vector<4x128xf32>, vector<128x128xf32>, vector<4x128xf32> -> vector<4x128xf32>
    %c1_76 = arith.constant 1 : index
    %c0_77 = arith.constant 0 : index
    %c0_78 = arith.constant 0 : index
    %72 = vector.load %arg9[%c1_76, %c0_77, %c0_78] : memref<3x4x4xf32, #tpu.memory_space<vmem>>, vector<1x4x4xf32>
    %73 = vector.shape_cast %72 : vector<1x4x4xf32> to vector<4x4xf32>
    %cst_79 = arith.constant dense<0.000000e+00> : vector<4x128xf32>
    %74 = tpu.matmul %73, %65, %cst_79 {dimension_numbers = #tpu.dot_dimension_numbers<[1], [0], [0], [1], [0, 0, 1, 1], [], []>} : vector<4x4xf32>, vector<4x128xf32>, vector<4x128xf32> -> vector<4x128xf32>
    %c1_80 = arith.constant 1 : index
    %c0_81 = arith.constant 0 : index
    %c0_82 = arith.constant 0 : index
    %75 = vector.load %arg10[%c1_80, %c0_81, %c0_82] : memref<3x128x128xf32, #tpu.memory_space<vmem>>, vector<1x128x128xf32>
    %76 = vector.shape_cast %75 : vector<1x128x128xf32> to vector<128x128xf32>
    %cst_83 = arith.constant dense<0.000000e+00> : vector<4x128xf32>
    %77 = tpu.matmul %74, %76, %cst_83 {dimension_numbers = #tpu.dot_dimension_numbers<[1], [0], [0], [1], [0, 0, 1, 1], [], []>} : vector<4x128xf32>, vector<128x128xf32>, vector<4x128xf32> -> vector<4x128xf32>
    %78 = arith.addf %71, %77 : vector<4x128xf32>
    %c2_84 = arith.constant 2 : index
    %c0_85 = arith.constant 0 : index
    %c0_86 = arith.constant 0 : index
    %79 = vector.load %arg9[%c2_84, %c0_85, %c0_86] : memref<3x4x4xf32, #tpu.memory_space<vmem>>, vector<1x4x4xf32>
    %80 = vector.shape_cast %79 : vector<1x4x4xf32> to vector<4x4xf32>
    %cst_87 = arith.constant dense<0.000000e+00> : vector<4x128xf32>
    %81 = tpu.matmul %80, %65, %cst_87 {dimension_numbers = #tpu.dot_dimension_numbers<[1], [0], [0], [1], [0, 0, 1, 1], [], []>} : vector<4x4xf32>, vector<4x128xf32>, vector<4x128xf32> -> vector<4x128xf32>
    %c2_88 = arith.constant 2 : index
    %c0_89 = arith.constant 0 : index
    %c0_90 = arith.constant 0 : index
    %82 = vector.load %arg10[%c2_88, %c0_89, %c0_90] : memref<3x128x128xf32, #tpu.memory_space<vmem>>, vector<1x128x128xf32>
    %83 = vector.shape_cast %82 : vector<1x128x128xf32> to vector<128x128xf32>
    %cst_91 = arith.constant dense<0.000000e+00> : vector<4x128xf32>
    %84 = tpu.matmul %81, %83, %cst_91 {dimension_numbers = #tpu.dot_dimension_numbers<[1], [0], [0], [1], [0, 0, 1, 1], [], []>} : vector<4x128xf32>, vector<128x128xf32>, vector<4x128xf32> -> vector<4x128xf32>
    %85 = arith.addf %78, %84 : vector<4x128xf32>
    %c0_92 = arith.constant 0 : index
    %c0_93 = arith.constant 0 : index
    %86 = vector.load %arg11[%c0_92, %c0_93] : memref<1x128xf32, #tpu.memory_space<vmem>>, vector<1x128xf32>
    %87 = vector.broadcast %86 : vector<1x128xf32> to vector<4x128xf32>
    %88 = arith.addf %85, %87 : vector<4x128xf32>
    %cst_94 = arith.constant 0.000000e+00 : f32
    %89 = vector.broadcast %cst_94 : f32 to vector<4x128xf32>
    %90 = arith.maximumf %88, %89 : vector<4x128xf32>
    %c0_95 = arith.constant 0 : index
    %c0_96 = arith.constant 0 : index
    %c0_97 = arith.constant 0 : index
    %91 = vector.load %arg9[%c0_95, %c0_96, %c0_97] : memref<3x4x4xf32, #tpu.memory_space<vmem>>, vector<1x4x4xf32>
    %92 = vector.shape_cast %91 : vector<1x4x4xf32> to vector<4x4xf32>
    %cst_98 = arith.constant dense<0.000000e+00> : vector<4x128xf32>
    %93 = tpu.matmul %92, %90, %cst_98 {dimension_numbers = #tpu.dot_dimension_numbers<[1], [0], [0], [1], [0, 0, 1, 1], [], []>} : vector<4x4xf32>, vector<4x128xf32>, vector<4x128xf32> -> vector<4x128xf32>
    %c0_99 = arith.constant 0 : index
    %c0_100 = arith.constant 0 : index
    %c0_101 = arith.constant 0 : index
    %c0_102 = arith.constant 0 : index
    %94 = vector.load %arg12[%c0_99, %c0_100, %c0_101, %c0_102] : memref<2x3x128x64xf32, #tpu.memory_space<vmem>>, vector<1x1x128x64xf32>
    %95 = vector.shape_cast %94 : vector<1x1x128x64xf32> to vector<128x64xf32>
    %cst_103 = arith.constant dense<0.000000e+00> : vector<4x64xf32>
    %96 = tpu.matmul %93, %95, %cst_103 {dimension_numbers = #tpu.dot_dimension_numbers<[1], [0], [0], [1], [0, 0, 1, 1], [], []>} : vector<4x128xf32>, vector<128x64xf32>, vector<4x64xf32> -> vector<4x64xf32>
    %c1_104 = arith.constant 1 : index
    %c0_105 = arith.constant 0 : index
    %c0_106 = arith.constant 0 : index
    %97 = vector.load %arg9[%c1_104, %c0_105, %c0_106] : memref<3x4x4xf32, #tpu.memory_space<vmem>>, vector<1x4x4xf32>
    %98 = vector.shape_cast %97 : vector<1x4x4xf32> to vector<4x4xf32>
    %cst_107 = arith.constant dense<0.000000e+00> : vector<4x128xf32>
    %99 = tpu.matmul %98, %90, %cst_107 {dimension_numbers = #tpu.dot_dimension_numbers<[1], [0], [0], [1], [0, 0, 1, 1], [], []>} : vector<4x4xf32>, vector<4x128xf32>, vector<4x128xf32> -> vector<4x128xf32>
    %c0_108 = arith.constant 0 : index
    %c1_109 = arith.constant 1 : index
    %c0_110 = arith.constant 0 : index
    %c0_111 = arith.constant 0 : index
    %100 = vector.load %arg12[%c0_108, %c1_109, %c0_110, %c0_111] : memref<2x3x128x64xf32, #tpu.memory_space<vmem>>, vector<1x1x128x64xf32>
    %101 = vector.shape_cast %100 : vector<1x1x128x64xf32> to vector<128x64xf32>
    %cst_112 = arith.constant dense<0.000000e+00> : vector<4x64xf32>
    %102 = tpu.matmul %99, %101, %cst_112 {dimension_numbers = #tpu.dot_dimension_numbers<[1], [0], [0], [1], [0, 0, 1, 1], [], []>} : vector<4x128xf32>, vector<128x64xf32>, vector<4x64xf32> -> vector<4x64xf32>
    %103 = arith.addf %96, %102 : vector<4x64xf32>
    %c2_113 = arith.constant 2 : index
    %c0_114 = arith.constant 0 : index
    %c0_115 = arith.constant 0 : index
    %104 = vector.load %arg9[%c2_113, %c0_114, %c0_115] : memref<3x4x4xf32, #tpu.memory_space<vmem>>, vector<1x4x4xf32>
    %105 = vector.shape_cast %104 : vector<1x4x4xf32> to vector<4x4xf32>
    %cst_116 = arith.constant dense<0.000000e+00> : vector<4x128xf32>
    %106 = tpu.matmul %105, %90, %cst_116 {dimension_numbers = #tpu.dot_dimension_numbers<[1], [0], [0], [1], [0, 0, 1, 1], [], []>} : vector<4x4xf32>, vector<4x128xf32>, vector<4x128xf32> -> vector<4x128xf32>
    %c0_117 = arith.constant 0 : index
    %c2_118 = arith.constant 2 : index
    %c0_119 = arith.constant 0 : index
    %c0_120 = arith.constant 0 : index
    %107 = vector.load %arg12[%c0_117, %c2_118, %c0_119, %c0_120] : memref<2x3x128x64xf32, #tpu.memory_space<vmem>>, vector<1x1x128x64xf32>
    %108 = vector.shape_cast %107 : vector<1x1x128x64xf32> to vector<128x64xf32>
    %cst_121 = arith.constant dense<0.000000e+00> : vector<4x64xf32>
    %109 = tpu.matmul %106, %108, %cst_121 {dimension_numbers = #tpu.dot_dimension_numbers<[1], [0], [0], [1], [0, 0, 1, 1], [], []>} : vector<4x128xf32>, vector<128x64xf32>, vector<4x64xf32> -> vector<4x64xf32>
    %110 = arith.addf %103, %109 : vector<4x64xf32>
    %cst_122 = arith.constant 0.000000e+00 : f32
    %111 = vector.broadcast %cst_122 : f32 to vector<4x64xf32>
    %112 = arith.maximumf %110, %111 : vector<4x64xf32>
    %c0_123 = arith.constant 0 : index
    %c0_124 = arith.constant 0 : index
    %c0_125 = arith.constant 0 : index
    %113 = vector.load %arg13[%c0_123, %c0_124, %c0_125] : memref<2x64x128xf32, #tpu.memory_space<vmem>>, vector<1x64x128xf32>
    %114 = vector.shape_cast %113 : vector<1x64x128xf32> to vector<64x128xf32>
    %cst_126 = arith.constant dense<0.000000e+00> : vector<4x128xf32>
    %115 = tpu.matmul %112, %114, %cst_126 {dimension_numbers = #tpu.dot_dimension_numbers<[1], [0], [0], [1], [0, 0, 1, 1], [], []>} : vector<4x64xf32>, vector<64x128xf32>, vector<4x128xf32> -> vector<4x128xf32>
    %116 = arith.addf %88, %115 : vector<4x128xf32>
    %cst_127 = arith.constant 0.000000e+00 : f32
    %117 = vector.broadcast %cst_127 : f32 to vector<4x128xf32>
    %118 = arith.maximumf %116, %117 : vector<4x128xf32>
    %c0_128 = arith.constant 0 : index
    %c0_129 = arith.constant 0 : index
    %c0_130 = arith.constant 0 : index
    %119 = vector.load %arg9[%c0_128, %c0_129, %c0_130] : memref<3x4x4xf32, #tpu.memory_space<vmem>>, vector<1x4x4xf32>
    %120 = vector.shape_cast %119 : vector<1x4x4xf32> to vector<4x4xf32>
    %cst_131 = arith.constant dense<0.000000e+00> : vector<4x128xf32>
    %121 = tpu.matmul %120, %118, %cst_131 {dimension_numbers = #tpu.dot_dimension_numbers<[1], [0], [0], [1], [0, 0, 1, 1], [], []>} : vector<4x4xf32>, vector<4x128xf32>, vector<4x128xf32> -> vector<4x128xf32>
    %c1_132 = arith.constant 1 : index
    %c0_133 = arith.constant 0 : index
    %c0_134 = arith.constant 0 : index
    %c0_135 = arith.constant 0 : index
    %122 = vector.load %arg12[%c1_132, %c0_133, %c0_134, %c0_135] : memref<2x3x128x64xf32, #tpu.memory_space<vmem>>, vector<1x1x128x64xf32>
    %123 = vector.shape_cast %122 : vector<1x1x128x64xf32> to vector<128x64xf32>
    %cst_136 = arith.constant dense<0.000000e+00> : vector<4x64xf32>
    %124 = tpu.matmul %121, %123, %cst_136 {dimension_numbers = #tpu.dot_dimension_numbers<[1], [0], [0], [1], [0, 0, 1, 1], [], []>} : vector<4x128xf32>, vector<128x64xf32>, vector<4x64xf32> -> vector<4x64xf32>
    %c1_137 = arith.constant 1 : index
    %c0_138 = arith.constant 0 : index
    %c0_139 = arith.constant 0 : index
    %125 = vector.load %arg9[%c1_137, %c0_138, %c0_139] : memref<3x4x4xf32, #tpu.memory_space<vmem>>, vector<1x4x4xf32>
    %126 = vector.shape_cast %125 : vector<1x4x4xf32> to vector<4x4xf32>
    %cst_140 = arith.constant dense<0.000000e+00> : vector<4x128xf32>
    %127 = tpu.matmul %126, %118, %cst_140 {dimension_numbers = #tpu.dot_dimension_numbers<[1], [0], [0], [1], [0, 0, 1, 1], [], []>} : vector<4x4xf32>, vector<4x128xf32>, vector<4x128xf32> -> vector<4x128xf32>
    %c1_141 = arith.constant 1 : index
    %c1_142 = arith.constant 1 : index
    %c0_143 = arith.constant 0 : index
    %c0_144 = arith.constant 0 : index
    %128 = vector.load %arg12[%c1_141, %c1_142, %c0_143, %c0_144] : memref<2x3x128x64xf32, #tpu.memory_space<vmem>>, vector<1x1x128x64xf32>
    %129 = vector.shape_cast %128 : vector<1x1x128x64xf32> to vector<128x64xf32>
    %cst_145 = arith.constant dense<0.000000e+00> : vector<4x64xf32>
    %130 = tpu.matmul %127, %129, %cst_145 {dimension_numbers = #tpu.dot_dimension_numbers<[1], [0], [0], [1], [0, 0, 1, 1], [], []>} : vector<4x128xf32>, vector<128x64xf32>, vector<4x64xf32> -> vector<4x64xf32>
    %131 = arith.addf %124, %130 : vector<4x64xf32>
    %c2_146 = arith.constant 2 : index
    %c0_147 = arith.constant 0 : index
    %c0_148 = arith.constant 0 : index
    %132 = vector.load %arg9[%c2_146, %c0_147, %c0_148] : memref<3x4x4xf32, #tpu.memory_space<vmem>>, vector<1x4x4xf32>
    %133 = vector.shape_cast %132 : vector<1x4x4xf32> to vector<4x4xf32>
    %cst_149 = arith.constant dense<0.000000e+00> : vector<4x128xf32>
    %134 = tpu.matmul %133, %118, %cst_149 {dimension_numbers = #tpu.dot_dimension_numbers<[1], [0], [0], [1], [0, 0, 1, 1], [], []>} : vector<4x4xf32>, vector<4x128xf32>, vector<4x128xf32> -> vector<4x128xf32>
    %c1_150 = arith.constant 1 : index
    %c2_151 = arith.constant 2 : index
    %c0_152 = arith.constant 0 : index
    %c0_153 = arith.constant 0 : index
    %135 = vector.load %arg12[%c1_150, %c2_151, %c0_152, %c0_153] : memref<2x3x128x64xf32, #tpu.memory_space<vmem>>, vector<1x1x128x64xf32>
    %136 = vector.shape_cast %135 : vector<1x1x128x64xf32> to vector<128x64xf32>
    %cst_154 = arith.constant dense<0.000000e+00> : vector<4x64xf32>
    %137 = tpu.matmul %134, %136, %cst_154 {dimension_numbers = #tpu.dot_dimension_numbers<[1], [0], [0], [1], [0, 0, 1, 1], [], []>} : vector<4x128xf32>, vector<128x64xf32>, vector<4x64xf32> -> vector<4x64xf32>
    %138 = arith.addf %131, %137 : vector<4x64xf32>
    %cst_155 = arith.constant 0.000000e+00 : f32
    %139 = vector.broadcast %cst_155 : f32 to vector<4x64xf32>
    %140 = arith.maximumf %138, %139 : vector<4x64xf32>
    %c1_156 = arith.constant 1 : index
    %c0_157 = arith.constant 0 : index
    %c0_158 = arith.constant 0 : index
    %141 = vector.load %arg13[%c1_156, %c0_157, %c0_158] : memref<2x64x128xf32, #tpu.memory_space<vmem>>, vector<1x64x128xf32>
    %142 = vector.shape_cast %141 : vector<1x64x128xf32> to vector<64x128xf32>
    %cst_159 = arith.constant dense<0.000000e+00> : vector<4x128xf32>
    %143 = tpu.matmul %140, %142, %cst_159 {dimension_numbers = #tpu.dot_dimension_numbers<[1], [0], [0], [1], [0, 0, 1, 1], [], []>} : vector<4x64xf32>, vector<64x128xf32>, vector<4x128xf32> -> vector<4x128xf32>
    %144 = arith.addf %116, %143 : vector<4x128xf32>
    %cst_160 = arith.constant 0.000000e+00 : f32
    %145 = vector.broadcast %cst_160 : f32 to vector<4x128xf32>
    %146 = arith.maximumf %144, %145 : vector<4x128xf32>
    %c0_161 = arith.constant 0 : index
    %c0_162 = arith.constant 0 : index
    %147 = vector.load %arg14[%c0_161, %c0_162] : memref<128x64xf32, #tpu.memory_space<vmem>>, vector<128x64xf32>
    %cst_163 = arith.constant dense<0.000000e+00> : vector<4x64xf32>
    %148 = tpu.matmul %146, %147, %cst_163 {dimension_numbers = #tpu.dot_dimension_numbers<[1], [0], [0], [1], [0, 0, 1, 1], [], []>} : vector<4x128xf32>, vector<128x64xf32>, vector<4x64xf32> -> vector<4x64xf32>
    %c0_164 = arith.constant 0 : index
    %c0_165 = arith.constant 0 : index
    %149 = vector.load %arg15[%c0_164, %c0_165] : memref<1x64xf32, #tpu.memory_space<vmem>>, vector<1x64xf32>
    %150 = vector.broadcast %149 : vector<1x64xf32> to vector<4x64xf32>
    %151 = arith.addf %148, %150 : vector<4x64xf32>
    %152 = vector.extract_strided_slice %151 {offsets = [0, 0], sizes = [4, 32], strides = [1, 1]} : vector<4x64xf32> to vector<4x32xf32>
    %153 = vector.extract_strided_slice %151 {offsets = [0, 32], sizes = [4, 32], strides = [1, 1]} : vector<4x64xf32> to vector<4x32xf32>
    %c0_166 = arith.constant 0 : index
    %c0_167 = arith.constant 0 : index
    %c0_168 = arith.constant 0 : index
    %154 = vector.load %arg2[%c0_166, %c0_167, %c0_168] : memref<1x4x32xf32, #tpu.memory_space<vmem>>, vector<1x4x32xf32>
    %155 = vector.shape_cast %154 : vector<1x4x32xf32> to vector<4x32xf32>
    %cst_169 = arith.constant 5.000000e-01 : f32
    %156 = vector.broadcast %cst_169 : f32 to vector<4x32xf32>
    %157 = arith.mulf %156, %153 : vector<4x32xf32>
    %158 = math.exp %157 : vector<4x32xf32>
    %159 = arith.mulf %155, %158 : vector<4x32xf32>
    %160 = arith.addf %152, %159 : vector<4x32xf32>
    %c0_170 = arith.constant 0 : index
    %c0_171 = arith.constant 0 : index
    %c0_172 = arith.constant 0 : index
    %161 = vector.load %arg27[%c0_170, %c0_171, %c0_172] : memref<1x4x32xf32, #tpu.memory_space<vmem>>, vector<1x4x32xf32>
    %162 = vector.shape_cast %161 : vector<1x4x32xf32> to vector<4x32xf32>
    %163 = vector.shape_cast %152 : vector<4x32xf32> to vector<1x4x32xf32>
    tpu.vector_store %arg27[%c0_170, %c0_171, %c0_172], %163 {strides = array<i32>} : memref<1x4x32xf32, #tpu.memory_space<vmem>>, vector<1x4x32xf32>,
    %c0_173 = arith.constant 0 : index
    %c0_174 = arith.constant 0 : index
    %c0_175 = arith.constant 0 : index
    %164 = vector.load %arg28[%c0_173, %c0_174, %c0_175] : memref<1x4x32xf32, #tpu.memory_space<vmem>>, vector<1x4x32xf32>
    %165 = vector.shape_cast %164 : vector<1x4x32xf32> to vector<4x32xf32>
    %166 = vector.shape_cast %153 : vector<4x32xf32> to vector<1x4x32xf32>
    tpu.vector_store %arg28[%c0_173, %c0_174, %c0_175], %166 {strides = array<i32>} : memref<1x4x32xf32, #tpu.memory_space<vmem>>, vector<1x4x32xf32>,
    %c0_176 = arith.constant 0 : index
    %c0_177 = arith.constant 0 : index
    %c0_178 = arith.constant 0 : index
    %167 = vector.load %arg9[%c0_176, %c0_177, %c0_178] : memref<3x4x4xf32, #tpu.memory_space<vmem>>, vector<1x4x4xf32>
    %168 = vector.shape_cast %167 : vector<1x4x4xf32> to vector<4x4xf32>
    %cst_179 = arith.constant dense<0.000000e+00> : vector<4x32xf32>
    %169 = tpu.matmul %168, %160, %cst_179 {dimension_numbers = #tpu.dot_dimension_numbers<[1], [0], [0], [1], [0, 0, 1, 1], [], []>} : vector<4x4xf32>, vector<4x32xf32>, vector<4x32xf32> -> vector<4x32xf32>
    %c0_180 = arith.constant 0 : index
    %c0_181 = arith.constant 0 : index
    %c0_182 = arith.constant 0 : index
    %170 = vector.load %arg16[%c0_180, %c0_181, %c0_182] : memref<3x32x128xf32, #tpu.memory_space<vmem>>, vector<1x32x128xf32>
    %171 = vector.shape_cast %170 : vector<1x32x128xf32> to vector<32x128xf32>
    %cst_183 = arith.constant dense<0.000000e+00> : vector<4x128xf32>
    %172 = tpu.matmul %169, %171, %cst_183 {dimension_numbers = #tpu.dot_dimension_numbers<[1], [0], [0], [1], [0, 0, 1, 1], [], []>} : vector<4x32xf32>, vector<32x128xf32>, vector<4x128xf32> -> vector<4x128xf32>
    %c1_184 = arith.constant 1 : index
    %c0_185 = arith.constant 0 : index
    %c0_186 = arith.constant 0 : index
    %173 = vector.load %arg9[%c1_184, %c0_185, %c0_186] : memref<3x4x4xf32, #tpu.memory_space<vmem>>, vector<1x4x4xf32>
    %174 = vector.shape_cast %173 : vector<1x4x4xf32> to vector<4x4xf32>
    %cst_187 = arith.constant dense<0.000000e+00> : vector<4x32xf32>
    %175 = tpu.matmul %174, %160, %cst_187 {dimension_numbers = #tpu.dot_dimension_numbers<[1], [0], [0], [1], [0, 0, 1, 1], [], []>} : vector<4x4xf32>, vector<4x32xf32>, vector<4x32xf32> -> vector<4x32xf32>
    %c1_188 = arith.constant 1 : index
    %c0_189 = arith.constant 0 : index
    %c0_190 = arith.constant 0 : index
    %176 = vector.load %arg16[%c1_188, %c0_189, %c0_190] : memref<3x32x128xf32, #tpu.memory_space<vmem>>, vector<1x32x128xf32>
    %177 = vector.shape_cast %176 : vector<1x32x128xf32> to vector<32x128xf32>
    %cst_191 = arith.constant dense<0.000000e+00> : vector<4x128xf32>
    %178 = tpu.matmul %175, %177, %cst_191 {dimension_numbers = #tpu.dot_dimension_numbers<[1], [0], [0], [1], [0, 0, 1, 1], [], []>} : vector<4x32xf32>, vector<32x128xf32>, vector<4x128xf32> -> vector<4x128xf32>
    %179 = arith.addf %172, %178 : vector<4x128xf32>
    %c2_192 = arith.constant 2 : index
    %c0_193 = arith.constant 0 : index
    %c0_194 = arith.constant 0 : index
    %180 = vector.load %arg9[%c2_192, %c0_193, %c0_194] : memref<3x4x4xf32, #tpu.memory_space<vmem>>, vector<1x4x4xf32>
    %181 = vector.shape_cast %180 : vector<1x4x4xf32> to vector<4x4xf32>
    %cst_195 = arith.constant dense<0.000000e+00> : vector<4x32xf32>
    %182 = tpu.matmul %181, %160, %cst_195 {dimension_numbers = #tpu.dot_dimension_numbers<[1], [0], [0], [1], [0, 0, 1, 1], [], []>} : vector<4x4xf32>, vector<4x32xf32>, vector<4x32xf32> -> vector<4x32xf32>
    %c2_196 = arith.constant 2 : index
    %c0_197 = arith.constant 0 : index
    %c0_198 = arith.constant 0 : index
    %183 = vector.load %arg16[%c2_196, %c0_197, %c0_198] : memref<3x32x128xf32, #tpu.memory_space<vmem>>, vector<1x32x128xf32>
    %184 = vector.shape_cast %183 : vector<1x32x128xf32> to vector<32x128xf32>
    %cst_199 = arith.constant dense<0.000000e+00> : vector<4x128xf32>
    %185 = tpu.matmul %182, %184, %cst_199 {dimension_numbers = #tpu.dot_dimension_numbers<[1], [0], [0], [1], [0, 0, 1, 1], [], []>} : vector<4x32xf32>, vector<32x128xf32>, vector<4x128xf32> -> vector<4x128xf32>
    %186 = arith.addf %179, %185 : vector<4x128xf32>
    %c0_200 = arith.constant 0 : index
    %c0_201 = arith.constant 0 : index
    %187 = vector.load %arg17[%c0_200, %c0_201] : memref<1x128xf32, #tpu.memory_space<vmem>>, vector<1x128xf32>
    %188 = vector.broadcast %187 : vector<1x128xf32> to vector<4x128xf32>
    %189 = arith.addf %186, %188 : vector<4x128xf32>
    %cst_202 = arith.constant 0.000000e+00 : f32
    %190 = vector.broadcast %cst_202 : f32 to vector<4x128xf32>
    %191 = arith.maximumf %189, %190 : vector<4x128xf32>
    %c0_203 = arith.constant 0 : index
    %c0_204 = arith.constant 0 : index
    %c0_205 = arith.constant 0 : index
    %192 = vector.load %arg9[%c0_203, %c0_204, %c0_205] : memref<3x4x4xf32, #tpu.memory_space<vmem>>, vector<1x4x4xf32>
    %193 = vector.shape_cast %192 : vector<1x4x4xf32> to vector<4x4xf32>
    %cst_206 = arith.constant dense<0.000000e+00> : vector<4x128xf32>
    %194 = tpu.matmul %193, %191, %cst_206 {dimension_numbers = #tpu.dot_dimension_numbers<[1], [0], [0], [1], [0, 0, 1, 1], [], []>} : vector<4x4xf32>, vector<4x128xf32>, vector<4x128xf32> -> vector<4x128xf32>
    %c0_207 = arith.constant 0 : index
    %c0_208 = arith.constant 0 : index
    %c0_209 = arith.constant 0 : index
    %c0_210 = arith.constant 0 : index
    %195 = vector.load %arg18[%c0_207, %c0_208, %c0_209, %c0_210] : memref<2x3x128x64xf32, #tpu.memory_space<vmem>>, vector<1x1x128x64xf32>
    %196 = vector.shape_cast %195 : vector<1x1x128x64xf32> to vector<128x64xf32>
    %cst_211 = arith.constant dense<0.000000e+00> : vector<4x64xf32>
    %197 = tpu.matmul %194, %196, %cst_211 {dimension_numbers = #tpu.dot_dimension_numbers<[1], [0], [0], [1], [0, 0, 1, 1], [], []>} : vector<4x128xf32>, vector<128x64xf32>, vector<4x64xf32> -> vector<4x64xf32>
    %c1_212 = arith.constant 1 : index
    %c0_213 = arith.constant 0 : index
    %c0_214 = arith.constant 0 : index
    %198 = vector.load %arg9[%c1_212, %c0_213, %c0_214] : memref<3x4x4xf32, #tpu.memory_space<vmem>>, vector<1x4x4xf32>
    %199 = vector.shape_cast %198 : vector<1x4x4xf32> to vector<4x4xf32>
    %cst_215 = arith.constant dense<0.000000e+00> : vector<4x128xf32>
    %200 = tpu.matmul %199, %191, %cst_215 {dimension_numbers = #tpu.dot_dimension_numbers<[1], [0], [0], [1], [0, 0, 1, 1], [], []>} : vector<4x4xf32>, vector<4x128xf32>, vector<4x128xf32> -> vector<4x128xf32>
    %c0_216 = arith.constant 0 : index
    %c1_217 = arith.constant 1 : index
    %c0_218 = arith.constant 0 : index
    %c0_219 = arith.constant 0 : index
    %201 = vector.load %arg18[%c0_216, %c1_217, %c0_218, %c0_219] : memref<2x3x128x64xf32, #tpu.memory_space<vmem>>, vector<1x1x128x64xf32>
    %202 = vector.shape_cast %201 : vector<1x1x128x64xf32> to vector<128x64xf32>
    %cst_220 = arith.constant dense<0.000000e+00> : vector<4x64xf32>
    %203 = tpu.matmul %200, %202, %cst_220 {dimension_numbers = #tpu.dot_dimension_numbers<[1], [0], [0], [1], [0, 0, 1, 1], [], []>} : vector<4x128xf32>, vector<128x64xf32>, vector<4x64xf32> -> vector<4x64xf32>
    %204 = arith.addf %197, %203 : vector<4x64xf32>
    %c2_221 = arith.constant 2 : index
    %c0_222 = arith.constant 0 : index
    %c0_223 = arith.constant 0 : index
    %205 = vector.load %arg9[%c2_221, %c0_222, %c0_223] : memref<3x4x4xf32, #tpu.memory_space<vmem>>, vector<1x4x4xf32>
    %206 = vector.shape_cast %205 : vector<1x4x4xf32> to vector<4x4xf32>
    %cst_224 = arith.constant dense<0.000000e+00> : vector<4x128xf32>
    %207 = tpu.matmul %206, %191, %cst_224 {dimension_numbers = #tpu.dot_dimension_numbers<[1], [0], [0], [1], [0, 0, 1, 1], [], []>} : vector<4x4xf32>, vector<4x128xf32>, vector<4x128xf32> -> vector<4x128xf32>
    %c0_225 = arith.constant 0 : index
    %c2_226 = arith.constant 2 : index
    %c0_227 = arith.constant 0 : index
    %c0_228 = arith.constant 0 : index
    %208 = vector.load %arg18[%c0_225, %c2_226, %c0_227, %c0_228] : memref<2x3x128x64xf32, #tpu.memory_space<vmem>>, vector<1x1x128x64xf32>
    %209 = vector.shape_cast %208 : vector<1x1x128x64xf32> to vector<128x64xf32>
    %cst_229 = arith.constant dense<0.000000e+00> : vector<4x64xf32>
    %210 = tpu.matmul %207, %209, %cst_229 {dimension_numbers = #tpu.dot_dimension_numbers<[1], [0], [0], [1], [0, 0, 1, 1], [], []>} : vector<4x128xf32>, vector<128x64xf32>, vector<4x64xf32> -> vector<4x64xf32>
    %211 = arith.addf %204, %210 : vector<4x64xf32>
    %cst_230 = arith.constant 0.000000e+00 : f32
    %212 = vector.broadcast %cst_230 : f32 to vector<4x64xf32>
    %213 = arith.maximumf %211, %212 : vector<4x64xf32>
    %c0_231 = arith.constant 0 : index
    %c0_232 = arith.constant 0 : index
    %c0_233 = arith.constant 0 : index
    %214 = vector.load %arg19[%c0_231, %c0_232, %c0_233] : memref<2x64x128xf32, #tpu.memory_space<vmem>>, vector<1x64x128xf32>
    %215 = vector.shape_cast %214 : vector<1x64x128xf32> to vector<64x128xf32>
    %cst_234 = arith.constant dense<0.000000e+00> : vector<4x128xf32>
    %216 = tpu.matmul %213, %215, %cst_234 {dimension_numbers = #tpu.dot_dimension_numbers<[1], [0], [0], [1], [0, 0, 1, 1], [], []>} : vector<4x64xf32>, vector<64x128xf32>, vector<4x128xf32> -> vector<4x128xf32>
    %217 = arith.addf %189, %216 : vector<4x128xf32>
    %cst_235 = arith.constant 0.000000e+00 : f32
    %218 = vector.broadcast %cst_235 : f32 to vector<4x128xf32>
    %219 = arith.maximumf %217, %218 : vector<4x128xf32>
    %c0_236 = arith.constant 0 : index
    %c0_237 = arith.constant 0 : index
    %c0_238 = arith.constant 0 : index
    %220 = vector.load %arg9[%c0_236, %c0_237, %c0_238] : memref<3x4x4xf32, #tpu.memory_space<vmem>>, vector<1x4x4xf32>
    %221 = vector.shape_cast %220 : vector<1x4x4xf32> to vector<4x4xf32>
    %cst_239 = arith.constant dense<0.000000e+00> : vector<4x128xf32>
    %222 = tpu.matmul %221, %219, %cst_239 {dimension_numbers = #tpu.dot_dimension_numbers<[1], [0], [0], [1], [0, 0, 1, 1], [], []>} : vector<4x4xf32>, vector<4x128xf32>, vector<4x128xf32> -> vector<4x128xf32>
    %c1_240 = arith.constant 1 : index
    %c0_241 = arith.constant 0 : index
    %c0_242 = arith.constant 0 : index
    %c0_243 = arith.constant 0 : index
    %223 = vector.load %arg18[%c1_240, %c0_241, %c0_242, %c0_243] : memref<2x3x128x64xf32, #tpu.memory_space<vmem>>, vector<1x1x128x64xf32>
    %224 = vector.shape_cast %223 : vector<1x1x128x64xf32> to vector<128x64xf32>
    %cst_244 = arith.constant dense<0.000000e+00> : vector<4x64xf32>
    %225 = tpu.matmul %222, %224, %cst_244 {dimension_numbers = #tpu.dot_dimension_numbers<[1], [0], [0], [1], [0, 0, 1, 1], [], []>} : vector<4x128xf32>, vector<128x64xf32>, vector<4x64xf32> -> vector<4x64xf32>
    %c1_245 = arith.constant 1 : index
    %c0_246 = arith.constant 0 : index
    %c0_247 = arith.constant 0 : index
    %226 = vector.load %arg9[%c1_245, %c0_246, %c0_247] : memref<3x4x4xf32, #tpu.memory_space<vmem>>, vector<1x4x4xf32>
    %227 = vector.shape_cast %226 : vector<1x4x4xf32> to vector<4x4xf32>
    %cst_248 = arith.constant dense<0.000000e+00> : vector<4x128xf32>
    %228 = tpu.matmul %227, %219, %cst_248 {dimension_numbers = #tpu.dot_dimension_numbers<[1], [0], [0], [1], [0, 0, 1, 1], [], []>} : vector<4x4xf32>, vector<4x128xf32>, vector<4x128xf32> -> vector<4x128xf32>
    %c1_249 = arith.constant 1 : index
    %c1_250 = arith.constant 1 : index
    %c0_251 = arith.constant 0 : index
    %c0_252 = arith.constant 0 : index
    %229 = vector.load %arg18[%c1_249, %c1_250, %c0_251, %c0_252] : memref<2x3x128x64xf32, #tpu.memory_space<vmem>>, vector<1x1x128x64xf32>
    %230 = vector.shape_cast %229 : vector<1x1x128x64xf32> to vector<128x64xf32>
    %cst_253 = arith.constant dense<0.000000e+00> : vector<4x64xf32>
    %231 = tpu.matmul %228, %230, %cst_253 {dimension_numbers = #tpu.dot_dimension_numbers<[1], [0], [0], [1], [0, 0, 1, 1], [], []>} : vector<4x128xf32>, vector<128x64xf32>, vector<4x64xf32> -> vector<4x64xf32>
    %232 = arith.addf %225, %231 : vector<4x64xf32>
    %c2_254 = arith.constant 2 : index
    %c0_255 = arith.constant 0 : index
    %c0_256 = arith.constant 0 : index
    %233 = vector.load %arg9[%c2_254, %c0_255, %c0_256] : memref<3x4x4xf32, #tpu.memory_space<vmem>>, vector<1x4x4xf32>
    %234 = vector.shape_cast %233 : vector<1x4x4xf32> to vector<4x4xf32>
    %cst_257 = arith.constant dense<0.000000e+00> : vector<4x128xf32>
    %235 = tpu.matmul %234, %219, %cst_257 {dimension_numbers = #tpu.dot_dimension_numbers<[1], [0], [0], [1], [0, 0, 1, 1], [], []>} : vector<4x4xf32>, vector<4x128xf32>, vector<4x128xf32> -> vector<4x128xf32>
    %c1_258 = arith.constant 1 : index
    %c2_259 = arith.constant 2 : index
    %c0_260 = arith.constant 0 : index
    %c0_261 = arith.constant 0 : index
    %236 = vector.load %arg18[%c1_258, %c2_259, %c0_260, %c0_261] : memref<2x3x128x64xf32, #tpu.memory_space<vmem>>, vector<1x1x128x64xf32>
    %237 = vector.shape_cast %236 : vector<1x1x128x64xf32> to vector<128x64xf32>
    %cst_262 = arith.constant dense<0.000000e+00> : vector<4x64xf32>
    %238 = tpu.matmul %235, %237, %cst_262 {dimension_numbers = #tpu.dot_dimension_numbers<[1], [0], [0], [1], [0, 0, 1, 1], [], []>} : vector<4x128xf32>, vector<128x64xf32>, vector<4x64xf32> -> vector<4x64xf32>
    %239 = arith.addf %232, %238 : vector<4x64xf32>
    %cst_263 = arith.constant 0.000000e+00 : f32
    %240 = vector.broadcast %cst_263 : f32 to vector<4x64xf32>
    %241 = arith.maximumf %239, %240 : vector<4x64xf32>
    %c1_264 = arith.constant 1 : index
    %c0_265 = arith.constant 0 : index
    %c0_266 = arith.constant 0 : index
    %242 = vector.load %arg19[%c1_264, %c0_265, %c0_266] : memref<2x64x128xf32, #tpu.memory_space<vmem>>, vector<1x64x128xf32>
    %243 = vector.shape_cast %242 : vector<1x64x128xf32> to vector<64x128xf32>
    %cst_267 = arith.constant dense<0.000000e+00> : vector<4x128xf32>
    %244 = tpu.matmul %241, %243, %cst_267 {dimension_numbers = #tpu.dot_dimension_numbers<[1], [0], [0], [1], [0, 0, 1, 1], [], []>} : vector<4x64xf32>, vector<64x128xf32>, vector<4x128xf32> -> vector<4x128xf32>
    %245 = arith.addf %217, %244 : vector<4x128xf32>
    %cst_268 = arith.constant 0.000000e+00 : f32
    %246 = vector.broadcast %cst_268 : f32 to vector<4x128xf32>
    %247 = arith.maximumf %245, %246 : vector<4x128xf32>
    %c0_269 = arith.constant 0 : index
    %c0_270 = arith.constant 0 : index
    %c0_271 = arith.constant 0 : index
    %248 = vector.load %arg20[%c0_269, %c0_270, %c0_271] : memref<4x8x4xf32, #tpu.memory_space<vmem>>, vector<1x8x4xf32>
    %249 = vector.shape_cast %248 : vector<1x8x4xf32> to vector<8x4xf32>
    %cst_272 = arith.constant dense<0.000000e+00> : vector<8x128xf32>
    %250 = tpu.matmul %249, %247, %cst_272 {dimension_numbers = #tpu.dot_dimension_numbers<[1], [0], [0], [1], [0, 0, 1, 1], [], []>} : vector<8x4xf32>, vector<4x128xf32>, vector<8x128xf32> -> vector<8x128xf32>
    %c0_273 = arith.constant 0 : index
    %c0_274 = arith.constant 0 : index
    %c0_275 = arith.constant 0 : index
    %251 = vector.load %arg21[%c0_273, %c0_274, %c0_275] : memref<4x128x128xf32, #tpu.memory_space<vmem>>, vector<1x128x128xf32>
    %252 = vector.shape_cast %251 : vector<1x128x128xf32> to vector<128x128xf32>
    %cst_276 = arith.constant dense<0.000000e+00> : vector<8x128xf32>
    %253 = tpu.matmul %250, %252, %cst_276 {dimension_numbers = #tpu.dot_dimension_numbers<[1], [0], [0], [1], [0, 0, 1, 1], [], []>} : vector<8x128xf32>, vector<128x128xf32>, vector<8x128xf32> -> vector<8x128xf32>
    %c1_277 = arith.constant 1 : index
    %c0_278 = arith.constant 0 : index
    %c0_279 = arith.constant 0 : index
    %254 = vector.load %arg20[%c1_277, %c0_278, %c0_279] : memref<4x8x4xf32, #tpu.memory_space<vmem>>, vector<1x8x4xf32>
    %255 = vector.shape_cast %254 : vector<1x8x4xf32> to vector<8x4xf32>
    %cst_280 = arith.constant dense<0.000000e+00> : vector<8x128xf32>
    %256 = tpu.matmul %255, %247, %cst_280 {dimension_numbers = #tpu.dot_dimension_numbers<[1], [0], [0], [1], [0, 0, 1, 1], [], []>} : vector<8x4xf32>, vector<4x128xf32>, vector<8x128xf32> -> vector<8x128xf32>
    %c1_281 = arith.constant 1 : index
    %c0_282 = arith.constant 0 : index
    %c0_283 = arith.constant 0 : index
    %257 = vector.load %arg21[%c1_281, %c0_282, %c0_283] : memref<4x128x128xf32, #tpu.memory_space<vmem>>, vector<1x128x128xf32>
    %258 = vector.shape_cast %257 : vector<1x128x128xf32> to vector<128x128xf32>
    %cst_284 = arith.constant dense<0.000000e+00> : vector<8x128xf32>
    %259 = tpu.matmul %256, %258, %cst_284 {dimension_numbers = #tpu.dot_dimension_numbers<[1], [0], [0], [1], [0, 0, 1, 1], [], []>} : vector<8x128xf32>, vector<128x128xf32>, vector<8x128xf32> -> vector<8x128xf32>
    %260 = arith.addf %253, %259 : vector<8x128xf32>
    %c2_285 = arith.constant 2 : index
    %c0_286 = arith.constant 0 : index
    %c0_287 = arith.constant 0 : index
    %261 = vector.load %arg20[%c2_285, %c0_286, %c0_287] : memref<4x8x4xf32, #tpu.memory_space<vmem>>, vector<1x8x4xf32>
    %262 = vector.shape_cast %261 : vector<1x8x4xf32> to vector<8x4xf32>
    %cst_288 = arith.constant dense<0.000000e+00> : vector<8x128xf32>
    %263 = tpu.matmul %262, %247, %cst_288 {dimension_numbers = #tpu.dot_dimension_numbers<[1], [0], [0], [1], [0, 0, 1, 1], [], []>} : vector<8x4xf32>, vector<4x128xf32>, vector<8x128xf32> -> vector<8x128xf32>
    %c2_289 = arith.constant 2 : index
    %c0_290 = arith.constant 0 : index
    %c0_291 = arith.constant 0 : index
    %264 = vector.load %arg21[%c2_289, %c0_290, %c0_291] : memref<4x128x128xf32, #tpu.memory_space<vmem>>, vector<1x128x128xf32>
    %265 = vector.shape_cast %264 : vector<1x128x128xf32> to vector<128x128xf32>
    %cst_292 = arith.constant dense<0.000000e+00> : vector<8x128xf32>
    %266 = tpu.matmul %263, %265, %cst_292 {dimension_numbers = #tpu.dot_dimension_numbers<[1], [0], [0], [1], [0, 0, 1, 1], [], []>} : vector<8x128xf32>, vector<128x128xf32>, vector<8x128xf32> -> vector<8x128xf32>
    %267 = arith.addf %260, %266 : vector<8x128xf32>
    %c3_293 = arith.constant 3 : index
    %c0_294 = arith.constant 0 : index
    %c0_295 = arith.constant 0 : index
    %268 = vector.load %arg20[%c3_293, %c0_294, %c0_295] : memref<4x8x4xf32, #tpu.memory_space<vmem>>, vector<1x8x4xf32>
    %269 = vector.shape_cast %268 : vector<1x8x4xf32> to vector<8x4xf32>
    %cst_296 = arith.constant dense<0.000000e+00> : vector<8x128xf32>
    %270 = tpu.matmul %269, %247, %cst_296 {dimension_numbers = #tpu.dot_dimension_numbers<[1], [0], [0], [1], [0, 0, 1, 1], [], []>} : vector<8x4xf32>, vector<4x128xf32>, vector<8x128xf32> -> vector<8x128xf32>
    %c3_297 = arith.constant 3 : index
    %c0_298 = arith.constant 0 : index
    %c0_299 = arith.constant 0 : index
    %271 = vector.load %arg21[%c3_297, %c0_298, %c0_299] : memref<4x128x128xf32, #tpu.memory_space<vmem>>, vector<1x128x128xf32>
    %272 = vector.shape_cast %271 : vector<1x128x128xf32> to vector<128x128xf32>
    %cst_300 = arith.constant dense<0.000000e+00> : vector<8x128xf32>
    %273 = tpu.matmul %270, %272, %cst_300 {dimension_numbers = #tpu.dot_dimension_numbers<[1], [0], [0], [1], [0, 0, 1, 1], [], []>} : vector<8x128xf32>, vector<128x128xf32>, vector<8x128xf32> -> vector<8x128xf32>
    %274 = arith.addf %267, %273 : vector<8x128xf32>
    %c0_301 = arith.constant 0 : index
    %c0_302 = arith.constant 0 : index
    %275 = vector.load %arg22[%c0_301, %c0_302] : memref<1x128xf32, #tpu.memory_space<vmem>>, vector<1x128xf32>
    %276 = vector.broadcast %275 : vector<1x128xf32> to vector<8x128xf32>
    %277 = arith.addf %274, %276 : vector<8x128xf32>
    %cst_303 = arith.constant 0.000000e+00 : f32
    %278 = vector.broadcast %cst_303 : f32 to vector<8x128xf32>
    %279 = arith.maximumf %277, %278 : vector<8x128xf32>
    %c0_304 = arith.constant 0 : index
    %c0_305 = arith.constant 0 : index
    %c0_306 = arith.constant 0 : index
    %280 = vector.load %arg23[%c0_304, %c0_305, %c0_306] : memref<4x16x8xf32, #tpu.memory_space<vmem>>, vector<1x16x8xf32>
    %281 = vector.shape_cast %280 : vector<1x16x8xf32> to vector<16x8xf32>
    %cst_307 = arith.constant dense<0.000000e+00> : vector<16x128xf32>
    %282 = tpu.matmul %281, %279, %cst_307 {dimension_numbers = #tpu.dot_dimension_numbers<[1], [0], [0], [1], [0, 0, 1, 1], [], []>} : vector<16x8xf32>, vector<8x128xf32>, vector<16x128xf32> -> vector<16x128xf32>
    %c0_308 = arith.constant 0 : index
    %c0_309 = arith.constant 0 : index
    %c0_310 = arith.constant 0 : index
    %283 = vector.load %arg24[%c0_308, %c0_309, %c0_310] : memref<4x128x16xf32, #tpu.memory_space<vmem>>, vector<1x128x16xf32>
    %284 = vector.shape_cast %283 : vector<1x128x16xf32> to vector<128x16xf32>
    %cst_311 = arith.constant dense<0.000000e+00> : vector<16x16xf32>
    %285 = tpu.matmul %282, %284, %cst_311 {dimension_numbers = #tpu.dot_dimension_numbers<[1], [0], [0], [1], [0, 0, 1, 1], [], []>} : vector<16x128xf32>, vector<128x16xf32>, vector<16x16xf32> -> vector<16x16xf32>
    %c1_312 = arith.constant 1 : index
    %c0_313 = arith.constant 0 : index
    %c0_314 = arith.constant 0 : index
    %286 = vector.load %arg23[%c1_312, %c0_313, %c0_314] : memref<4x16x8xf32, #tpu.memory_space<vmem>>, vector<1x16x8xf32>
    %287 = vector.shape_cast %286 : vector<1x16x8xf32> to vector<16x8xf32>
    %cst_315 = arith.constant dense<0.000000e+00> : vector<16x128xf32>
    %288 = tpu.matmul %287, %279, %cst_315 {dimension_numbers = #tpu.dot_dimension_numbers<[1], [0], [0], [1], [0, 0, 1, 1], [], []>} : vector<16x8xf32>, vector<8x128xf32>, vector<16x128xf32> -> vector<16x128xf32>
    %c1_316 = arith.constant 1 : index
    %c0_317 = arith.constant 0 : index
    %c0_318 = arith.constant 0 : index
    %289 = vector.load %arg24[%c1_316, %c0_317, %c0_318] : memref<4x128x16xf32, #tpu.memory_space<vmem>>, vector<1x128x16xf32>
    %290 = vector.shape_cast %289 : vector<1x128x16xf32> to vector<128x16xf32>
    %cst_319 = arith.constant dense<0.000000e+00> : vector<16x16xf32>
    %291 = tpu.matmul %288, %290, %cst_319 {dimension_numbers = #tpu.dot_dimension_numbers<[1], [0], [0], [1], [0, 0, 1, 1], [], []>} : vector<16x128xf32>, vector<128x16xf32>, vector<16x16xf32> -> vector<16x16xf32>
    %292 = arith.addf %285, %291 : vector<16x16xf32>
    %c2_320 = arith.constant 2 : index
    %c0_321 = arith.constant 0 : index
    %c0_322 = arith.constant 0 : index
    %293 = vector.load %arg23[%c2_320, %c0_321, %c0_322] : memref<4x16x8xf32, #tpu.memory_space<vmem>>, vector<1x16x8xf32>
    %294 = vector.shape_cast %293 : vector<1x16x8xf32> to vector<16x8xf32>
    %cst_323 = arith.constant dense<0.000000e+00> : vector<16x128xf32>
    %295 = tpu.matmul %294, %279, %cst_323 {dimension_numbers = #tpu.dot_dimension_numbers<[1], [0], [0], [1], [0, 0, 1, 1], [], []>} : vector<16x8xf32>, vector<8x128xf32>, vector<16x128xf32> -> vector<16x128xf32>
    %c2_324 = arith.constant 2 : index
    %c0_325 = arith.constant 0 : index
    %c0_326 = arith.constant 0 : index
    %296 = vector.load %arg24[%c2_324, %c0_325, %c0_326] : memref<4x128x16xf32, #tpu.memory_space<vmem>>, vector<1x128x16xf32>
    %297 = vector.shape_cast %296 : vector<1x128x16xf32> to vector<128x16xf32>
    %cst_327 = arith.constant dense<0.000000e+00> : vector<16x16xf32>
    %298 = tpu.matmul %295, %297, %cst_327 {dimension_numbers = #tpu.dot_dimension_numbers<[1], [0], [0], [1], [0, 0, 1, 1], [], []>} : vector<16x128xf32>, vector<128x16xf32>, vector<16x16xf32> -> vector<16x16xf32>
    %299 = arith.addf %292, %298 : vector<16x16xf32>
    %c3_328 = arith.constant 3 : index
    %c0_329 = arith.constant 0 : index
    %c0_330 = arith.constant 0 : index
    %300 = vector.load %arg23[%c3_328, %c0_329, %c0_330] : memref<4x16x8xf32, #tpu.memory_space<vmem>>, vector<1x16x8xf32>
    %301 = vector.shape_cast %300 : vector<1x16x8xf32> to vector<16x8xf32>
    %cst_331 = arith.constant dense<0.000000e+00> : vector<16x128xf32>
    %302 = tpu.matmul %301, %279, %cst_331 {dimension_numbers = #tpu.dot_dimension_numbers<[1], [0], [0], [1], [0, 0, 1, 1], [], []>} : vector<16x8xf32>, vector<8x128xf32>, vector<16x128xf32> -> vector<16x128xf32>
    %c3_332 = arith.constant 3 : index
    %c0_333 = arith.constant 0 : index
    %c0_334 = arith.constant 0 : index
    %303 = vector.load %arg24[%c3_332, %c0_333, %c0_334] : memref<4x128x16xf32, #tpu.memory_space<vmem>>, vector<1x128x16xf32>
    %304 = vector.shape_cast %303 : vector<1x128x16xf32> to vector<128x16xf32>
    %cst_335 = arith.constant dense<0.000000e+00> : vector<16x16xf32>
    %305 = tpu.matmul %302, %304, %cst_335 {dimension_numbers = #tpu.dot_dimension_numbers<[1], [0], [0], [1], [0, 0, 1, 1], [], []>} : vector<16x128xf32>, vector<128x16xf32>, vector<16x16xf32> -> vector<16x16xf32>
    %306 = arith.addf %299, %305 : vector<16x16xf32>
    %c0_336 = arith.constant 0 : index
    %c0_337 = arith.constant 0 : index
    %307 = vector.load %arg25[%c0_336, %c0_337] : memref<1x16xf32, #tpu.memory_space<vmem>>, vector<1x16xf32>
    %308 = vector.broadcast %307 : vector<1x16xf32> to vector<16x16xf32>
    %309 = arith.addf %306, %308 : vector<16x16xf32>
    %c0_338 = arith.constant 0 : index
    %c0_339 = arith.constant 0 : index
    %c0_340 = arith.constant 0 : index
    %310 = vector.load %arg26[%c0_338, %c0_339, %c0_340] : memref<1x16x16xf32, #tpu.memory_space<vmem>>, vector<1x16x16xf32>
    %311 = vector.shape_cast %310 : vector<1x16x16xf32> to vector<16x16xf32>
    %312 = vector.shape_cast %309 : vector<16x16xf32> to vector<1x16x16xf32>
    tpu.vector_store %arg26[%c0_338, %c0_339, %c0_340], %312 {strides = array<i32>} : memref<1x16x16xf32, #tpu.memory_space<vmem>>, vector<1x16x16xf32>,
    return
  }
  func.func @transform_0(%arg0: i32) -> (i32, i32, i32) {
    %c0_i32 = arith.constant 0 : i32
    %c0_i32_0 = arith.constant 0 : i32
    %c0_i32_1 = arith.constant 0 : i32
    return %arg0, %c0_i32, %c0_i32_0 : i32, i32, i32
  }
  func.func @transform_1(%arg0: i32) -> (i32, i32, i32) {
    %c0_i32 = arith.constant 0 : i32
    %c0_i32_0 = arith.constant 0 : i32
    %c0_i32_1 = arith.constant 0 : i32
    return %arg0, %c0_i32, %c0_i32_0 : i32, i32, i32
  }
  func.func @transform_2(%arg0: i32) -> (i32, i32, i32) {
    %c0_i32 = arith.constant 0 : i32
    %c0_i32_0 = arith.constant 0 : i32
    %c0_i32_1 = arith.constant 0 : i32
    %c0_i32_2 = arith.constant 0 : i32
    return %c0_i32, %c0_i32_0, %c0_i32_1 : i32, i32, i32
  }
  func.func @transform_3(%arg0: i32) -> (i32, i32, i32) {
    %c0_i32 = arith.constant 0 : i32
    %c0_i32_0 = arith.constant 0 : i32
    %c0_i32_1 = arith.constant 0 : i32
    %c0_i32_2 = arith.constant 0 : i32
    return %c0_i32, %c0_i32_0, %c0_i32_1 : i32, i32, i32
  }
  func.func @transform_4(%arg0: i32) -> (i32, i32) {
    %c0_i32 = arith.constant 0 : i32
    %c0_i32_0 = arith.constant 0 : i32
    %c0_i32_1 = arith.constant 0 : i32
    return %c0_i32, %c0_i32_0 : i32, i32
  }
  func.func @transform_5(%arg0: i32) -> (i32, i32, i32) {
    %c0_i32 = arith.constant 0 : i32
    %c0_i32_0 = arith.constant 0 : i32
    %c0_i32_1 = arith.constant 0 : i32
    %c0_i32_2 = arith.constant 0 : i32
    return %c0_i32, %c0_i32_0, %c0_i32_1 : i32, i32, i32
  }
  func.func @transform_6(%arg0: i32) -> (i32, i32, i32) {
    %c0_i32 = arith.constant 0 : i32
    %c0_i32_0 = arith.constant 0 : i32
    %c0_i32_1 = arith.constant 0 : i32
    %c0_i32_2 = arith.constant 0 : i32
    return %c0_i32, %c0_i32_0, %c0_i32_1 : i32, i32, i32
  }
  func.func @transform_7(%arg0: i32) -> (i32, i32) {
    %c0_i32 = arith.constant 0 : i32
    %c0_i32_0 = arith.constant 0 : i32
    %c0_i32_1 = arith.constant 0 : i32
    return %c0_i32, %c0_i32_0 : i32, i32
  }
  func.func @transform_8(%arg0: i32) -> (i32, i32, i32) {
    %c0_i32 = arith.constant 0 : i32
    %c0_i32_0 = arith.constant 0 : i32
    %c0_i32_1 = arith.constant 0 : i32
    %c0_i32_2 = arith.constant 0 : i32
    return %c0_i32, %c0_i32_0, %c0_i32_1 : i32, i32, i32
  }
  func.func @transform_9(%arg0: i32) -> (i32, i32, i32) {
    %c0_i32 = arith.constant 0 : i32
    %c0_i32_0 = arith.constant 0 : i32
    %c0_i32_1 = arith.constant 0 : i32
    %c0_i32_2 = arith.constant 0 : i32
    return %c0_i32, %c0_i32_0, %c0_i32_1 : i32, i32, i32
  }
  func.func @transform_10(%arg0: i32) -> (i32, i32) {
    %c0_i32 = arith.constant 0 : i32
    %c0_i32_0 = arith.constant 0 : i32
    %c0_i32_1 = arith.constant 0 : i32
    return %c0_i32, %c0_i32_0 : i32, i32
  }
  func.func @transform_11(%arg0: i32) -> (i32, i32, i32, i32) {
    %c0_i32 = arith.constant 0 : i32
    %c0_i32_0 = arith.constant 0 : i32
    %c0_i32_1 = arith.constant 0 : i32
    %c0_i32_2 = arith.constant 0 : i32
    %c0_i32_3 = arith.constant 0 : i32
    return %c0_i32, %c0_i32_0, %c0_i32_1, %c0_i32_2 : i32, i32, i32, i32
  }
  func.func @transform_12(%arg0: i32) -> (i32, i32, i32) {
    %c0_i32 = arith.constant 0 : i32
    %c0_i32_0 = arith.constant 0 : i32
    %c0_i32_1 = arith.constant 0 : i32
    %c0_i32_2 = arith.constant 0 : i32
    return %c0_i32, %c0_i32_0, %c0_i32_1 : i32, i32, i32
  }
  func.func @transform_13(%arg0: i32) -> (i32, i32) {
    %c0_i32 = arith.constant 0 : i32
    %c0_i32_0 = arith.constant 0 : i32
    %c0_i32_1 = arith.constant 0 : i32
    return %c0_i32, %c0_i32_0 : i32, i32
  }
  func.func @transform_14(%arg0: i32) -> (i32, i32) {
    %c0_i32 = arith.constant 0 : i32
    %c0_i32_0 = arith.constant 0 : i32
    %c0_i32_1 = arith.constant 0 : i32
    return %c0_i32, %c0_i32_0 : i32, i32
  }
  func.func @transform_15(%arg0: i32) -> (i32, i32, i32) {
    %c0_i32 = arith.constant 0 : i32
    %c0_i32_0 = arith.constant 0 : i32
    %c0_i32_1 = arith.constant 0 : i32
    %c0_i32_2 = arith.constant 0 : i32
    return %c0_i32, %c0_i32_0, %c0_i32_1 : i32, i32, i32
  }
  func.func @transform_16(%arg0: i32) -> (i32, i32) {
    %c0_i32 = arith.constant 0 : i32
    %c0_i32_0 = arith.constant 0 : i32
    %c0_i32_1 = arith.constant 0 : i32
    return %c0_i32, %c0_i32_0 : i32, i32
  }
  func.func @transform_17(%arg0: i32) -> (i32, i32, i32, i32) {
    %c0_i32 = arith.constant 0 : i32
    %c0_i32_0 = arith.constant 0 : i32
    %c0_i32_1 = arith.constant 0 : i32
    %c0_i32_2 = arith.constant 0 : i32
    %c0_i32_3 = arith.constant 0 : i32
    return %c0_i32, %c0_i32_0, %c0_i32_1, %c0_i32_2 : i32, i32, i32, i32
  }
  func.func @transform_18(%arg0: i32) -> (i32, i32, i32) {
    %c0_i32 = arith.constant 0 : i32
    %c0_i32_0 = arith.constant 0 : i32
    %c0_i32_1 = arith.constant 0 : i32
    %c0_i32_2 = arith.constant 0 : i32
    return %c0_i32, %c0_i32_0, %c0_i32_1 : i32, i32, i32
  }
  func.func @transform_19(%arg0: i32) -> (i32, i32, i32) {
    %c0_i32 = arith.constant 0 : i32
    %c0_i32_0 = arith.constant 0 : i32
    %c0_i32_1 = arith.constant 0 : i32
    %c0_i32_2 = arith.constant 0 : i32
    return %c0_i32, %c0_i32_0, %c0_i32_1 : i32, i32, i32
  }
  func.func @transform_20(%arg0: i32) -> (i32, i32, i32) {
    %c0_i32 = arith.constant 0 : i32
    %c0_i32_0 = arith.constant 0 : i32
    %c0_i32_1 = arith.constant 0 : i32
    %c0_i32_2 = arith.constant 0 : i32
    return %c0_i32, %c0_i32_0, %c0_i32_1 : i32, i32, i32
  }
  func.func @transform_21(%arg0: i32) -> (i32, i32) {
    %c0_i32 = arith.constant 0 : i32
    %c0_i32_0 = arith.constant 0 : i32
    %c0_i32_1 = arith.constant 0 : i32
    return %c0_i32, %c0_i32_0 : i32, i32
  }
  func.func @transform_22(%arg0: i32) -> (i32, i32, i32) {
    %c0_i32 = arith.constant 0 : i32
    %c0_i32_0 = arith.constant 0 : i32
    %c0_i32_1 = arith.constant 0 : i32
    %c0_i32_2 = arith.constant 0 : i32
    return %c0_i32, %c0_i32_0, %c0_i32_1 : i32, i32, i32
  }
  func.func @transform_23(%arg0: i32) -> (i32, i32, i32) {
    %c0_i32 = arith.constant 0 : i32
    %c0_i32_0 = arith.constant 0 : i32
    %c0_i32_1 = arith.constant 0 : i32
    %c0_i32_2 = arith.constant 0 : i32
    return %c0_i32, %c0_i32_0, %c0_i32_1 : i32, i32, i32
  }
  func.func @transform_24(%arg0: i32) -> (i32, i32) {
    %c0_i32 = arith.constant 0 : i32
    %c0_i32_0 = arith.constant 0 : i32
    %c0_i32_1 = arith.constant 0 : i32
    return %c0_i32, %c0_i32_0 : i32, i32
  }
  func.func @transform_25(%arg0: i32) -> (i32, i32, i32) {
    %c0_i32 = arith.constant 0 : i32
    %c0_i32_0 = arith.constant 0 : i32
    %c0_i32_1 = arith.constant 0 : i32
    return %arg0, %c0_i32, %c0_i32_0 : i32, i32, i32
  }
  func.func @transform_26(%arg0: i32) -> (i32, i32, i32) {
    %c0_i32 = arith.constant 0 : i32
    %c0_i32_0 = arith.constant 0 : i32
    %c0_i32_1 = arith.constant 0 : i32
    return %arg0, %c0_i32, %c0_i32_0 : i32, i32, i32
  }
  func.func @transform_27(%arg0: i32) -> (i32, i32, i32) {
    %c0_i32 = arith.constant 0 : i32
    %c0_i32_0 = arith.constant 0 : i32
    %c0_i32_1 = arith.constant 0 : i32
    return %arg0, %c0_i32, %c0_i32_0 : i32, i32, i32
  }
}

</mosaic_0001>

<llo_original>
// kernel: vae_forward.1
$region0: #{vae_forward.1}
  #allocation0 [shape = 'u32[]', space=smem, size = 0x4, offset = 0x4, fixed_abs, tag = 'smem constant byte address 0x4 - core index']
  #allocation1 [shape = 'u32[72,128]{1,0:T(1,128)}', space=vmem, size = 0x9000, scoped, tag = 'internal scratch']
  %s0 = inlined_call_operand.vmem [shape: f32[2,16,16], index: 0, kind: input, shape index: {}]
  %s1 = inlined_call_operand.vmem [shape: f32[2,4,32], index: 1, kind: input, shape index: {}]
  %s2 = inlined_call_operand.vmem [shape: f32[4,8,16], index: 2, kind: input, shape index: {}]
  %s3 = inlined_call_operand.vmem [shape: f32[4,16,128], index: 3, kind: input, shape index: {}]
  %s4 = inlined_call_operand.vmem [shape: f32[1,128], index: 4, kind: input, shape index: {}]
  %s5 = inlined_call_operand.vmem [shape: f32[4,4,8], index: 5, kind: input, shape index: {}]
  %s6 = inlined_call_operand.vmem [shape: f32[4,128,128], index: 6, kind: input, shape index: {}]
  %s7 = inlined_call_operand.vmem [shape: f32[1,128], index: 7, kind: input, shape index: {}]
  %s8 = inlined_call_operand.vmem [shape: f32[3,4,4], index: 8, kind: input, shape index: {}]
  %s9 = inlined_call_operand.vmem [shape: f32[3,128,128], index: 9, kind: input, shape index: {}]
  %s10 = inlined_call_operand.vmem [shape: f32[1,128], index: 10, kind: input, shape index: {}]
  %s11 = inlined_call_operand.vmem [shape: f32[2,3,128,64], index: 11, kind: input, shape index: {}]
  %s12 = inlined_call_operand.vmem [shape: f32[2,64,128], index: 12, kind: input, shape index: {}]
  %s13 = inlined_call_operand.vmem [shape: f32[128,64], index: 13, kind: input, shape index: {}]
  %s14 = inlined_call_operand.vmem [shape: f32[1,64], index: 14, kind: input, shape index: {}]
  %s15 = inlined_call_operand.vmem [shape: f32[3,32,128], index: 15, kind: input, shape index: {}]
  %s16 = inlined_call_operand.vmem [shape: f32[1,128], index: 16, kind: input, shape index: {}]
  %s17 = inlined_call_operand.vmem [shape: f32[2,3,128,64], index: 17, kind: input, shape index: {}]
  %s18 = inlined_call_operand.vmem [shape: f32[2,64,128], index: 18, kind: input, shape index: {}]
  %s19 = inlined_call_operand.vmem [shape: f32[4,8,4], index: 19, kind: input, shape index: {}]
  %s20 = inlined_call_operand.vmem [shape: f32[4,128,128], index: 20, kind: input, shape index: {}]
  %s21 = inlined_call_operand.vmem [shape: f32[1,128], index: 21, kind: input, shape index: {}]
  %s22 = inlined_call_operand.vmem [shape: f32[4,16,8], index: 22, kind: input, shape index: {}]
  %s23 = inlined_call_operand.vmem [shape: f32[4,128,16], index: 23, kind: input, shape index: {}]
  %s24 = inlined_call_operand.vmem [shape: f32[1,16], index: 24, kind: input, shape index: {}]
  %s25 = inlined_call_operand.hbm [shape: f32[2,16,16], index: 25, kind: output, shape index: {0}]
  %s26 = inlined_call_operand.vmem [shape: f32[2,4,32], index: 26, kind: output, shape index: {1}]
  %s27 = inlined_call_operand.vmem [shape: f32[2,4,32], index: 27, kind: output, shape index: {2}]
  %28 = xla_tuple %s25, %s26, %s27
  %s29 = sld [smem:[#allocation0]]
  $region149: #{vae_forward.1} parent=0
    _
  %s31 = ssub.s32 1, %s29
  %s32 = scalar_select 0, %s31, %s29
  $region1: #{vae_forward.1} parent=0
    #allocation2 [shape = 'u8[16384]{0}', space=vmem, size = 0x4000, scoped, tag = 'output window, operand 0']
    #allocation3 [shape = 's32[2]{0}', space=sflag, size = 0x8, scoped, tag = 'scoped memory for vae_forward.1']
    %33 = vsyncpa [#allocation3], 0
    %s34 = scalar_lea.sflag [#allocation3], 1
    %35 = vsyncpa %s34, 0
    loop: start=0, step=1, limit=4
    $region2: #{vae_forward.1} parent=1 // loop_pre_header
      _
    $region3: #{vae_forward.1} parent=1 // loop_header
      %s37 = sphi 0, %s41
      %p38 = scmp.ge.s32.totalorder %s37, 4
      %s47 = sphi 0, %s49
      %s50 = sphi 0, %s47
      %s51 = sphi 0, %s50
      %s67 = sphi 0, %s51
      %s73 = sphi 0, %s75
      %s76 = sphi 0, %s73
      %s77 = sphi 0, %s76
      %s93 = sphi 0, %s77
      %s97 = sphi 0, %s97
      %s99 = sphi 0, %s97
      %s100 = sphi 0, %s99
      %s114 = sphi 0, %s100
      %s118 = sphi 0, %s118
      %s120 = sphi 0, %s118
      %s121 = sphi 0, %s120
      %s135 = sphi 0, %s121
      %s139 = sphi 0, %s139
      %s141 = sphi 0, %s139
      %s142 = sphi 0, %s141
      %s156 = sphi 0, %s142
      %s160 = sphi 0, %s160
      %s162 = sphi 0, %s160
      %s163 = sphi 0, %s162
      %s177 = sphi 0, %s163
      %s181 = sphi 0, %s181
      %s183 = sphi 0, %s181
      %s184 = sphi 0, %s183
      %s198 = sphi 0, %s184
      %s202 = sphi 0, %s202
      %s204 = sphi 0, %s202
      %s205 = sphi 0, %s204
      %s219 = sphi 0, %s205
      %s223 = sphi 0, %s223
      %s225 = sphi 0, %s223
      %s226 = sphi 0, %s225
      %s240 = sphi 0, %s226
      %s244 = sphi 0, %s244
      %s246 = sphi 0, %s244
      %s247 = sphi 0, %s246
      %s261 = sphi 0, %s247
      %s265 = sphi 0, %s265
      %s267 = sphi 0, %s265
      %s268 = sphi 0, %s267
      %s282 = sphi 0, %s268
      %s286 = sphi 0, %s286
      %s288 = sphi 0, %s286
      %s289 = sphi 0, %s288
      %s303 = sphi 0, %s289
      %s307 = sphi 0, %s307
      %s309 = sphi 0, %s307
      %s310 = sphi 0, %s309
      %s324 = sphi 0, %s310
      %s328 = sphi 0, %s328
      %s330 = sphi 0, %s328
      %s331 = sphi 0, %s330
      %s345 = sphi 0, %s331
      %s349 = sphi 0, %s349
      %s351 = sphi 0, %s349
      %s352 = sphi 0, %s351
      %s366 = sphi 0, %s352
      %s370 = sphi 0, %s370
      %s372 = sphi 0, %s370
      %s373 = sphi 0, %s372
      %s387 = sphi 0, %s373
      %s391 = sphi 0, %s391
      %s393 = sphi 0, %s391
      %s394 = sphi 0, %s393
      %s408 = sphi 0, %s394
      %s412 = sphi 0, %s412
      %s414 = sphi 0, %s412
      %s415 = sphi 0, %s414
      %s429 = sphi 0, %s415
      %s433 = sphi 0, %s433
      %s435 = sphi 0, %s433
      %s436 = sphi 0, %s435
      %s450 = sphi 0, %s436
      %s454 = sphi 0, %s454
      %s456 = sphi 0, %s454
      %s457 = sphi 0, %s456
      %s471 = sphi 0, %s457
      %s475 = sphi 0, %s475
      %s477 = sphi 0, %s475
      %s478 = sphi 0, %s477
      %s492 = sphi 0, %s478
      %s496 = sphi 0, %s496
      %s498 = sphi 0, %s496
      %s499 = sphi 0, %s498
      %s513 = sphi 0, %s499
      %s517 = sphi 0, %s517
      %s519 = sphi 0, %s517
      %s520 = sphi 0, %s519
      %s534 = sphi 0, %s520
      %s538 = sphi 0, %s538
      %s540 = sphi 0, %s538
      %s541 = sphi 0, %s540
      %s555 = sphi 0, %s541
      %s559 = sphi 0, %s559
      %s561 = sphi 0, %s559
      %s562 = sphi 0, %s561
      %s576 = sphi 0, %s562
      %s582 = sphi 0, %s584
      %s585 = sphi 0, %s582
      %s586 = sphi 0, %s585
      %s602 = sphi 0, %s586
      %s608 = sphi 0, %s610
      %s611 = sphi 0, %s608
      %s612 = sphi 0, %s611
      %s628 = sphi 0, %s612
      %s634 = sphi 0, %s636
      %s637 = sphi 0, %s634
      %s638 = sphi 0, %s637
      %s654 = sphi 0, %s638
    $region4: #{vae_forward.1} parent=1 // loop_header_branch
      %40 = sbr.rel (%p38) target = $region8
    $region5: #{vae_forward.1} parent=1 // loop_body
      %s42 = ssub.s32 %s37, 1
      %s43 = ssub.s32 %s37, 2
      %s44 = sadd.s32 %s37, 1
      %s45 = ssub.s32 %s37, %s44
      %p46 = scmp.eq.s32.totalorder %s45, 0
      %s48 = sadd.s32 %s47, 1
      %s49 = scalar_select %p46, %s47, %s48
      %p52 = pneg %p46
      %p53 = scmp.eq.s32.totalorder %s37, 1
      %p54 = por %p52, %p53
      %p55 = scmp.ne.s32.totalorder %s47, %s50
      %p56 = scmp.eq.s32.totalorder %s37, 0
      %p57 = por %p55, %p56
      %p58 = scmp.ne.s32.totalorder %s47, %s50
      %p59 = scmp.eq.s32.totalorder %s42, 1
      %p60 = por %p58, %p59
      %p61 = scmp.ne.s32.totalorder %s50, %s51
      %p62 = scmp.eq.s32.totalorder %s42, 0
      %p63 = por %p61, %p62
      %p64 = scmp.ne.s32.totalorder %s50, %s51
      %p65 = scmp.eq.s32.totalorder %s43, 1
      %p66 = por %p64, %p65
      %p68 = scmp.ne.s32.totalorder %s51, %s67
      %p69 = scmp.eq.s32.totalorder %s43, 0
      %p70 = por %p68, %p69
      %s71 = ssub.s32 %s37, %s44
      %p72 = scmp.eq.s32.totalorder %s71, 0
      %s74 = sadd.s32 %s73, 1
      %s75 = scalar_select %p72, %s73, %s74
      %p78 = pneg %p72
      %p79 = scmp.eq.s32.totalorder %s37, 1
      %p80 = por %p78, %p79
      %p81 = scmp.ne.s32.totalorder %s73, %s76
      %p82 = scmp.eq.s32.totalorder %s37, 0
      %p83 = por %p81, %p82
      %p84 = scmp.ne.s32.totalorder %s73, %s76
      %p85 = scmp.eq.s32.totalorder %s42, 1
      %p86 = por %p84, %p85
      %p87 = scmp.ne.s32.totalorder %s76, %s77
      %p88 = scmp.eq.s32.totalorder %s42, 0
      %p89 = por %p87, %p88
      %p90 = scmp.ne.s32.totalorder %s76, %s77
      %p91 = scmp.eq.s32.totalorder %s43, 1
      %p92 = por %p90, %p91
      %p94 = scmp.ne.s32.totalorder %s77, %s93
      %p95 = scmp.eq.s32.totalorder %s43, 0
      %p96 = por %p94, %p95
      %s98 = sadd.s32 %s97, 1
      %p101 = scmp.eq.s32.totalorder %s37, 1
      %p102 = scmp.ne.s32.totalorder %s97, %s99
      %p103 = scmp.eq.s32.totalorder %s37, 0
      %p104 = por %p102, %p103
      %p105 = scmp.ne.s32.totalorder %s97, %s99
      %p106 = scmp.eq.s32.totalorder %s42, 1
      %p107 = por %p105, %p106
      %p108 = scmp.ne.s32.totalorder %s99, %s100
      %p109 = scmp.eq.s32.totalorder %s42, 0
      %p110 = por %p108, %p109
      %p111 = scmp.ne.s32.totalorder %s99, %s100
      %p112 = scmp.eq.s32.totalorder %s43, 1
      %p113 = por %p111, %p112
      %p115 = scmp.ne.s32.totalorder %s100, %s114
      %p116 = scmp.eq.s32.totalorder %s43, 0
      %p117 = por %p115, %p116
      %s119 = sadd.s32 %s118, 1
      %p122 = scmp.eq.s32.totalorder %s37, 1
      %p123 = scmp.ne.s32.totalorder %s118, %s120
      %p124 = scmp.eq.s32.totalorder %s37, 0
      %p125 = por %p123, %p124
      %p126 = scmp.ne.s32.totalorder %s118, %s120
      %p127 = scmp.eq.s32.totalorder %s42, 1
      %p128 = por %p126, %p127
      %p129 = scmp.ne.s32.totalorder %s120, %s121
      %p130 = scmp.eq.s32.totalorder %s42, 0
      %p131 = por %p129, %p130
      %p132 = scmp.ne.s32.totalorder %s120, %s121
      %p133 = scmp.eq.s32.totalorder %s43, 1
      %p134 = por %p132, %p133
      %p136 = scmp.ne.s32.totalorder %s121, %s135
      %p137 = scmp.eq.s32.totalorder %s43, 0
      %p138 = por %p136, %p137
      %s140 = sadd.s32 %s139, 1
      %p143 = scmp.eq.s32.totalorder %s37, 1
      %p144 = scmp.ne.s32.totalorder %s139, %s141
      %p145 = scmp.eq.s32.totalorder %s37, 0
      %p146 = por %p144, %p145
      %p147 = scmp.ne.s32.totalorder %s139, %s141
      %p148 = scmp.eq.s32.totalorder %s42, 1
      %p149 = por %p147, %p148
      %p150 = scmp.ne.s32.totalorder %s141, %s142
      %p151 = scmp.eq.s32.totalorder %s42, 0
      %p152 = por %p150, %p151
      %p153 = scmp.ne.s32.totalorder %s141, %s142
      %p154 = scmp.eq.s32.totalorder %s43, 1
      %p155 = por %p153, %p154
      %p157 = scmp.ne.s32.totalorder %s142, %s156
      %p158 = scmp.eq.s32.totalorder %s43, 0
      %p159 = por %p157, %p158
      %s161 = sadd.s32 %s160, 1
      %p164 = scmp.eq.s32.totalorder %s37, 1
      %p165 = scmp.ne.s32.totalorder %s160, %s162
      %p166 = scmp.eq.s32.totalorder %s37, 0
      %p167 = por %p165, %p166
      %p168 = scmp.ne.s32.totalorder %s160, %s162
      %p169 = scmp.eq.s32.totalorder %s42, 1
      %p170 = por %p168, %p169
      %p171 = scmp.ne.s32.totalorder %s162, %s163
      %p172 = scmp.eq.s32.totalorder %s42, 0
      %p173 = por %p171, %p172
      %p174 = scmp.ne.s32.totalorder %s162, %s163
      %p175 = scmp.eq.s32.totalorder %s43, 1
      %p176 = por %p174, %p175
      %p178 = scmp.ne.s32.totalorder %s163, %s177
      %p179 = scmp.eq.s32.totalorder %s43, 0
      %p180 = por %p178, %p179
      %s182 = sadd.s32 %s181, 1
      %p185 = scmp.eq.s32.totalorder %s37, 1
      %p186 = scmp.ne.s32.totalorder %s181, %s183
      %p187 = scmp.eq.s32.totalorder %s37, 0
      %p188 = por %p186, %p187
      %p189 = scmp.ne.s32.totalorder %s181, %s183
      %p190 = scmp.eq.s32.totalorder %s42, 1
      %p191 = por %p189, %p190
      %p192 = scmp.ne.s32.totalorder %s183, %s184
      %p193 = scmp.eq.s32.totalorder %s42, 0
      %p194 = por %p192, %p193
      %p195 = scmp.ne.s32.totalorder %s183, %s184
      %p196 = scmp.eq.s32.totalorder %s43, 1
      %p197 = por %p195, %p196
      %p199 = scmp.ne.s32.totalorder %s184, %s198
      %p200 = scmp.eq.s32.totalorder %s43, 0
      %p201 = por %p199, %p200
      %s203 = sadd.s32 %s202, 1
      %p206 = scmp.eq.s32.totalorder %s37, 1
      %p207 = scmp.ne.s32.totalorder %s202, %s204
      %p208 = scmp.eq.s32.totalorder %s37, 0
      %p209 = por %p207, %p208
      %p210 = scmp.ne.s32.totalorder %s202, %s204
      %p211 = scmp.eq.s32.totalorder %s42, 1
      %p212 = por %p210, %p211
      %p213 = scmp.ne.s32.totalorder %s204, %s205
      %p214 = scmp.eq.s32.totalorder %s42, 0
      %p215 = por %p213, %p214
      %p216 = scmp.ne.s32.totalorder %s204, %s205
      %p217 = scmp.eq.s32.totalorder %s43, 1
      %p218 = por %p216, %p217
      %p220 = scmp.ne.s32.totalorder %s205, %s219
      %p221 = scmp.eq.s32.totalorder %s43, 0
      %p222 = por %p220, %p221
      %s224 = sadd.s32 %s223, 1
      %p227 = scmp.eq.s32.totalorder %s37, 1
      %p228 = scmp.ne.s32.totalorder %s223, %s225
      %p229 = scmp.eq.s32.totalorder %s37, 0
      %p230 = por %p228, %p229
      %p231 = scmp.ne.s32.totalorder %s223, %s225
      %p232 = scmp.eq.s32.totalorder %s42, 1
      %p233 = por %p231, %p232
      %p234 = scmp.ne.s32.totalorder %s225, %s226
      %p235 = scmp.eq.s32.totalorder %s42, 0
      %p236 = por %p234, %p235
      %p237 = scmp.ne.s32.totalorder %s225, %s226
      %p238 = scmp.eq.s32.totalorder %s43, 1
      %p239 = por %p237, %p238
      %p241 = scmp.ne.s32.totalorder %s226, %s240
      %p242 = scmp.eq.s32.totalorder %s43, 0
      %p243 = por %p241, %p242
      %s245 = sadd.s32 %s244, 1
      %p248 = scmp.eq.s32.totalorder %s37, 1
      %p249 = scmp.ne.s32.totalorder %s244, %s246
      %p250 = scmp.eq.s32.totalorder %s37, 0
      %p251 = por %p249, %p250
      %p252 = scmp.ne.s32.totalorder %s244, %s246
      %p253 = scmp.eq.s32.totalorder %s42, 1
      %p254 = por %p252, %p253
      %p255 = scmp.ne.s32.totalorder %s246, %s247
      %p256 = scmp.eq.s32.totalorder %s42, 0
      %p257 = por %p255, %p256
      %p258 = scmp.ne.s32.totalorder %s246, %s247
      %p259 = scmp.eq.s32.totalorder %s43, 1
      %p260 = por %p258, %p259
      %p262 = scmp.ne.s32.totalorder %s247, %s261
      %p263 = scmp.eq.s32.totalorder %s43, 0
      %p264 = por %p262, %p263
      %s266 = sadd.s32 %s265, 1
      %p269 = scmp.eq.s32.totalorder %s37, 1
      %p270 = scmp.ne.s32.totalorder %s265, %s267
      %p271 = scmp.eq.s32.totalorder %s37, 0
      %p272 = por %p270, %p271
      %p273 = scmp.ne.s32.totalorder %s265, %s267
      %p274 = scmp.eq.s32.totalorder %s42, 1
      %p275 = por %p273, %p274
      %p276 = scmp.ne.s32.totalorder %s267, %s268
      %p277 = scmp.eq.s32.totalorder %s42, 0
      %p278 = por %p276, %p277
      %p279 = scmp.ne.s32.totalorder %s267, %s268
      %p280 = scmp.eq.s32.totalorder %s43, 1
      %p281 = por %p279, %p280
      %p283 = scmp.ne.s32.totalorder %s268, %s282
      %p284 = scmp.eq.s32.totalorder %s43, 0
      %p285 = por %p283, %p284
      %s287 = sadd.s32 %s286, 1
      %p290 = scmp.eq.s32.totalorder %s37, 1
      %p291 = scmp.ne.s32.totalorder %s286, %s288
      %p292 = scmp.eq.s32.totalorder %s37, 0
      %p293 = por %p291, %p292
      %p294 = scmp.ne.s32.totalorder %s286, %s288
      %p295 = scmp.eq.s32.totalorder %s42, 1
      %p296 = por %p294, %p295
      %p297 = scmp.ne.s32.totalorder %s288, %s289
      %p298 = scmp.eq.s32.totalorder %s42, 0
      %p299 = por %p297, %p298
      %p300 = scmp.ne.s32.totalorder %s288, %s289
      %p301 = scmp.eq.s32.totalorder %s43, 1
      %p302 = por %p300, %p301
      %p304 = scmp.ne.s32.totalorder %s289, %s303
      %p305 = scmp.eq.s32.totalorder %s43, 0
      %p306 = por %p304, %p305
      %s308 = sadd.s32 %s307, 1
      %p311 = scmp.eq.s32.totalorder %s37, 1
      %p312 = scmp.ne.s32.totalorder %s307, %s309
      %p313 = scmp.eq.s32.totalorder %s37, 0
      %p314 = por %p312, %p313
      %p315 = scmp.ne.s32.totalorder %s307, %s309
      %p316 = scmp.eq.s32.totalorder %s42, 1
      %p317 = por %p315, %p316
      %p318 = scmp.ne.s32.totalorder %s309, %s310
      %p319 = scmp.eq.s32.totalorder %s42, 0
      %p320 = por %p318, %p319
      %p321 = scmp.ne.s32.totalorder %s309, %s310
      %p322 = scmp.eq.s32.totalorder %s43, 1
      %p323 = por %p321, %p322
      %p325 = scmp.ne.s32.totalorder %s310, %s324
      %p326 = scmp.eq.s32.totalorder %s43, 0
      %p327 = por %p325, %p326
      %s329 = sadd.s32 %s328, 1
      %p332 = scmp.eq.s32.totalorder %s37, 1
      %p333 = scmp.ne.s32.totalorder %s328, %s330
      %p334 = scmp.eq.s32.totalorder %s37, 0
      %p335 = por %p333, %p334
      %p336 = scmp.ne.s32.totalorder %s328, %s330
      %p337 = scmp.eq.s32.totalorder %s42, 1
      %p338 = por %p336, %p337
      %p339 = scmp.ne.s32.totalorder %s330, %s331
      %p340 = scmp.eq.s32.totalorder %s42, 0
      %p341 = por %p339, %p340
      %p342 = scmp.ne.s32.totalorder %s330, %s331
      %p343 = scmp.eq.s32.totalorder %s43, 1
      %p344 = por %p342, %p343
      %p346 = scmp.ne.s32.totalorder %s331, %s345
      %p347 = scmp.eq.s32.totalorder %s43, 0
      %p348 = por %p346, %p347
      %s350 = sadd.s32 %s349, 1
      %p353 = scmp.eq.s32.totalorder %s37, 1
      %p354 = scmp.ne.s32.totalorder %s349, %s351
      %p355 = scmp.eq.s32.totalorder %s37, 0
      %p356 = por %p354, %p355
      %p357 = scmp.ne.s32.totalorder %s349, %s351
      %p358 = scmp.eq.s32.totalorder %s42, 1
      %p359 = por %p357, %p358
      %p360 = scmp.ne.s32.totalorder %s351, %s352
      %p361 = scmp.eq.s32.totalorder %s42, 0
      %p362 = por %p360, %p361
      %p363 = scmp.ne.s32.totalorder %s351, %s352
      %p364 = scmp.eq.s32.totalorder %s43, 1
      %p365 = por %p363, %p364
      %p367 = scmp.ne.s32.totalorder %s352, %s366
      %p368 = scmp.eq.s32.totalorder %s43, 0
      %p369 = por %p367, %p368
      %s371 = sadd.s32 %s370, 1
      %p374 = scmp.eq.s32.totalorder %s37, 1
      %p375 = scmp.ne.s32.totalorder %s370, %s372
      %p376 = scmp.eq.s32.totalorder %s37, 0
      %p377 = por %p375, %p376
      %p378 = scmp.ne.s32.totalorder %s370, %s372
      %p379 = scmp.eq.s32.totalorder %s42, 1
      %p380 = por %p378, %p379
      %p381 = scmp.ne.s32.totalorder %s372, %s373
      %p382 = scmp.eq.s32.totalorder %s42, 0
      %p383 = por %p381, %p382
      %p384 = scmp.ne.s32.totalorder %s372, %s373
      %p385 = scmp.eq.s32.totalorder %s43, 1
      %p386 = por %p384, %p385
      %p388 = scmp.ne.s32.totalorder %s373, %s387
      %p389 = scmp.eq.s32.totalorder %s43, 0
      %p390 = por %p388, %p389
      %s392 = sadd.s32 %s391, 1
      %p395 = scmp.eq.s32.totalorder %s37, 1
      %p396 = scmp.ne.s32.totalorder %s391, %s393
      %p397 = scmp.eq.s32.totalorder %s37, 0
      %p398 = por %p396, %p397
      %p399 = scmp.ne.s32.totalorder %s391, %s393
      %p400 = scmp.eq.s32.totalorder %s42, 1
      %p401 = por %p399, %p400
      %p402 = scmp.ne.s32.totalorder %s393, %s394
      %p403 = scmp.eq.s32.totalorder %s42, 0
      %p404 = por %p402, %p403
      %p405 = scmp.ne.s32.totalorder %s393, %s394
      %p406 = scmp.eq.s32.totalorder %s43, 1
      %p407 = por %p405, %p406
      %p409 = scmp.ne.s32.totalorder %s394, %s408
      %p410 = scmp.eq.s32.totalorder %s43, 0
      %p411 = por %p409, %p410
      %s413 = sadd.s32 %s412, 1
      %p416 = scmp.eq.s32.totalorder %s37, 1
      %p417 = scmp.ne.s32.totalorder %s412, %s414
      %p418 = scmp.eq.s32.totalorder %s37, 0
      %p419 = por %p417, %p418
      %p420 = scmp.ne.s32.totalorder %s412, %s414
      %p421 = scmp.eq.s32.totalorder %s42, 1
      %p422 = por %p420, %p421
      %p423 = scmp.ne.s32.totalorder %s414, %s415
      %p424 = scmp.eq.s32.totalorder %s42, 0
      %p425 = por %p423, %p424
      %p426 = scmp.ne.s32.totalorder %s414, %s415
      %p427 = scmp.eq.s32.totalorder %s43, 1
      %p428 = por %p426, %p427
      %p430 = scmp.ne.s32.totalorder %s415, %s429
      %p431 = scmp.eq.s32.totalorder %s43, 0
      %p432 = por %p430, %p431
      %s434 = sadd.s32 %s433, 1
      %p437 = scmp.eq.s32.totalorder %s37, 1
      %p438 = scmp.ne.s32.totalorder %s433, %s435
      %p439 = scmp.eq.s32.totalorder %s37, 0
      %p440 = por %p438, %p439
      %p441 = scmp.ne.s32.totalorder %s433, %s435
      %p442 = scmp.eq.s32.totalorder %s42, 1
      %p443 = por %p441, %p442
      %p444 = scmp.ne.s32.totalorder %s435, %s436
      %p445 = scmp.eq.s32.totalorder %s42, 0
      %p446 = por %p444, %p445
      %p447 = scmp.ne.s32.totalorder %s435, %s436
      %p448 = scmp.eq.s32.totalorder %s43, 1
      %p449 = por %p447, %p448
      %p451 = scmp.ne.s32.totalorder %s436, %s450
      %p452 = scmp.eq.s32.totalorder %s43, 0
      %p453 = por %p451, %p452
      %s455 = sadd.s32 %s454, 1
      %p458 = scmp.eq.s32.totalorder %s37, 1
      %p459 = scmp.ne.s32.totalorder %s454, %s456
      %p460 = scmp.eq.s32.totalorder %s37, 0
      %p461 = por %p459, %p460
      %p462 = scmp.ne.s32.totalorder %s454, %s456
      %p463 = scmp.eq.s32.totalorder %s42, 1
      %p464 = por %p462, %p463
      %p465 = scmp.ne.s32.totalorder %s456, %s457
      %p466 = scmp.eq.s32.totalorder %s42, 0
      %p467 = por %p465, %p466
      %p468 = scmp.ne.s32.totalorder %s456, %s457
      %p469 = scmp.eq.s32.totalorder %s43, 1
      %p470 = por %p468, %p469
      %p472 = scmp.ne.s32.totalorder %s457, %s471
      %p473 = scmp.eq.s32.totalorder %s43, 0
      %p474 = por %p472, %p473
      %s476 = sadd.s32 %s475, 1
      %p479 = scmp.eq.s32.totalorder %s37, 1
      %p480 = scmp.ne.s32.totalorder %s475, %s477
      %p481 = scmp.eq.s32.totalorder %s37, 0
      %p482 = por %p480, %p481
      %p483 = scmp.ne.s32.totalorder %s475, %s477
      %p484 = scmp.eq.s32.totalorder %s42, 1
      %p485 = por %p483, %p484
      %p486 = scmp.ne.s32.totalorder %s477, %s478
      %p487 = scmp.eq.s32.totalorder %s42, 0
      %p488 = por %p486, %p487
      %p489 = scmp.ne.s32.totalorder %s477, %s478
      %p490 = scmp.eq.s32.totalorder %s43, 1
      %p491 = por %p489, %p490
      %p493 = scmp.ne.s32.totalorder %s478, %s492
      %p494 = scmp.eq.s32.totalorder %s43, 0
      %p495 = por %p493, %p494
      %s497 = sadd.s32 %s496, 1
      %p500 = scmp.eq.s32.totalorder %s37, 1
      %p501 = scmp.ne.s32.totalorder %s496, %s498
      %p502 = scmp.eq.s32.totalorder %s37, 0
      %p503 = por %p501, %p502
      %p504 = scmp.ne.s32.totalorder %s496, %s498
      %p505 = scmp.eq.s32.totalorder %s42, 1
      %p506 = por %p504, %p505
      %p507 = scmp.ne.s32.totalorder %s498, %s499
      %p508 = scmp.eq.s32.totalorder %s42, 0
      %p509 = por %p507, %p508
      %p510 = scmp.ne.s32.totalorder %s498, %s499
      %p511 = scmp.eq.s32.totalorder %s43, 1
      %p512 = por %p510, %p511
      %p514 = scmp.ne.s32.totalorder %s499, %s513
      %p515 = scmp.eq.s32.totalorder %s43, 0
      %p516 = por %p514, %p515
      %s518 = sadd.s32 %s517, 1
      %p521 = scmp.eq.s32.totalorder %s37, 1
      %p522 = scmp.ne.s32.totalorder %s517, %s519
      %p523 = scmp.eq.s32.totalorder %s37, 0
      %p524 = por %p522, %p523
      %p525 = scmp.ne.s32.totalorder %s517, %s519
      %p526 = scmp.eq.s32.totalorder %s42, 1
      %p527 = por %p525, %p526
      %p528 = scmp.ne.s32.totalorder %s519, %s520
      %p529 = scmp.eq.s32.totalorder %s42, 0
      %p530 = por %p528, %p529
      %p531 = scmp.ne.s32.totalorder %s519, %s520
      %p532 = scmp.eq.s32.totalorder %s43, 1
      %p533 = por %p531, %p532
      %p535 = scmp.ne.s32.totalorder %s520, %s534
      %p536 = scmp.eq.s32.totalorder %s43, 0
      %p537 = por %p535, %p536
      %s539 = sadd.s32 %s538, 1
      %p542 = scmp.eq.s32.totalorder %s37, 1
      %p543 = scmp.ne.s32.totalorder %s538, %s540
      %p544 = scmp.eq.s32.totalorder %s37, 0
      %p545 = por %p543, %p544
      %p546 = scmp.ne.s32.totalorder %s538, %s540
      %p547 = scmp.eq.s32.totalorder %s42, 1
      %p548 = por %p546, %p547
      %p549 = scmp.ne.s32.totalorder %s540, %s541
      %p550 = scmp.eq.s32.totalorder %s42, 0
      %p551 = por %p549, %p550
      %p552 = scmp.ne.s32.totalorder %s540, %s541
      %p553 = scmp.eq.s32.totalorder %s43, 1
      %p554 = por %p552, %p553
      %p556 = scmp.ne.s32.totalorder %s541, %s555
      %p557 = scmp.eq.s32.totalorder %s43, 0
      %p558 = por %p556, %p557
      %s560 = sadd.s32 %s559, 1
      %p563 = scmp.eq.s32.totalorder %s37, 1
      %p564 = scmp.ne.s32.totalorder %s559, %s561
      %p565 = scmp.eq.s32.totalorder %s37, 0
      %p566 = por %p564, %p565
      %p567 = scmp.ne.s32.totalorder %s559, %s561
      %p568 = scmp.eq.s32.totalorder %s42, 1
      %p569 = por %p567, %p568
      %p570 = scmp.ne.s32.totalorder %s561, %s562
      %p571 = scmp.eq.s32.totalorder %s42, 0
      %p572 = por %p570, %p571
      %p573 = scmp.ne.s32.totalorder %s561, %s562
      %p574 = scmp.eq.s32.totalorder %s43, 1
      %p575 = por %p573, %p574
      %p577 = scmp.ne.s32.totalorder %s562, %s576
      %p578 = scmp.eq.s32.totalorder %s43, 0
      %p579 = por %p577, %p578
      %s580 = ssub.s32 %s37, %s44
      %p581 = scmp.eq.s32.totalorder %s580, 0
      %s583 = sadd.s32 %s582, 1
      %s584 = scalar_select %p581, %s582, %s583
      %p587 = pneg %p581
      %p588 = scmp.eq.s32.totalorder %s37, 1
      %p589 = por %p587, %p588
      %p590 = scmp.ne.s32.totalorder %s582, %s585
      %p591 = scmp.eq.s32.totalorder %s37, 0
      %p592 = por %p590, %p591
      %p593 = scmp.ne.s32.totalorder %s582, %s585
      %p594 = scmp.eq.s32.totalorder %s42, 1
      %p595 = por %p593, %p594
      %p596 = scmp.ne.s32.totalorder %s585, %s586
      %p597 = scmp.eq.s32.totalorder %s42, 0
      %p598 = por %p596, %p597
      %p599 = scmp.ne.s32.totalorder %s585, %s586
      %p600 = scmp.eq.s32.totalorder %s43, 1
      %p601 = por %p599, %p600
      %p603 = scmp.ne.s32.totalorder %s586, %s602
      %p604 = scmp.eq.s32.totalorder %s43, 0
      %p605 = por %p603, %p604
      %s606 = ssub.s32 %s37, %s44
      %p607 = scmp.eq.s32.totalorder %s606, 0
      %s609 = sadd.s32 %s608, 1
      %s610 = scalar_select %p607, %s608, %s609
      %p613 = pneg %p607
      %p614 = scmp.eq.s32.totalorder %s37, 1
      %p615 = por %p613, %p614
      %p616 = scmp.ne.s32.totalorder %s608, %s611
      %p617 = scmp.eq.s32.totalorder %s37, 0
      %p618 = por %p616, %p617
      %p619 = scmp.ne.s32.totalorder %s608, %s611
      %p620 = scmp.eq.s32.totalorder %s42, 1
      %p621 = por %p619, %p620
      %p622 = scmp.ne.s32.totalorder %s611, %s612
      %p623 = scmp.eq.s32.totalorder %s42, 0
      %p624 = por %p622, %p623
      %p625 = scmp.ne.s32.totalorder %s611, %s612
      %p626 = scmp.eq.s32.totalorder %s43, 1
      %p627 = por %p625, %p626
      %p629 = scmp.ne.s32.totalorder %s612, %s628
      %p630 = scmp.eq.s32.totalorder %s43, 0
      %p631 = por %p629, %p630
      %s632 = ssub.s32 %s37, %s44
      %p633 = scmp.eq.s32.totalorder %s632, 0
      %s635 = sadd.s32 %s634, 1
      %s636 = scalar_select %p633, %s634, %s635
      %p639 = pneg %p633
      %p640 = scmp.eq.s32.totalorder %s37, 1
      %p641 = por %p639, %p640
      %p642 = scmp.ne.s32.totalorder %s634, %s637
      %p643 = scmp.eq.s32.totalorder %s37, 0
      %p644 = por %p642, %p643
      %p645 = scmp.ne.s32.totalorder %s634, %s637
      %p646 = scmp.eq.s32.totalorder %s42, 1
      %p647 = por %p645, %p646
      %p648 = scmp.ne.s32.totalorder %s637, %s638
      %p649 = scmp.eq.s32.totalorder %s42, 0
      %p650 = por %p648, %p649
      %p651 = scmp.ne.s32.totalorder %s637, %s638
      %p652 = scmp.eq.s32.totalorder %s43, 1
      %p653 = por %p651, %p652
      %p655 = scmp.ne.s32.totalorder %s638, %s654
      %p656 = scmp.eq.s32.totalorder %s43, 0
      %p657 = por %p655, %p656
      %p658 = scmp.le.s32.totalorder 1, %s37
      %p659 = scmp.lt.s32.totalorder %s37, 3
      %p660 = pnand %p658, %p659
      %p661 = pneg %p660
      // Predicated region
      $region9: #{vae_forward.1} parent=5 // pred_check
        _
      $region10: #{vae_forward.1} parent=5 // pred_check_branch
        %663 = sbr.rel (%p660) target = $region12
      $region11: #{vae_forward.1} parent=5 // pred_region
        %s664 = ssub.s32 %s37, 1
        // Predicated region
        $region13: #{vae_forward.1} parent=11 // pred_check
          %p665 = pneg %p110
        $region14: #{vae_forward.1} parent=11 // pred_check_branch
          %667 = sbr.rel (%p665) target = $region16
        $region15: #{vae_forward.1} parent=11 // pred_region
          _
        $region16: #{vae_forward.1} parent=11 // pred_fallthru
          _
        // Predicated region
        $region17: #{vae_forward.1} parent=11 // pred_check
          %p668 = pneg %p131
        $region18: #{vae_forward.1} parent=11 // pred_check_branch
          %670 = sbr.rel (%p668) target = $region20
        $region19: #{vae_forward.1} parent=11 // pred_region
          _
        $region20: #{vae_forward.1} parent=11 // pred_fallthru
          _
        // Predicated region
        $region21: #{vae_forward.1} parent=11 // pred_check
          %p671 = pneg %p152
        $region22: #{vae_forward.1} parent=11 // pred_check_branch
          %673 = sbr.rel (%p671) target = $region24
        $region23: #{vae_forward.1} parent=11 // pred_region
          _
        $region24: #{vae_forward.1} parent=11 // pred_fallthru
          _
        // Predicated region
        $region25: #{vae_forward.1} parent=11 // pred_check
          %p674 = pneg %p173
        $region26: #{vae_forward.1} parent=11 // pred_check_branch
          %676 = sbr.rel (%p674) target = $region28
        $region27: #{vae_forward.1} parent=11 // pred_region
          _
        $region28: #{vae_forward.1} parent=11 // pred_fallthru
          _
        // Predicated region
        $region29: #{vae_forward.1} parent=11 // pred_check
          %p677 = pneg %p194
        $region30: #{vae_forward.1} parent=11 // pred_check_branch
          %679 = sbr.rel (%p677) target = $region32
        $region31: #{vae_forward.1} parent=11 // pred_region
          _
        $region32: #{vae_forward.1} parent=11 // pred_fallthru
          _
        // Predicated region
        $region33: #{vae_forward.1} parent=11 // pred_check
          %p680 = pneg %p215
        $region34: #{vae_forward.1} parent=11 // pred_check_branch
          %682 = sbr.rel (%p680) target = $region36
        $region35: #{vae_forward.1} parent=11 // pred_region
          _
        $region36: #{vae_forward.1} parent=11 // pred_fallthru
          _
        // Predicated region
        $region37: #{vae_forward.1} parent=11 // pred_check
          %p683 = pneg %p236
        $region38: #{vae_forward.1} parent=11 // pred_check_branch
          %685 = sbr.rel (%p683) target = $region40
        $region39: #{vae_forward.1} parent=11 // pred_region
          _
        $region40: #{vae_forward.1} parent=11 // pred_fallthru
          _
        // Predicated region
        $region41: #{vae_forward.1} parent=11 // pred_check
          %p686 = pneg %p257
        $region42: #{vae_forward.1} parent=11 // pred_check_branch
          %688 = sbr.rel (%p686) target = $region44
        $region43: #{vae_forward.1} parent=11 // pred_region
          _
        $region44: #{vae_forward.1} parent=11 // pred_fallthru
          _
        // Predicated region
        $region45: #{vae_forward.1} parent=11 // pred_check
          %p689 = pneg %p278
        $region46: #{vae_forward.1} parent=11 // pred_check_branch
          %691 = sbr.rel (%p689) target = $region48
        $region47: #{vae_forward.1} parent=11 // pred_region
          _
        $region48: #{vae_forward.1} parent=11 // pred_fallthru
          _
        // Predicated region
        $region49: #{vae_forward.1} parent=11 // pred_check
          %p692 = pneg %p299
        $region50: #{vae_forward.1} parent=11 // pred_check_branch
          %694 = sbr.rel (%p692) target = $region52
        $region51: #{vae_forward.1} parent=11 // pred_region
          _
        $region52: #{vae_forward.1} parent=11 // pred_fallthru
          _
        // Predicated region
        $region53: #{vae_forward.1} parent=11 // pred_check
          %p695 = pneg %p320
        $region54: #{vae_forward.1} parent=11 // pred_check_branch
          %697 = sbr.rel (%p695) target = $region56
        $region55: #{vae_forward.1} parent=11 // pred_region
          _
        $region56: #{vae_forward.1} parent=11 // pred_fallthru
          _
        // Predicated region
        $region57: #{vae_forward.1} parent=11 // pred_check
          %p698 = pneg %p341
        $region58: #{vae_forward.1} parent=11 // pred_check_branch
          %700 = sbr.rel (%p698) target = $region60
        $region59: #{vae_forward.1} parent=11 // pred_region
          _
        $region60: #{vae_forward.1} parent=11 // pred_fallthru
          _
        // Predicated region
        $region61: #{vae_forward.1} parent=11 // pred_check
          %p701 = pneg %p362
        $region62: #{vae_forward.1} parent=11 // pred_check_branch
          %703 = sbr.rel (%p701) target = $region64
        $region63: #{vae_forward.1} parent=11 // pred_region
          _
        $region64: #{vae_forward.1} parent=11 // pred_fallthru
          _
        // Predicated region
        $region65: #{vae_forward.1} parent=11 // pred_check
          %p704 = pneg %p383
        $region66: #{vae_forward.1} parent=11 // pred_check_branch
          %706 = sbr.rel (%p704) target = $region68
        $region67: #{vae_forward.1} parent=11 // pred_region
          _
        $region68: #{vae_forward.1} parent=11 // pred_fallthru
          _
        // Predicated region
        $region69: #{vae_forward.1} parent=11 // pred_check
          %p707 = pneg %p404
        $region70: #{vae_forward.1} parent=11 // pred_check_branch
          %709 = sbr.rel (%p707) target = $region72
        $region71: #{vae_forward.1} parent=11 // pred_region
          _
        $region72: #{vae_forward.1} parent=11 // pred_fallthru
          _
        // Predicated region
        $region73: #{vae_forward.1} parent=11 // pred_check
          %p710 = pneg %p425
        $region74: #{vae_forward.1} parent=11 // pred_check_branch
          %712 = sbr.rel (%p710) target = $region76
        $region75: #{vae_forward.1} parent=11 // pred_region
          _
        $region76: #{vae_forward.1} parent=11 // pred_fallthru
          _
        // Predicated region
        $region77: #{vae_forward.1} parent=11 // pred_check
          %p713 = pneg %p446
        $region78: #{vae_forward.1} parent=11 // pred_check_branch
          %715 = sbr.rel (%p713) target = $region80
        $region79: #{vae_forward.1} parent=11 // pred_region
          _
        $region80: #{vae_forward.1} parent=11 // pred_fallthru
          _
        // Predicated region
        $region81: #{vae_forward.1} parent=11 // pred_check
          %p716 = pneg %p467
        $region82: #{vae_forward.1} parent=11 // pred_check_branch
          %718 = sbr.rel (%p716) target = $region84
        $region83: #{vae_forward.1} parent=11 // pred_region
          _
        $region84: #{vae_forward.1} parent=11 // pred_fallthru
          _
        // Predicated region
        $region85: #{vae_forward.1} parent=11 // pred_check
          %p719 = pneg %p488
        $region86: #{vae_forward.1} parent=11 // pred_check_branch
          %721 = sbr.rel (%p719) target = $region88
        $region87: #{vae_forward.1} parent=11 // pred_region
          _
        $region88: #{vae_forward.1} parent=11 // pred_fallthru
          _
        // Predicated region
        $region89: #{vae_forward.1} parent=11 // pred_check
          %p722 = pneg %p509
        $region90: #{vae_forward.1} parent=11 // pred_check_branch
          %724 = sbr.rel (%p722) target = $region92
        $region91: #{vae_forward.1} parent=11 // pred_region
          _
        $region92: #{vae_forward.1} parent=11 // pred_fallthru
          _
        // Predicated region
        $region93: #{vae_forward.1} parent=11 // pred_check
          %p725 = pneg %p530
        $region94: #{vae_forward.1} parent=11 // pred_check_branch
          %727 = sbr.rel (%p725) target = $region96
        $region95: #{vae_forward.1} parent=11 // pred_region
          _
        $region96: #{vae_forward.1} parent=11 // pred_fallthru
          _
        // Predicated region
        $region97: #{vae_forward.1} parent=11 // pred_check
          %p728 = pneg %p551
        $region98: #{vae_forward.1} parent=11 // pred_check_branch
          %730 = sbr.rel (%p728) target = $region100
        $region99: #{vae_forward.1} parent=11 // pred_region
          _
        $region100: #{vae_forward.1} parent=11 // pred_fallthru
          _
        // Predicated region
        $region101: #{vae_forward.1} parent=11 // pred_check
          %p731 = pneg %p572
        $region102: #{vae_forward.1} parent=11 // pred_check_branch
          %733 = sbr.rel (%p731) target = $region104
        $region103: #{vae_forward.1} parent=11 // pred_region
          _
        $region104: #{vae_forward.1} parent=11 // pred_fallthru
          _
      $region12: #{vae_forward.1} parent=5 // pred_fallthru
        _
      %p734 = scmp.lt.s32.totalorder %s37, 2
      // Predicated region
      $region105: #{vae_forward.1} parent=5 // pred_check
        %p735 = pneg %p734
      $region106: #{vae_forward.1} parent=5 // pred_check_branch
        %737 = sbr.rel (%p735) target = $region108
      $region107: #{vae_forward.1} parent=5 // pred_region
        // Predicated region
        $region109: #{vae_forward.1} parent=107 // pred_check
          %p738 = pneg %p57
        $region110: #{vae_forward.1} parent=107 // pred_check_branch
          %740 = sbr.rel (%p738) target = $region112
        $region111: #{vae_forward.1} parent=107 // pred_region
          %p741 = scmp.lt.s32.totalorder %s37, 1
          %s742 = scalar_select %p741, %s37, 1
          %s743 = smul.addr %s742, 2
          %s744 = smul.addr %s743, 8
          %s745 = scalar_lea.vmem %s0, %s744
        $region112: #{vae_forward.1} parent=107 // pred_fallthru
          _
        // Predicated region
        $region113: #{vae_forward.1} parent=107 // pred_check
          %p746 = pneg %p83
        $region114: #{vae_forward.1} parent=107 // pred_check_branch
          %748 = sbr.rel (%p746) target = $region116
        $region115: #{vae_forward.1} parent=107 // pred_region
          %p749 = scmp.lt.s32.totalorder %s37, 1
          %s750 = scalar_select %p749, %s37, 1
          %s751 = smul.addr %s750, 4
          %s752 = scalar_lea.vmem %s1, %s751
        $region116: #{vae_forward.1} parent=107 // pred_fallthru
          _
      $region108: #{vae_forward.1} parent=5 // pred_fallthru
        _
      %p753 = scmp.le.s32.totalorder 1, %s37
      %p754 = scmp.lt.s32.totalorder %s37, 3
      %p755 = pnand %p753, %p754
      %p756 = pneg %p755
      // Predicated region
      $region117: #{vae_forward.1} parent=5 // pred_check
        _
      $region118: #{vae_forward.1} parent=5 // pred_check_branch
        %758 = sbr.rel (%p755) target = $region120
      $region119: #{vae_forward.1} parent=5 // pred_region
        %s759 = ssub.s32 %s37, 1
        %p760 = scmp.lt.s32.totalorder %s42, 1
        %s761 = scalar_select %p760, %s42, 1
        %s762 = smul.addr %s761, 2
        %s763 = smul.addr %s762, 8
        %s764 = scalar_lea.vmem %s0, %s763
        %p765 = pneg %p63
        %p766 = pneg %p60
        %p767 = scmp.lt.s32.totalorder %s42, 1
        %s768 = scalar_select %p767, %s42, 1
        %s769 = smul.addr %s768, 4
        %s770 = scalar_lea.vmem %s1, %s769
        %p771 = pneg %p89
        %p772 = pneg %p86
        %p773 = pneg %p110
        %p774 = pneg %p107
        %p775 = pneg %p131
        %p776 = pneg %p128
        %p777 = pneg %p152
        %p778 = pneg %p149
        %p779 = pneg %p173
        %p780 = pneg %p170
        %p781 = pneg %p194
        %p782 = pneg %p191
        %p783 = pneg %p215
        %p784 = pneg %p212
        %p785 = pneg %p236
        %p786 = pneg %p233
        %p787 = pneg %p257
        %p788 = pneg %p254
        %p789 = pneg %p278
        %p790 = pneg %p275
        %p791 = pneg %p299
        %p792 = pneg %p296
        %p793 = pneg %p320
        %p794 = pneg %p317
        %p795 = pneg %p341
        %p796 = pneg %p338
        %p797 = pneg %p362
        %p798 = pneg %p359
        %p799 = pneg %p383
        %p800 = pneg %p380
        %p801 = pneg %p404
        %p802 = pneg %p401
        %p803 = pneg %p425
        %p804 = pneg %p422
        %p805 = pneg %p446
        %p806 = pneg %p443
        %p807 = pneg %p467
        %p808 = pneg %p464
        %p809 = pneg %p488
        %p810 = pneg %p485
        %p811 = pneg %p509
        %p812 = pneg %p506
        %p813 = pneg %p530
        %p814 = pneg %p527
        %p815 = pneg %p551
        %p816 = pneg %p548
        %p817 = pneg %p572
        %p818 = pneg %p569
        %p819 = pneg %p598
        %p820 = pneg %p595
        %s821 = sand.u32 %s585, 1
        %s822 = scalar_lea.sflag [#allocation3], %s821
        %s823 = sand.u32 %s585, 1
        %s824 = smul.addr %s823, 16
        %s825 = scalar_lea.vmem [#allocation2], %s824
        %p826 = pneg %p624
        %p827 = pneg %p621
        %p828 = scmp.lt.s32.totalorder %s42, 1
        %s829 = scalar_select %p828, %s42, 1
        %s830 = smul.addr %s829, 4
        %s831 = scalar_lea.vmem %s26, %s830
        %p832 = pneg %p650
        %p833 = pneg %p647
        %p834 = scmp.lt.s32.totalorder %s42, 1
        %s835 = scalar_select %p834, %s42, 1
        %s836 = smul.addr %s835, 4
        %s837 = scalar_lea.vmem %s27, %s836
        %p838 = scmp.lt.s32.totalorder %s42, 1
        %s839 = scalar_select %p838, %s42, 1
        %s840 = smul.addr %s839, 2
        %s841 = smul.addr %s840, 8
        %s842 = scalar_lea.vmem %s0, %s841
        %p843 = scmp.lt.s32.totalorder %s42, 1
        %s844 = scalar_select %p843, %s42, 1
        %s845 = smul.addr %s844, 4
        %s846 = scalar_lea.vmem %s1, %s845
        %p847 = scmp.lt.s32.totalorder %s42, 1
        %s848 = scalar_select %p847, %s42, 1
        %s849 = smul.addr %s848, 4
        %s850 = scalar_lea.vmem %s26, %s849
        %p851 = scmp.lt.s32.totalorder %s42, 1
        %s852 = scalar_select %p851, %s42, 1
        %s853 = smul.addr %s852, 4
        %s854 = scalar_lea.vmem %s27, %s853
        %v855 = vld [vmem:[%s842] sm:$0xff]
        %v856 = vld [vmem:[%s842 + $0x8] sm:$0xff]
        %v857 = vld [vmem:[%s2] sm:$0xff]
        %vm858 = vcmask 130048
        %v860 = vsel %vm858, %v857, 0
        %862 = vmatpush.msra.mxu0 0.0
        %863 = vmatpush.msra.mxu0 0.0
        %864 = vmatpush.msra.mxu0 0.0
        %865 = vmatpush.msra.mxu0 0.0
        %866 = vmatpush.msra.mxu0 0.0
        %867 = vmatpush.msra.mxu0 0.0
        %868 = vmatpush.msra.mxu0 0.0
        %869 = vmatpush.msra.mxu0 0.0
        %870 = vmatpush.msra.mxu0 0.0
        %871 = vmatpush.msra.mxu0 0.0
        %872 = vmatpush.msra.mxu0 0.0
        %873 = vmatpush.msra.mxu0 0.0
        %874 = vmatpush.msra.mxu0 0.0
        %875 = vmatpush.msra.mxu0 0.0
        %876 = vmatpush.msra.mxu0 %v856
        %877 = vmatpush.msra.mxu0 %v855
        %878 = vmatmul.f32.gmra.mxu0 %v860
        %v879 = vpop.f32.mrf.mxu0
        %v880 = vadd.f32 0.0, %v879
        %881 = vdwg.mxu0
        %v882 = vld [vmem:[%s3] sm:$0xff]
        %v883 = vld [vmem:[%s3 + $0x8] sm:$0xff]
        %s884 = scalar_lea.vmem %s2, 8
        %v885 = vld [vmem:[%s884] sm:$0xff]
        %v887 = vsel %vm858, %v885, 0
        %889 = vmatpush.msra.mxu0 0.0
        %890 = vmatpush.msra.mxu0 0.0
        %891 = vmatpush.msra.mxu0 0.0
        %892 = vmatpush.msra.mxu0 0.0
        %893 = vmatpush.msra.mxu0 0.0
        %894 = vmatpush.msra.mxu0 0.0
        %895 = vmatpush.msra.mxu0 0.0
        %896 = vmatpush.msra.mxu0 0.0
        %897 = vmatpush.msra.mxu0 0.0
        %898 = vmatpush.msra.mxu0 0.0
        %899 = vmatpush.msra.mxu0 0.0
        %900 = vmatpush.msra.mxu0 0.0
        %901 = vmatpush.msra.mxu0 0.0
        %902 = vmatpush.msra.mxu0 0.0
        %903 = vmatpush.msra.mxu0 %v856
        %904 = vmatpush.msra.mxu0 %v855
        %905 = vmatmul.f32.gmra.mxu0 %v887
        %v906 = vpop.f32.mrf.mxu0
        %v907 = vadd.f32 0.0, %v906
        %908 = vdwg.mxu0
        %s909 = scalar_lea.vmem %s3, 16
        %v910 = vld [vmem:[%s909] sm:$0xff]
        %v911 = vld [vmem:[%s909 + $0x8] sm:$0xff]
        %v913 = vsel %vm858, %v907, 0
        %915 = vmatpush.msra.mxu0 0.0
        %916 = vmatpush.msra.mxu0 0.0
        %917 = vmatpush.msra.mxu0 0.0
        %918 = vmatpush.msra.mxu0 0.0
        %919 = vmatpush.msra.mxu0 0.0
        %920 = vmatpush.msra.mxu0 0.0
        %921 = vmatpush.msra.mxu0 0.0
        %922 = vmatpush.msra.mxu0 0.0
        %923 = vmatpush.msra.mxu0 0.0
        %924 = vmatpush.msra.mxu0 0.0
        %925 = vmatpush.msra.mxu0 0.0
        %926 = vmatpush.msra.mxu0 0.0
        %927 = vmatpush.msra.mxu0 0.0
        %928 = vmatpush.msra.mxu0 0.0
        %929 = vmatpush.msra.mxu0 %v911
        %930 = vmatpush.msra.mxu0 %v910
        %931 = vmatmul.f32.gmra.mxu0 %v913
        %v932 = vpop.f32.mrf.mxu0
        %v933 = vadd.f32 0.0, %v932
        %934 = vdwg.mxu0
        %v936 = vsel %vm858, %v880, 0
        %938 = vmatpush.msra.mxu0 0.0
        %939 = vmatpush.msra.mxu0 0.0
        %940 = vmatpush.msra.mxu0 0.0
        %941 = vmatpush.msra.mxu0 0.0
        %942 = vmatpush.msra.mxu0 0.0
        %943 = vmatpush.msra.mxu0 0.0
        %944 = vmatpush.msra.mxu0 0.0
        %945 = vmatpush.msra.mxu0 0.0
        %946 = vmatpush.msra.mxu0 0.0
        %947 = vmatpush.msra.mxu0 0.0
        %948 = vmatpush.msra.mxu0 0.0
        %949 = vmatpush.msra.mxu0 0.0
        %950 = vmatpush.msra.mxu0 0.0
        %951 = vmatpush.msra.mxu0 0.0
        %952 = vmatpush.msra.mxu0 %v883
        %953 = vmatpush.msra.mxu0 %v882
        %954 = vmatmul.f32.gmra.mxu0 %v936
        %v955 = vpop.f32.mrf.mxu0
        %v956 = vadd.f32 %v933, %v955
        %957 = vdwg.mxu0
        %s958 = scalar_lea.vmem %s2, 16
        %v959 = vld [vmem:[%s958] sm:$0xff]
        %v961 = vsel %vm858, %v959, 0
        %963 = vmatpush.msra.mxu0 0.0
        %964 = vmatpush.msra.mxu0 0.0
        %965 = vmatpush.msra.mxu0 0.0
        %966 = vmatpush.msra.mxu0 0.0
        %967 = vmatpush.msra.mxu0 0.0
        %968 = vmatpush.msra.mxu0 0.0
        %969 = vmatpush.msra.mxu0 0.0
        %970 = vmatpush.msra.mxu0 0.0
        %971 = vmatpush.msra.mxu0 0.0
        %972 = vmatpush.msra.mxu0 0.0
        %973 = vmatpush.msra.mxu0 0.0
        %974 = vmatpush.msra.mxu0 0.0
        %975 = vmatpush.msra.mxu0 0.0
        %976 = vmatpush.msra.mxu0 0.0
        %977 = vmatpush.msra.mxu0 %v856
        %978 = vmatpush.msra.mxu0 %v855
        %979 = vmatmul.f32.gmra.mxu0 %v961
        %v980 = vpop.f32.mrf.mxu0
        %v981 = vadd.f32 0.0, %v980
        %982 = vdwg.mxu0
        %s983 = scalar_lea.vmem %s3, 32
        %v984 = vld [vmem:[%s983] sm:$0xff]
        %v985 = vld [vmem:[%s983 + $0x8] sm:$0xff]
        %v987 = vsel %vm858, %v981, 0
        %989 = vmatpush.msra.mxu0 0.0
        %990 = vmatpush.msra.mxu0 0.0
        %991 = vmatpush.msra.mxu0 0.0
        %992 = vmatpush.msra.mxu0 0.0
        %993 = vmatpush.msra.mxu0 0.0
        %994 = vmatpush.msra.mxu0 0.0
        %995 = vmatpush.msra.mxu0 0.0
        %996 = vmatpush.msra.mxu0 0.0
        %997 = vmatpush.msra.mxu0 0.0
        %998 = vmatpush.msra.mxu0 0.0
        %999 = vmatpush.msra.mxu0 0.0
        %1000 = vmatpush.msra.mxu0 0.0
        %1001 = vmatpush.msra.mxu0 0.0
        %1002 = vmatpush.msra.mxu0 0.0
        %1003 = vmatpush.msra.mxu0 %v985
        %1004 = vmatpush.msra.mxu0 %v984
        %1005 = vmatmul.f32.gmra.mxu0 %v987
        %v1006 = vpop.f32.mrf.mxu0
        %v1007 = vadd.f32 0.0, %v1006
        %1008 = vdwg.mxu0
        %v1009 = vadd.f32 %v956, %v1007
        %s1010 = scalar_lea.vmem %s2, 24
        %v1011 = vld [vmem:[%s1010] sm:$0xff]
        %v1013 = vsel %vm858, %v1011, 0
        %1015 = vmatpush.msra.mxu0 0.0
        %1016 = vmatpush.msra.mxu0 0.0
        %1017 = vmatpush.msra.mxu0 0.0
        %1018 = vmatpush.msra.mxu0 0.0
        %1019 = vmatpush.msra.mxu0 0.0
        %1020 = vmatpush.msra.mxu0 0.0
        %1021 = vmatpush.msra.mxu0 0.0
        %1022 = vmatpush.msra.mxu0 0.0
        %1023 = vmatpush.msra.mxu0 0.0
        %1024 = vmatpush.msra.mxu0 0.0
        %1025 = vmatpush.msra.mxu0 0.0
        %1026 = vmatpush.msra.mxu0 0.0
        %1027 = vmatpush.msra.mxu0 0.0
        %1028 = vmatpush.msra.mxu0 0.0
        %1029 = vmatpush.msra.mxu0 %v856
        %1030 = vmatpush.msra.mxu0 %v855
        %1031 = vmatmul.f32.gmra.mxu0 %v1013
        %v1032 = vpop.f32.mrf.mxu0
        %v1033 = vadd.f32 0.0, %v1032
        %1034 = vdwg.mxu0
        %s1035 = scalar_lea.vmem %s3, 48
        %v1036 = vld [vmem:[%s1035] sm:$0xff]
        %v1037 = vld [vmem:[%s1035 + $0x8] sm:$0xff]
        %v1039 = vsel %vm858, %v1033, 0
        %1041 = vmatpush.msra.mxu0 0.0
        %1042 = vmatpush.msra.mxu0 0.0
        %1043 = vmatpush.msra.mxu0 0.0
        %1044 = vmatpush.msra.mxu0 0.0
        %1045 = vmatpush.msra.mxu0 0.0
        %1046 = vmatpush.msra.mxu0 0.0
        %1047 = vmatpush.msra.mxu0 0.0
        %1048 = vmatpush.msra.mxu0 0.0
        %1049 = vmatpush.msra.mxu0 0.0
        %1050 = vmatpush.msra.mxu0 0.0
        %1051 = vmatpush.msra.mxu0 0.0
        %1052 = vmatpush.msra.mxu0 0.0
        %1053 = vmatpush.msra.mxu0 0.0
        %1054 = vmatpush.msra.mxu0 0.0
        %1055 = vmatpush.msra.mxu0 %v1037
        %1056 = vmatpush.msra.mxu0 %v1036
        %1057 = vmatmul.f32.gmra.mxu0 %v1039
        %v1058 = vpop.f32.mrf.mxu0
        %v1059 = vadd.f32 0.0, %v1058
        %1060 = vdwg.mxu0
        %v1061 = vadd.f32 %v1009, %v1059
        %v1062 = vld [vmem:[%s4] sm:$0x1]
        %v1064 = vperm.slane %v1062, 0
        %v1066 = vadd.f32 %v1061, %v1064
        %v1067 = vmax.f32 %v1066, 0.0
        %v1068 = vld [vmem:[%s5] sm:$0xf]
        %vm1069 = vcmask 64512
        %v1071 = vsel %vm1069, %v1068, 0
        %1073 = vmatpush.msra.mxu0 0.0
        %1074 = vmatpush.msra.mxu0 0.0
        %1075 = vmatpush.msra.mxu0 0.0
        %1076 = vmatpush.msra.mxu0 0.0
        %1077 = vmatpush.msra.mxu0 0.0
        %1078 = vmatpush.msra.mxu0 0.0
        %1079 = vmatpush.msra.mxu0 0.0
        %1080 = vmatpush.msra.mxu0 0.0
        %1081 = vmatpush.msra.mxu0 0.0
        %1082 = vmatpush.msra.mxu0 0.0
        %1083 = vmatpush.msra.mxu0 0.0
        %1084 = vmatpush.msra.mxu0 0.0
        %1085 = vmatpush.msra.mxu0 0.0
        %1086 = vmatpush.msra.mxu0 0.0
        %1087 = vmatpush.msra.mxu0 0.0
        %1088 = vmatpush.msra.mxu0 %v1067
        %1089 = vmatmul.f32.gmra.mxu0 %v1071
        %v1090 = vpop.f32.mrf.mxu0
        %v1091 = vadd.f32 0.0, %v1090
        %1092 = vdwg.mxu0
        %v1093 = vld [vmem:[%s6] sm:$0xff]
        %v1094 = vld [vmem:[%s6 + $0x8] sm:$0xff]
        %v1095 = vld [vmem:[%s6 + $0x10] sm:$0xff]
        %v1096 = vld [vmem:[%s6 + $0x18] sm:$0xff]
        %v1097 = vld [vmem:[%s6 + $0x20] sm:$0xff]
        %v1098 = vld [vmem:[%s6 + $0x28] sm:$0xff]
        %v1099 = vld [vmem:[%s6 + $0x30] sm:$0xff]
        %v1100 = vld [vmem:[%s6 + $0x38] sm:$0xff]
        %v1101 = vld [vmem:[%s6 + $0x40] sm:$0xff]
        %v1102 = vld [vmem:[%s6 + $0x48] sm:$0xff]
        %v1103 = vld [vmem:[%s6 + $0x50] sm:$0xff]
        %v1104 = vld [vmem:[%s6 + $0x58] sm:$0xff]
        %v1105 = vld [vmem:[%s6 + $0x60] sm:$0xff]
        %v1106 = vld [vmem:[%s6 + $0x68] sm:$0xff]
        %v1107 = vld [vmem:[%s6 + $0x70] sm:$0xff]
        %v1108 = vld [vmem:[%s6 + $0x78] sm:$0xff]
        %s1109 = scalar_lea.vmem %s5, 4
        %v1110 = vld [vmem:[%s1109] sm:$0xf]
        %v1112 = vsel %vm1069, %v1110, 0
        %1114 = vmatpush.msra.mxu0 0.0
        %1115 = vmatpush.msra.mxu0 0.0
        %1116 = vmatpush.msra.mxu0 0.0
        %1117 = vmatpush.msra.mxu0 0.0
        %1118 = vmatpush.msra.mxu0 0.0
        %1119 = vmatpush.msra.mxu0 0.0
        %1120 = vmatpush.msra.mxu0 0.0
        %1121 = vmatpush.msra.mxu0 0.0
        %1122 = vmatpush.msra.mxu0 0.0
        %1123 = vmatpush.msra.mxu0 0.0
        %1124 = vmatpush.msra.mxu0 0.0
        %1125 = vmatpush.msra.mxu0 0.0
        %1126 = vmatpush.msra.mxu0 0.0
        %1127 = vmatpush.msra.mxu0 0.0
        %1128 = vmatpush.msra.mxu0 0.0
        %1129 = vmatpush.msra.mxu0 %v1067
        %1130 = vmatmul.f32.gmra.mxu0 %v1112
        %v1131 = vpop.f32.mrf.mxu0
        %v1132 = vadd.f32 0.0, %v1131
        %1133 = vdwg.mxu0
        %s1134 = scalar_lea.vmem %s6, 128
        %v1135 = vld [vmem:[%s1134] sm:$0xff]
        %v1136 = vld [vmem:[%s1134 + $0x8] sm:$0xff]
        %v1137 = vld [vmem:[%s1134 + $0x10] sm:$0xff]
        %v1138 = vld [vmem:[%s1134 + $0x18] sm:$0xff]
        %v1139 = vld [vmem:[%s1134 + $0x20] sm:$0xff]
        %v1140 = vld [vmem:[%s1134 + $0x28] sm:$0xff]
        %v1141 = vld [vmem:[%s1134 + $0x30] sm:$0xff]
        %v1142 = vld [vmem:[%s1134 + $0x38] sm:$0xff]
        %v1143 = vld [vmem:[%s1134 + $0x40] sm:$0xff]
        %v1144 = vld [vmem:[%s1134 + $0x48] sm:$0xff]
        %v1145 = vld [vmem:[%s1134 + $0x50] sm:$0xff]
        %v1146 = vld [vmem:[%s1134 + $0x58] sm:$0xff]
        %v1147 = vld [vmem:[%s1134 + $0x60] sm:$0xff]
        %v1148 = vld [vmem:[%s1134 + $0x68] sm:$0xff]
        %v1149 = vld [vmem:[%s1134 + $0x70] sm:$0xff]
        %v1150 = vld [vmem:[%s1134 + $0x78] sm:$0xff]
        %1151 = vmatpush.msra.mxu0 %v1150
        %1152 = vmatpush.msra.mxu0 %v1149
        %1153 = vmatpush.msra.mxu0 %v1148
        %1154 = vmatpush.msra.mxu0 %v1147
        %1155 = vmatpush.msra.mxu0 %v1146
        %1156 = vmatpush.msra.mxu0 %v1145
        %1157 = vmatpush.msra.mxu0 %v1144
        %1158 = vmatpush.msra.mxu0 %v1143
        %1159 = vmatpush.msra.mxu0 %v1142
        %1160 = vmatpush.msra.mxu0 %v1141
        %1161 = vmatpush.msra.mxu0 %v1140
        %1162 = vmatpush.msra.mxu0 %v1139
        %1163 = vmatpush.msra.mxu0 %v1138
        %1164 = vmatpush.msra.mxu0 %v1137
        %1165 = vmatpush.msra.mxu0 %v1136
        %1166 = vmatpush.msra.mxu0 %v1135
        %1167 = vmatmul.f32.gmra.mxu0 %v1132
        %v1168 = vpop.f32.mrf.mxu0
        %v1169 = vadd.f32 0.0, %v1168
        %1170 = vdwg.mxu0
        %1171 = vmatpush.msra.mxu0 %v1108
        %1172 = vmatpush.msra.mxu0 %v1107
        %1173 = vmatpush.msra.mxu0 %v1106
        %1174 = vmatpush.msra.mxu0 %v1105
        %1175 = vmatpush.msra.mxu0 %v1104
        %1176 = vmatpush.msra.mxu0 %v1103
        %1177 = vmatpush.msra.mxu0 %v1102
        %1178 = vmatpush.msra.mxu0 %v1101
        %1179 = vmatpush.msra.mxu0 %v1100
        %1180 = vmatpush.msra.mxu0 %v1099
        %1181 = vmatpush.msra.mxu0 %v1098
        %1182 = vmatpush.msra.mxu0 %v1097
        %1183 = vmatpush.msra.mxu0 %v1096
        %1184 = vmatpush.msra.mxu0 %v1095
        %1185 = vmatpush.msra.mxu0 %v1094
        %1186 = vmatpush.msra.mxu0 %v1093
        %1187 = vmatmul.f32.gmra.mxu0 %v1091
        %v1188 = vpop.f32.mrf.mxu0
        %v1189 = vadd.f32 %v1169, %v1188
        %1190 = vdwg.mxu0
        %s1191 = scalar_lea.vmem %s5, 8
        %v1192 = vld [vmem:[%s1191] sm:$0xf]
        %v1194 = vsel %vm1069, %v1192, 0
        %1196 = vmatpush.msra.mxu0 0.0
        %1197 = vmatpush.msra.mxu0 0.0
        %1198 = vmatpush.msra.mxu0 0.0
        %1199 = vmatpush.msra.mxu0 0.0
        %1200 = vmatpush.msra.mxu0 0.0
        %1201 = vmatpush.msra.mxu0 0.0
        %1202 = vmatpush.msra.mxu0 0.0
        %1203 = vmatpush.msra.mxu0 0.0
        %1204 = vmatpush.msra.mxu0 0.0
        %1205 = vmatpush.msra.mxu0 0.0
        %1206 = vmatpush.msra.mxu0 0.0
        %1207 = vmatpush.msra.mxu0 0.0
        %1208 = vmatpush.msra.mxu0 0.0
        %1209 = vmatpush.msra.mxu0 0.0
        %1210 = vmatpush.msra.mxu0 0.0
        %1211 = vmatpush.msra.mxu0 %v1067
        %1212 = vmatmul.f32.gmra.mxu0 %v1194
        %v1213 = vpop.f32.mrf.mxu0
        %v1214 = vadd.f32 0.0, %v1213
        %1215 = vdwg.mxu0
        %s1216 = scalar_lea.vmem %s6, 256
        %v1217 = vld [vmem:[%s1216] sm:$0xff]
        %v1218 = vld [vmem:[%s1216 + $0x8] sm:$0xff]
        %v1219 = vld [vmem:[%s1216 + $0x10] sm:$0xff]
        %v1220 = vld [vmem:[%s1216 + $0x18] sm:$0xff]
        %v1221 = vld [vmem:[%s1216 + $0x20] sm:$0xff]
        %v1222 = vld [vmem:[%s1216 + $0x28] sm:$0xff]
        %v1223 = vld [vmem:[%s1216 + $0x30] sm:$0xff]
        %v1224 = vld [vmem:[%s1216 + $0x38] sm:$0xff]
        %v1225 = vld [vmem:[%s1216 + $0x40] sm:$0xff]
        %v1226 = vld [vmem:[%s1216 + $0x48] sm:$0xff]
        %v1227 = vld [vmem:[%s1216 + $0x50] sm:$0xff]
        %v1228 = vld [vmem:[%s1216 + $0x58] sm:$0xff]
        %v1229 = vld [vmem:[%s1216 + $0x60] sm:$0xff]
        %v1230 = vld [vmem:[%s1216 + $0x68] sm:$0xff]
        %v1231 = vld [vmem:[%s1216 + $0x70] sm:$0xff]
        %v1232 = vld [vmem:[%s1216 + $0x78] sm:$0xff]
        %1233 = vmatpush.msra.mxu0 %v1232
        %1234 = vmatpush.msra.mxu0 %v1231
        %1235 = vmatpush.msra.mxu0 %v1230
        %1236 = vmatpush.msra.mxu0 %v1229
        %1237 = vmatpush.msra.mxu0 %v1228
        %1238 = vmatpush.msra.mxu0 %v1227
        %1239 = vmatpush.msra.mxu0 %v1226
        %1240 = vmatpush.msra.mxu0 %v1225
        %1241 = vmatpush.msra.mxu0 %v1224
        %1242 = vmatpush.msra.mxu0 %v1223
        %1243 = vmatpush.msra.mxu0 %v1222
        %1244 = vmatpush.msra.mxu0 %v1221
        %1245 = vmatpush.msra.mxu0 %v1220
        %1246 = vmatpush.msra.mxu0 %v1219
        %1247 = vmatpush.msra.mxu0 %v1218
        %1248 = vmatpush.msra.mxu0 %v1217
        %1249 = vmatmul.f32.gmra.mxu0 %v1214
        %v1250 = vpop.f32.mrf.mxu0
        %v1251 = vadd.f32 0.0, %v1250
        %1252 = vdwg.mxu0
        %v1253 = vadd.f32 %v1189, %v1251
        %s1254 = scalar_lea.vmem %s5, 12
        %v1255 = vld [vmem:[%s1254] sm:$0xf]
        %v1257 = vsel %vm1069, %v1255, 0
        %1259 = vmatpush.msra.mxu0 0.0
        %1260 = vmatpush.msra.mxu0 0.0
        %1261 = vmatpush.msra.mxu0 0.0
        %1262 = vmatpush.msra.mxu0 0.0
        %1263 = vmatpush.msra.mxu0 0.0
        %1264 = vmatpush.msra.mxu0 0.0
        %1265 = vmatpush.msra.mxu0 0.0
        %1266 = vmatpush.msra.mxu0 0.0
        %1267 = vmatpush.msra.mxu0 0.0
        %1268 = vmatpush.msra.mxu0 0.0
        %1269 = vmatpush.msra.mxu0 0.0
        %1270 = vmatpush.msra.mxu0 0.0
        %1271 = vmatpush.msra.mxu0 0.0
        %1272 = vmatpush.msra.mxu0 0.0
        %1273 = vmatpush.msra.mxu0 0.0
        %1274 = vmatpush.msra.mxu0 %v1067
        %1275 = vmatmul.f32.gmra.mxu0 %v1257
        %v1276 = vpop.f32.mrf.mxu0
        %v1277 = vadd.f32 0.0, %v1276
        %1278 = vdwg.mxu0
        %s1279 = scalar_lea.vmem %s6, 384
        %v1280 = vld [vmem:[%s1279] sm:$0xff]
        %v1281 = vld [vmem:[%s1279 + $0x8] sm:$0xff]
        %v1282 = vld [vmem:[%s1279 + $0x10] sm:$0xff]
        %v1283 = vld [vmem:[%s1279 + $0x18] sm:$0xff]
        %v1284 = vld [vmem:[%s1279 + $0x20] sm:$0xff]
        %v1285 = vld [vmem:[%s1279 + $0x28] sm:$0xff]
        %v1286 = vld [vmem:[%s1279 + $0x30] sm:$0xff]
        %v1287 = vld [vmem:[%s1279 + $0x38] sm:$0xff]
        %v1288 = vld [vmem:[%s1279 + $0x40] sm:$0xff]
        %v1289 = vld [vmem:[%s1279 + $0x48] sm:$0xff]
        %v1290 = vld [vmem:[%s1279 + $0x50] sm:$0xff]
        %v1291 = vld [vmem:[%s1279 + $0x58] sm:$0xff]
        %v1292 = vld [vmem:[%s1279 + $0x60] sm:$0xff]
        %v1293 = vld [vmem:[%s1279 + $0x68] sm:$0xff]
        %v1294 = vld [vmem:[%s1279 + $0x70] sm:$0xff]
        %v1295 = vld [vmem:[%s1279 + $0x78] sm:$0xff]
        %1296 = vmatpush.msra.mxu0 %v1295
        %1297 = vmatpush.msra.mxu0 %v1294
        %1298 = vmatpush.msra.mxu0 %v1293
        %1299 = vmatpush.msra.mxu0 %v1292
        %1300 = vmatpush.msra.mxu0 %v1291
        %1301 = vmatpush.msra.mxu0 %v1290
        %1302 = vmatpush.msra.mxu0 %v1289
        %1303 = vmatpush.msra.mxu0 %v1288
        %1304 = vmatpush.msra.mxu0 %v1287
        %1305 = vmatpush.msra.mxu0 %v1286
        %1306 = vmatpush.msra.mxu0 %v1285
        %1307 = vmatpush.msra.mxu0 %v1284
        %1308 = vmatpush.msra.mxu0 %v1283
        %1309 = vmatpush.msra.mxu0 %v1282
        %1310 = vmatpush.msra.mxu0 %v1281
        %1311 = vmatpush.msra.mxu0 %v1280
        %1312 = vmatmul.f32.gmra.mxu0 %v1277
        %v1313 = vpop.f32.mrf.mxu0
        %v1314 = vadd.f32 0.0, %v1313
        %1315 = vdwg.mxu0
        %v1316 = vadd.f32 %v1253, %v1314
        %v1317 = vld [vmem:[%s7] sm:$0x1]
        %v1319 = vperm.slane %v1317, 0
        %v1321 = vadd.f32 %v1316, %v1319
        %v1322 = vmax.f32 %v1321, 0.0
        %v1323 = vld [vmem:[%s8] sm:$0xf]
        %vm1324 = vcmask 31744
        %v1326 = vsel %vm1324, %v1323, 0
        %vm1328 = vcmask 1043456
        %v1330 = vsel %vm1328, %v1322, 0
        %1332 = vmatpush.msra.mxu0 0.0
        %1333 = vmatpush.msra.mxu0 0.0
        %1334 = vmatpush.msra.mxu0 0.0
        %1335 = vmatpush.msra.mxu0 0.0
        %1336 = vmatpush.msra.mxu0 0.0
        %1337 = vmatpush.msra.mxu0 0.0
        %1338 = vmatpush.msra.mxu0 0.0
        %1339 = vmatpush.msra.mxu0 0.0
        %1340 = vmatpush.msra.mxu0 0.0
        %1341 = vmatpush.msra.mxu0 0.0
        %1342 = vmatpush.msra.mxu0 0.0
        %1343 = vmatpush.msra.mxu0 0.0
        %1344 = vmatpush.msra.mxu0 0.0
        %1345 = vmatpush.msra.mxu0 0.0
        %1346 = vmatpush.msra.mxu0 0.0
        %1347 = vmatpush.msra.mxu0 %v1330
        %1348 = vmatmul.f32.gmra.mxu0 %v1326
        %v1349 = vpop.f32.mrf.mxu0
        %v1350 = vadd.f32 0.0, %v1349
        %1351 = vdwg.mxu0
        %v1352 = vld [vmem:[%s9] sm:$0xff]
        %v1353 = vld [vmem:[%s9 + $0x8] sm:$0xff]
        %v1354 = vld [vmem:[%s9 + $0x10] sm:$0xff]
        %v1355 = vld [vmem:[%s9 + $0x18] sm:$0xff]
        %v1356 = vld [vmem:[%s9 + $0x20] sm:$0xff]
        %v1357 = vld [vmem:[%s9 + $0x28] sm:$0xff]
        %v1358 = vld [vmem:[%s9 + $0x30] sm:$0xff]
        %v1359 = vld [vmem:[%s9 + $0x38] sm:$0xff]
        %v1360 = vld [vmem:[%s9 + $0x40] sm:$0xff]
        %v1361 = vld [vmem:[%s9 + $0x48] sm:$0xff]
        %v1362 = vld [vmem:[%s9 + $0x50] sm:$0xff]
        %v1363 = vld [vmem:[%s9 + $0x58] sm:$0xff]
        %v1364 = vld [vmem:[%s9 + $0x60] sm:$0xff]
        %v1365 = vld [vmem:[%s9 + $0x68] sm:$0xff]
        %v1366 = vld [vmem:[%s9 + $0x70] sm:$0xff]
        %v1367 = vld [vmem:[%s9 + $0x78] sm:$0xff]
        %s1368 = scalar_lea.vmem %s8, 4
        %v1369 = vld [vmem:[%s1368] sm:$0xf]
        %v1371 = vsel %vm1324, %v1369, 0
        %1373 = vmatpush.msra.mxu0 0.0
        %1374 = vmatpush.msra.mxu0 0.0
        %1375 = vmatpush.msra.mxu0 0.0
        %1376 = vmatpush.msra.mxu0 0.0
        %1377 = vmatpush.msra.mxu0 0.0
        %1378 = vmatpush.msra.mxu0 0.0
        %1379 = vmatpush.msra.mxu0 0.0
        %1380 = vmatpush.msra.mxu0 0.0
        %1381 = vmatpush.msra.mxu0 0.0
        %1382 = vmatpush.msra.mxu0 0.0
        %1383 = vmatpush.msra.mxu0 0.0
        %1384 = vmatpush.msra.mxu0 0.0
        %1385 = vmatpush.msra.mxu0 0.0
        %1386 = vmatpush.msra.mxu0 0.0
        %1387 = vmatpush.msra.mxu0 0.0
        %1388 = vmatpush.msra.mxu0 %v1330
        %1389 = vmatmul.f32.gmra.mxu0 %v1371
        %v1390 = vpop.f32.mrf.mxu0
        %v1391 = vadd.f32 0.0, %v1390
        %1392 = vdwg.mxu0
        %s1393 = scalar_lea.vmem %s9, 128
        %v1394 = vld [vmem:[%s1393] sm:$0xff]
        %v1395 = vld [vmem:[%s1393 + $0x8] sm:$0xff]
        %v1396 = vld [vmem:[%s1393 + $0x10] sm:$0xff]
        %v1397 = vld [vmem:[%s1393 + $0x18] sm:$0xff]
        %v1398 = vld [vmem:[%s1393 + $0x20] sm:$0xff]
        %v1399 = vld [vmem:[%s1393 + $0x28] sm:$0xff]
        %v1400 = vld [vmem:[%s1393 + $0x30] sm:$0xff]
        %v1401 = vld [vmem:[%s1393 + $0x38] sm:$0xff]
        %v1402 = vld [vmem:[%s1393 + $0x40] sm:$0xff]
        %v1403 = vld [vmem:[%s1393 + $0x48] sm:$0xff]
        %v1404 = vld [vmem:[%s1393 + $0x50] sm:$0xff]
        %v1405 = vld [vmem:[%s1393 + $0x58] sm:$0xff]
        %v1406 = vld [vmem:[%s1393 + $0x60] sm:$0xff]
        %v1407 = vld [vmem:[%s1393 + $0x68] sm:$0xff]
        %v1408 = vld [vmem:[%s1393 + $0x70] sm:$0xff]
        %v1409 = vld [vmem:[%s1393 + $0x78] sm:$0xff]
        %1410 = vmatpush.msra.mxu0 %v1409
        %1411 = vmatpush.msra.mxu0 %v1408
        %1412 = vmatpush.msra.mxu0 %v1407
        %1413 = vmatpush.msra.mxu0 %v1406
        %1414 = vmatpush.msra.mxu0 %v1405
        %1415 = vmatpush.msra.mxu0 %v1404
        %1416 = vmatpush.msra.mxu0 %v1403
        %1417 = vmatpush.msra.mxu0 %v1402
        %1418 = vmatpush.msra.mxu0 %v1401
        %1419 = vmatpush.msra.mxu0 %v1400
        %1420 = vmatpush.msra.mxu0 %v1399
        %1421 = vmatpush.msra.mxu0 %v1398
        %1422 = vmatpush.msra.mxu0 %v1397
        %1423 = vmatpush.msra.mxu0 %v1396
        %1424 = vmatpush.msra.mxu0 %v1395
        %1425 = vmatpush.msra.mxu0 %v1394
        %1426 = vmatmul.f32.gmra.mxu0 %v1391
        %v1427 = vpop.f32.mrf.mxu0
        %v1428 = vadd.f32 0.0, %v1427
        %1429 = vdwg.mxu0
        %1430 = vmatpush.msra.mxu0 %v1367
        %1431 = vmatpush.msra.mxu0 %v1366
        %1432 = vmatpush.msra.mxu0 %v1365
        %1433 = vmatpush.msra.mxu0 %v1364
        %1434 = vmatpush.msra.mxu0 %v1363
        %1435 = vmatpush.msra.mxu0 %v1362
        %1436 = vmatpush.msra.mxu0 %v1361
        %1437 = vmatpush.msra.mxu0 %v1360
        %1438 = vmatpush.msra.mxu0 %v1359
        %1439 = vmatpush.msra.mxu0 %v1358
        %1440 = vmatpush.msra.mxu0 %v1357
        %1441 = vmatpush.msra.mxu0 %v1356
        %1442 = vmatpush.msra.mxu0 %v1355
        %1443 = vmatpush.msra.mxu0 %v1354
        %1444 = vmatpush.msra.mxu0 %v1353
        %1445 = vmatpush.msra.mxu0 %v1352
        %1446 = vmatmul.f32.gmra.mxu0 %v1350
        %v1447 = vpop.f32.mrf.mxu0
        %v1448 = vadd.f32 %v1428, %v1447
        %1449 = vdwg.mxu0
        %s1450 = scalar_lea.vmem %s8, 8
        %v1451 = vld [vmem:[%s1450] sm:$0xf]
        %v1453 = vsel %vm1324, %v1451, 0
        %1455 = vmatpush.msra.mxu0 0.0
        %1456 = vmatpush.msra.mxu0 0.0
        %1457 = vmatpush.msra.mxu0 0.0
        %1458 = vmatpush.msra.mxu0 0.0
        %1459 = vmatpush.msra.mxu0 0.0
        %1460 = vmatpush.msra.mxu0 0.0
        %1461 = vmatpush.msra.mxu0 0.0
        %1462 = vmatpush.msra.mxu0 0.0
        %1463 = vmatpush.msra.mxu0 0.0
        %1464 = vmatpush.msra.mxu0 0.0
        %1465 = vmatpush.msra.mxu0 0.0
        %1466 = vmatpush.msra.mxu0 0.0
        %1467 = vmatpush.msra.mxu0 0.0
        %1468 = vmatpush.msra.mxu0 0.0
        %1469 = vmatpush.msra.mxu0 0.0
        %1470 = vmatpush.msra.mxu0 %v1330
        %1471 = vmatmul.f32.gmra.mxu0 %v1453
        %v1472 = vpop.f32.mrf.mxu0
        %v1473 = vadd.f32 0.0, %v1472
        %1474 = vdwg.mxu0
        %s1475 = scalar_lea.vmem %s9, 256
        %v1476 = vld [vmem:[%s1475] sm:$0xff]
        %v1477 = vld [vmem:[%s1475 + $0x8] sm:$0xff]
        %v1478 = vld [vmem:[%s1475 + $0x10] sm:$0xff]
        %v1479 = vld [vmem:[%s1475 + $0x18] sm:$0xff]
        %v1480 = vld [vmem:[%s1475 + $0x20] sm:$0xff]
        %v1481 = vld [vmem:[%s1475 + $0x28] sm:$0xff]
        %v1482 = vld [vmem:[%s1475 + $0x30] sm:$0xff]
        %v1483 = vld [vmem:[%s1475 + $0x38] sm:$0xff]
        %v1484 = vld [vmem:[%s1475 + $0x40] sm:$0xff]
        %v1485 = vld [vmem:[%s1475 + $0x48] sm:$0xff]
        %v1486 = vld [vmem:[%s1475 + $0x50] sm:$0xff]
        %v1487 = vld [vmem:[%s1475 + $0x58] sm:$0xff]
        %v1488 = vld [vmem:[%s1475 + $0x60] sm:$0xff]
        %v1489 = vld [vmem:[%s1475 + $0x68] sm:$0xff]
        %v1490 = vld [vmem:[%s1475 + $0x70] sm:$0xff]
        %v1491 = vld [vmem:[%s1475 + $0x78] sm:$0xff]
        %1492 = vmatpush.msra.mxu0 %v1491
        %1493 = vmatpush.msra.mxu0 %v1490
        %1494 = vmatpush.msra.mxu0 %v1489
        %1495 = vmatpush.msra.mxu0 %v1488
        %1496 = vmatpush.msra.mxu0 %v1487
        %1497 = vmatpush.msra.mxu0 %v1486
        %1498 = vmatpush.msra.mxu0 %v1485
        %1499 = vmatpush.msra.mxu0 %v1484
        %1500 = vmatpush.msra.mxu0 %v1483
        %1501 = vmatpush.msra.mxu0 %v1482
        %1502 = vmatpush.msra.mxu0 %v1481
        %1503 = vmatpush.msra.mxu0 %v1480
        %1504 = vmatpush.msra.mxu0 %v1479
        %1505 = vmatpush.msra.mxu0 %v1478
        %1506 = vmatpush.msra.mxu0 %v1477
        %1507 = vmatpush.msra.mxu0 %v1476
        %1508 = vmatmul.f32.gmra.mxu0 %v1473
        %v1509 = vpop.f32.mrf.mxu0
        %v1510 = vadd.f32 0.0, %v1509
        %1511 = vdwg.mxu0
        %v1512 = vadd.f32 %v1448, %v1510
        %v1513 = vld [vmem:[%s10] sm:$0x1]
        %v1515 = vperm.slane %v1513, 0
        %v1517 = vadd.f32 %v1512, %v1515
        %v1518 = vmax.f32 %v1517, 0.0
        %v1520 = vsel %vm1328, %v1518, 0
        %1522 = vmatpush.msra.mxu0 0.0
        %1523 = vmatpush.msra.mxu0 0.0
        %1524 = vmatpush.msra.mxu0 0.0
        %1525 = vmatpush.msra.mxu0 0.0
        %1526 = vmatpush.msra.mxu0 0.0
        %1527 = vmatpush.msra.mxu0 0.0
        %1528 = vmatpush.msra.mxu0 0.0
        %1529 = vmatpush.msra.mxu0 0.0
        %1530 = vmatpush.msra.mxu0 0.0
        %1531 = vmatpush.msra.mxu0 0.0
        %1532 = vmatpush.msra.mxu0 0.0
        %1533 = vmatpush.msra.mxu0 0.0
        %1534 = vmatpush.msra.mxu0 0.0
        %1535 = vmatpush.msra.mxu0 0.0
        %1536 = vmatpush.msra.mxu0 0.0
        %1537 = vmatpush.msra.mxu0 %v1520
        %1538 = vmatmul.f32.gmra.mxu0 %v1326
        %v1539 = vpop.f32.mrf.mxu0
        %v1540 = vadd.f32 0.0, %v1539
        %1541 = vdwg.mxu0
        %v1542 = vld [vmem:[%s11] sm:$0xff]
        %v1543 = vld [vmem:[%s11 + $0x8] sm:$0xff]
        %v1544 = vld [vmem:[%s11 + $0x10] sm:$0xff]
        %v1545 = vld [vmem:[%s11 + $0x18] sm:$0xff]
        %v1546 = vld [vmem:[%s11 + $0x20] sm:$0xff]
        %v1547 = vld [vmem:[%s11 + $0x28] sm:$0xff]
        %v1548 = vld [vmem:[%s11 + $0x30] sm:$0xff]
        %v1549 = vld [vmem:[%s11 + $0x38] sm:$0xff]
        %v1550 = vld [vmem:[%s11 + $0x40] sm:$0xff]
        %v1551 = vld [vmem:[%s11 + $0x48] sm:$0xff]
        %v1552 = vld [vmem:[%s11 + $0x50] sm:$0xff]
        %v1553 = vld [vmem:[%s11 + $0x58] sm:$0xff]
        %v1554 = vld [vmem:[%s11 + $0x60] sm:$0xff]
        %v1555 = vld [vmem:[%s11 + $0x68] sm:$0xff]
        %v1556 = vld [vmem:[%s11 + $0x70] sm:$0xff]
        %v1557 = vld [vmem:[%s11 + $0x78] sm:$0xff]
        %1558 = vmatpush.msra.mxu0 0.0
        %1559 = vmatpush.msra.mxu0 0.0
        %1560 = vmatpush.msra.mxu0 0.0
        %1561 = vmatpush.msra.mxu0 0.0
        %1562 = vmatpush.msra.mxu0 0.0
        %1563 = vmatpush.msra.mxu0 0.0
        %1564 = vmatpush.msra.mxu0 0.0
        %1565 = vmatpush.msra.mxu0 0.0
        %1566 = vmatpush.msra.mxu0 0.0
        %1567 = vmatpush.msra.mxu0 0.0
        %1568 = vmatpush.msra.mxu0 0.0
        %1569 = vmatpush.msra.mxu0 0.0
        %1570 = vmatpush.msra.mxu0 0.0
        %1571 = vmatpush.msra.mxu0 0.0
        %1572 = vmatpush.msra.mxu0 0.0
        %1573 = vmatpush.msra.mxu0 %v1520
        %1574 = vmatmul.f32.gmra.mxu0 %v1371
        %v1575 = vpop.f32.mrf.mxu0
        %v1576 = vadd.f32 0.0, %v1575
        %1577 = vdwg.mxu0
        %s1578 = scalar_lea.vmem %s11, 128
        %v1579 = vld [vmem:[%s1578] sm:$0xff]
        %v1580 = vld [vmem:[%s1578 + $0x8] sm:$0xff]
        %v1581 = vld [vmem:[%s1578 + $0x10] sm:$0xff]
        %v1582 = vld [vmem:[%s1578 + $0x18] sm:$0xff]
        %v1583 = vld [vmem:[%s1578 + $0x20] sm:$0xff]
        %v1584 = vld [vmem:[%s1578 + $0x28] sm:$0xff]
        %v1585 = vld [vmem:[%s1578 + $0x30] sm:$0xff]
        %v1586 = vld [vmem:[%s1578 + $0x38] sm:$0xff]
        %v1587 = vld [vmem:[%s1578 + $0x40] sm:$0xff]
        %v1588 = vld [vmem:[%s1578 + $0x48] sm:$0xff]
        %v1589 = vld [vmem:[%s1578 + $0x50] sm:$0xff]
        %v1590 = vld [vmem:[%s1578 + $0x58] sm:$0xff]
        %v1591 = vld [vmem:[%s1578 + $0x60] sm:$0xff]
        %v1592 = vld [vmem:[%s1578 + $0x68] sm:$0xff]
        %v1593 = vld [vmem:[%s1578 + $0x70] sm:$0xff]
        %v1594 = vld [vmem:[%s1578 + $0x78] sm:$0xff]
        %1595 = vmatpush.msra.mxu0 %v1594
        %1596 = vmatpush.msra.mxu0 %v1593
        %1597 = vmatpush.msra.mxu0 %v1592
        %1598 = vmatpush.msra.mxu0 %v1591
        %1599 = vmatpush.msra.mxu0 %v1590
        %1600 = vmatpush.msra.mxu0 %v1589
        %1601 = vmatpush.msra.mxu0 %v1588
        %1602 = vmatpush.msra.mxu0 %v1587
        %1603 = vmatpush.msra.mxu0 %v1586
        %1604 = vmatpush.msra.mxu0 %v1585
        %1605 = vmatpush.msra.mxu0 %v1584
        %1606 = vmatpush.msra.mxu0 %v1583
        %1607 = vmatpush.msra.mxu0 %v1582
        %1608 = vmatpush.msra.mxu0 %v1581
        %1609 = vmatpush.msra.mxu0 %v1580
        %1610 = vmatpush.msra.mxu0 %v1579
        %1611 = vmatmul.f32.gmra.mxu0 %v1576
        %v1612 = vpop.f32.mrf.mxu0
        %v1613 = vadd.f32 0.0, %v1612
        %1614 = vdwg.mxu0
        %1615 = vmatpush.msra.mxu0 %v1557
        %1616 = vmatpush.msra.mxu0 %v1556
        %1617 = vmatpush.msra.mxu0 %v1555
        %1618 = vmatpush.msra.mxu0 %v1554
        %1619 = vmatpush.msra.mxu0 %v1553
        %1620 = vmatpush.msra.mxu0 %v1552
        %1621 = vmatpush.msra.mxu0 %v1551
        %1622 = vmatpush.msra.mxu0 %v1550
        %1623 = vmatpush.msra.mxu0 %v1549
        %1624 = vmatpush.msra.mxu0 %v1548
        %1625 = vmatpush.msra.mxu0 %v1547
        %1626 = vmatpush.msra.mxu0 %v1546
        %1627 = vmatpush.msra.mxu0 %v1545
        %1628 = vmatpush.msra.mxu0 %v1544
        %1629 = vmatpush.msra.mxu0 %v1543
        %1630 = vmatpush.msra.mxu0 %v1542
        %1631 = vmatmul.f32.gmra.mxu0 %v1540
        %v1632 = vpop.f32.mrf.mxu0
        %v1633 = vadd.f32 %v1613, %v1632
        %1634 = vdwg.mxu0
        %1635 = vmatpush.msra.mxu0 0.0
        %1636 = vmatpush.msra.mxu0 0.0
        %1637 = vmatpush.msra.mxu0 0.0
        %1638 = vmatpush.msra.mxu0 0.0
        %1639 = vmatpush.msra.mxu0 0.0
        %1640 = vmatpush.msra.mxu0 0.0
        %1641 = vmatpush.msra.mxu0 0.0
        %1642 = vmatpush.msra.mxu0 0.0
        %1643 = vmatpush.msra.mxu0 0.0
        %1644 = vmatpush.msra.mxu0 0.0
        %1645 = vmatpush.msra.mxu0 0.0
        %1646 = vmatpush.msra.mxu0 0.0
        %1647 = vmatpush.msra.mxu0 0.0
        %1648 = vmatpush.msra.mxu0 0.0
        %1649 = vmatpush.msra.mxu0 0.0
        %1650 = vmatpush.msra.mxu0 %v1520
        %1651 = vmatmul.f32.gmra.mxu0 %v1453
        %v1652 = vpop.f32.mrf.mxu0
        %v1653 = vadd.f32 0.0, %v1652
        %1654 = vdwg.mxu0
        %s1655 = scalar_lea.vmem %s11, 256
        %v1656 = vld [vmem:[%s1655] sm:$0xff]
        %v1657 = vld [vmem:[%s1655 + $0x8] sm:$0xff]
        %v1658 = vld [vmem:[%s1655 + $0x10] sm:$0xff]
        %v1659 = vld [vmem:[%s1655 + $0x18] sm:$0xff]
        %v1660 = vld [vmem:[%s1655 + $0x20] sm:$0xff]
        %v1661 = vld [vmem:[%s1655 + $0x28] sm:$0xff]
        %v1662 = vld [vmem:[%s1655 + $0x30] sm:$0xff]
        %v1663 = vld [vmem:[%s1655 + $0x38] sm:$0xff]
        %v1664 = vld [vmem:[%s1655 + $0x40] sm:$0xff]
        %v1665 = vld [vmem:[%s1655 + $0x48] sm:$0xff]
        %v1666 = vld [vmem:[%s1655 + $0x50] sm:$0xff]
        %v1667 = vld [vmem:[%s1655 + $0x58] sm:$0xff]
        %v1668 = vld [vmem:[%s1655 + $0x60] sm:$0xff]
        %v1669 = vld [vmem:[%s1655 + $0x68] sm:$0xff]
        %v1670 = vld [vmem:[%s1655 + $0x70] sm:$0xff]
        %v1671 = vld [vmem:[%s1655 + $0x78] sm:$0xff]
        %1672 = vmatpush.msra.mxu0 %v1671
        %1673 = vmatpush.msra.mxu0 %v1670
        %1674 = vmatpush.msra.mxu0 %v1669
        %1675 = vmatpush.msra.mxu0 %v1668
        %1676 = vmatpush.msra.mxu0 %v1667
        %1677 = vmatpush.msra.mxu0 %v1666
        %1678 = vmatpush.msra.mxu0 %v1665
        %1679 = vmatpush.msra.mxu0 %v1664
        %1680 = vmatpush.msra.mxu0 %v1663
        %1681 = vmatpush.msra.mxu0 %v1662
        %1682 = vmatpush.msra.mxu0 %v1661
        %1683 = vmatpush.msra.mxu0 %v1660
        %1684 = vmatpush.msra.mxu0 %v1659
        %1685 = vmatpush.msra.mxu0 %v1658
        %1686 = vmatpush.msra.mxu0 %v1657
        %1687 = vmatpush.msra.mxu0 %v1656
        %1688 = vmatmul.f32.gmra.mxu0 %v1653
        %v1689 = vpop.f32.mrf.mxu0
        %v1690 = vadd.f32 0.0, %v1689
        %1691 = vdwg.mxu0
        %v1692 = vadd.f32 %v1633, %v1690
        %v1693 = vmax.f32 %v1692, 0.0
        %v1694 = vld [vmem:[%s12] sm:$0xff]
        %v1695 = vld [vmem:[%s12 + $0x8] sm:$0xff]
        %v1696 = vld [vmem:[%s12 + $0x10] sm:$0xff]
        %v1697 = vld [vmem:[%s12 + $0x18] sm:$0xff]
        %v1698 = vld [vmem:[%s12 + $0x20] sm:$0xff]
        %v1699 = vld [vmem:[%s12 + $0x28] sm:$0xff]
        %v1700 = vld [vmem:[%s12 + $0x30] sm:$0xff]
        %v1701 = vld [vmem:[%s12 + $0x38] sm:$0xff]
        %vm1702 = vcmask 523264
        %v1704 = vsel %vm1702, %v1693, 0
        %1706 = vmatpush.msra.mxu0 0.0
        %1707 = vmatpush.msra.mxu0 0.0
        %1708 = vmatpush.msra.mxu0 0.0
        %1709 = vmatpush.msra.mxu0 0.0
        %1710 = vmatpush.msra.mxu0 0.0
        %1711 = vmatpush.msra.mxu0 0.0
        %1712 = vmatpush.msra.mxu0 0.0
        %1713 = vmatpush.msra.mxu0 0.0
        %1714 = vmatpush.msra.mxu0 %v1701
        %1715 = vmatpush.msra.mxu0 %v1700
        %1716 = vmatpush.msra.mxu0 %v1699
        %1717 = vmatpush.msra.mxu0 %v1698
        %1718 = vmatpush.msra.mxu0 %v1697
        %1719 = vmatpush.msra.mxu0 %v1696
        %1720 = vmatpush.msra.mxu0 %v1695
        %1721 = vmatpush.msra.mxu0 %v1694
        %1722 = vmatmul.f32.gmra.mxu0 %v1704
        %v1723 = vpop.f32.mrf.mxu0
        %v1724 = vadd.f32 0.0, %v1723
        %1725 = vdwg.mxu0
        %v1726 = vadd.f32 %v1517, %v1724
        %v1727 = vmax.f32 %v1726, 0.0
        %v1729 = vsel %vm1328, %v1727, 0
        %1731 = vmatpush.msra.mxu0 0.0
        %1732 = vmatpush.msra.mxu0 0.0
        %1733 = vmatpush.msra.mxu0 0.0
        %1734 = vmatpush.msra.mxu0 0.0
        %1735 = vmatpush.msra.mxu0 0.0
        %1736 = vmatpush.msra.mxu0 0.0
        %1737 = vmatpush.msra.mxu0 0.0
        %1738 = vmatpush.msra.mxu0 0.0
        %1739 = vmatpush.msra.mxu0 0.0
        %1740 = vmatpush.msra.mxu0 0.0
        %1741 = vmatpush.msra.mxu0 0.0
        %1742 = vmatpush.msra.mxu0 0.0
        %1743 = vmatpush.msra.mxu0 0.0
        %1744 = vmatpush.msra.mxu0 0.0
        %1745 = vmatpush.msra.mxu0 0.0
        %1746 = vmatpush.msra.mxu0 %v1729
        %1747 = vmatmul.f32.gmra.mxu0 %v1326
        %v1748 = vpop.f32.mrf.mxu0
        %v1749 = vadd.f32 0.0, %v1748
        %1750 = vdwg.mxu0
        %s1751 = scalar_lea.vmem %s11, 384
        %v1752 = vld [vmem:[%s1751] sm:$0xff]
        %v1753 = vld [vmem:[%s1751 + $0x8] sm:$0xff]
        %v1754 = vld [vmem:[%s1751 + $0x10] sm:$0xff]
        %v1755 = vld [vmem:[%s1751 + $0x18] sm:$0xff]
        %v1756 = vld [vmem:[%s1751 + $0x20] sm:$0xff]
        %v1757 = vld [vmem:[%s1751 + $0x28] sm:$0xff]
        %v1758 = vld [vmem:[%s1751 + $0x30] sm:$0xff]
        %v1759 = vld [vmem:[%s1751 + $0x38] sm:$0xff]
        %v1760 = vld [vmem:[%s1751 + $0x40] sm:$0xff]
        %v1761 = vld [vmem:[%s1751 + $0x48] sm:$0xff]
        %v1762 = vld [vmem:[%s1751 + $0x50] sm:$0xff]
        %v1763 = vld [vmem:[%s1751 + $0x58] sm:$0xff]
        %v1764 = vld [vmem:[%s1751 + $0x60] sm:$0xff]
        %v1765 = vld [vmem:[%s1751 + $0x68] sm:$0xff]
        %v1766 = vld [vmem:[%s1751 + $0x70] sm:$0xff]
        %v1767 = vld [vmem:[%s1751 + $0x78] sm:$0xff]
        %1768 = vmatpush.msra.mxu0 0.0
        %1769 = vmatpush.msra.mxu0 0.0
        %1770 = vmatpush.msra.mxu0 0.0
        %1771 = vmatpush.msra.mxu0 0.0
        %1772 = vmatpush.msra.mxu0 0.0
        %1773 = vmatpush.msra.mxu0 0.0
        %1774 = vmatpush.msra.mxu0 0.0
        %1775 = vmatpush.msra.mxu0 0.0
        %1776 = vmatpush.msra.mxu0 0.0
        %1777 = vmatpush.msra.mxu0 0.0
        %1778 = vmatpush.msra.mxu0 0.0
        %1779 = vmatpush.msra.mxu0 0.0
        %1780 = vmatpush.msra.mxu0 0.0
        %1781 = vmatpush.msra.mxu0 0.0
        %1782 = vmatpush.msra.mxu0 0.0
        %1783 = vmatpush.msra.mxu0 %v1729
        %1784 = vmatmul.f32.gmra.mxu0 %v1371
        %v1785 = vpop.f32.mrf.mxu0
        %v1786 = vadd.f32 0.0, %v1785
        %1787 = vdwg.mxu0
        %s1788 = scalar_lea.vmem %s11, 512
        %v1789 = vld [vmem:[%s1788] sm:$0xff]
        %v1790 = vld [vmem:[%s1788 + $0x8] sm:$0xff]
        %v1791 = vld [vmem:[%s1788 + $0x10] sm:$0xff]
        %v1792 = vld [vmem:[%s1788 + $0x18] sm:$0xff]
        %v1793 = vld [vmem:[%s1788 + $0x20] sm:$0xff]
        %v1794 = vld [vmem:[%s1788 + $0x28] sm:$0xff]
        %v1795 = vld [vmem:[%s1788 + $0x30] sm:$0xff]
        %v1796 = vld [vmem:[%s1788 + $0x38] sm:$0xff]
        %v1797 = vld [vmem:[%s1788 + $0x40] sm:$0xff]
        %v1798 = vld [vmem:[%s1788 + $0x48] sm:$0xff]
        %v1799 = vld [vmem:[%s1788 + $0x50] sm:$0xff]
        %v1800 = vld [vmem:[%s1788 + $0x58] sm:$0xff]
        %v1801 = vld [vmem:[%s1788 + $0x60] sm:$0xff]
        %v1802 = vld [vmem:[%s1788 + $0x68] sm:$0xff]
        %v1803 = vld [vmem:[%s1788 + $0x70] sm:$0xff]
        %v1804 = vld [vmem:[%s1788 + $0x78] sm:$0xff]
        %1805 = vmatpush.msra.mxu0 %v1804
        %1806 = vmatpush.msra.mxu0 %v1803
        %1807 = vmatpush.msra.mxu0 %v1802
        %1808 = vmatpush.msra.mxu0 %v1801
        %1809 = vmatpush.msra.mxu0 %v1800
        %1810 = vmatpush.msra.mxu0 %v1799
        %1811 = vmatpush.msra.mxu0 %v1798
        %1812 = vmatpush.msra.mxu0 %v1797
        %1813 = vmatpush.msra.mxu0 %v1796
        %1814 = vmatpush.msra.mxu0 %v1795
        %1815 = vmatpush.msra.mxu0 %v1794
        %1816 = vmatpush.msra.mxu0 %v1793
        %1817 = vmatpush.msra.mxu0 %v1792
        %1818 = vmatpush.msra.mxu0 %v1791
        %1819 = vmatpush.msra.mxu0 %v1790
        %1820 = vmatpush.msra.mxu0 %v1789
        %1821 = vmatmul.f32.gmra.mxu0 %v1786
        %v1822 = vpop.f32.mrf.mxu0
        %v1823 = vadd.f32 0.0, %v1822
        %1824 = vdwg.mxu0
        %1825 = vmatpush.msra.mxu0 %v1767
        %1826 = vmatpush.msra.mxu0 %v1766
        %1827 = vmatpush.msra.mxu0 %v1765
        %1828 = vmatpush.msra.mxu0 %v1764
        %1829 = vmatpush.msra.mxu0 %v1763
        %1830 = vmatpush.msra.mxu0 %v1762
        %1831 = vmatpush.msra.mxu0 %v1761
        %1832 = vmatpush.msra.mxu0 %v1760
        %1833 = vmatpush.msra.mxu0 %v1759
        %1834 = vmatpush.msra.mxu0 %v1758
        %1835 = vmatpush.msra.mxu0 %v1757
        %1836 = vmatpush.msra.mxu0 %v1756
        %1837 = vmatpush.msra.mxu0 %v1755
        %1838 = vmatpush.msra.mxu0 %v1754
        %1839 = vmatpush.msra.mxu0 %v1753
        %1840 = vmatpush.msra.mxu0 %v1752
        %1841 = vmatmul.f32.gmra.mxu0 %v1749
        %v1842 = vpop.f32.mrf.mxu0
        %v1843 = vadd.f32 %v1823, %v1842
        %1844 = vdwg.mxu0
        %1845 = vmatpush.msra.mxu0 0.0
        %1846 = vmatpush.msra.mxu0 0.0
        %1847 = vmatpush.msra.mxu0 0.0
        %1848 = vmatpush.msra.mxu0 0.0
        %1849 = vmatpush.msra.mxu0 0.0
        %1850 = vmatpush.msra.mxu0 0.0
        %1851 = vmatpush.msra.mxu0 0.0
        %1852 = vmatpush.msra.mxu0 0.0
        %1853 = vmatpush.msra.mxu0 0.0
        %1854 = vmatpush.msra.mxu0 0.0
        %1855 = vmatpush.msra.mxu0 0.0
        %1856 = vmatpush.msra.mxu0 0.0
        %1857 = vmatpush.msra.mxu0 0.0
        %1858 = vmatpush.msra.mxu0 0.0
        %1859 = vmatpush.msra.mxu0 0.0
        %1860 = vmatpush.msra.mxu0 %v1729
        %1861 = vmatmul.f32.gmra.mxu0 %v1453
        %v1862 = vpop.f32.mrf.mxu0
        %v1863 = vadd.f32 0.0, %v1862
        %1864 = vdwg.mxu0
        %s1865 = scalar_lea.vmem %s11, 640
        %v1866 = vld [vmem:[%s1865] sm:$0xff]
        %v1867 = vld [vmem:[%s1865 + $0x8] sm:$0xff]
        %v1868 = vld [vmem:[%s1865 + $0x10] sm:$0xff]
        %v1869 = vld [vmem:[%s1865 + $0x18] sm:$0xff]
        %v1870 = vld [vmem:[%s1865 + $0x20] sm:$0xff]
        %v1871 = vld [vmem:[%s1865 + $0x28] sm:$0xff]
        %v1872 = vld [vmem:[%s1865 + $0x30] sm:$0xff]
        %v1873 = vld [vmem:[%s1865 + $0x38] sm:$0xff]
        %v1874 = vld [vmem:[%s1865 + $0x40] sm:$0xff]
        %v1875 = vld [vmem:[%s1865 + $0x48] sm:$0xff]
        %v1876 = vld [vmem:[%s1865 + $0x50] sm:$0xff]
        %v1877 = vld [vmem:[%s1865 + $0x58] sm:$0xff]
        %v1878 = vld [vmem:[%s1865 + $0x60] sm:$0xff]
        %v1879 = vld [vmem:[%s1865 + $0x68] sm:$0xff]
        %v1880 = vld [vmem:[%s1865 + $0x70] sm:$0xff]
        %v1881 = vld [vmem:[%s1865 + $0x78] sm:$0xff]
        %1882 = vmatpush.msra.mxu0 %v1881
        %1883 = vmatpush.msra.mxu0 %v1880
        %1884 = vmatpush.msra.mxu0 %v1879
        %1885 = vmatpush.msra.mxu0 %v1878
        %1886 = vmatpush.msra.mxu0 %v1877
        %1887 = vmatpush.msra.mxu0 %v1876
        %1888 = vmatpush.msra.mxu0 %v1875
        %1889 = vmatpush.msra.mxu0 %v1874
        %1890 = vmatpush.msra.mxu0 %v1873
        %1891 = vmatpush.msra.mxu0 %v1872
        %1892 = vmatpush.msra.mxu0 %v1871
        %1893 = vmatpush.msra.mxu0 %v1870
        %1894 = vmatpush.msra.mxu0 %v1869
        %1895 = vmatpush.msra.mxu0 %v1868
        %1896 = vmatpush.msra.mxu0 %v1867
        %1897 = vmatpush.msra.mxu0 %v1866
        %1898 = vmatmul.f32.gmra.mxu0 %v1863
        %v1899 = vpop.f32.mrf.mxu0
        %v1900 = vadd.f32 0.0, %v1899
        %1901 = vdwg.mxu0
        %v1902 = vadd.f32 %v1843, %v1900
        %v1903 = vmax.f32 %v1902, 0.0
        %s1904 = scalar_lea.vmem %s12, 64
        %v1905 = vld [vmem:[%s1904] sm:$0xff]
        %v1906 = vld [vmem:[%s1904 + $0x8] sm:$0xff]
        %v1907 = vld [vmem:[%s1904 + $0x10] sm:$0xff]
        %v1908 = vld [vmem:[%s1904 + $0x18] sm:$0xff]
        %v1909 = vld [vmem:[%s1904 + $0x20] sm:$0xff]
        %v1910 = vld [vmem:[%s1904 + $0x28] sm:$0xff]
        %v1911 = vld [vmem:[%s1904 + $0x30] sm:$0xff]
        %v1912 = vld [vmem:[%s1904 + $0x38] sm:$0xff]
        %v1914 = vsel %vm1702, %v1903, 0
        %1916 = vmatpush.msra.mxu0 0.0
        %1917 = vmatpush.msra.mxu0 0.0
        %1918 = vmatpush.msra.mxu0 0.0
        %1919 = vmatpush.msra.mxu0 0.0
        %1920 = vmatpush.msra.mxu0 0.0
        %1921 = vmatpush.msra.mxu0 0.0
        %1922 = vmatpush.msra.mxu0 0.0
        %1923 = vmatpush.msra.mxu0 0.0
        %1924 = vmatpush.msra.mxu0 %v1912
        %1925 = vmatpush.msra.mxu0 %v1911
        %1926 = vmatpush.msra.mxu0 %v1910
        %1927 = vmatpush.msra.mxu0 %v1909
        %1928 = vmatpush.msra.mxu0 %v1908
        %1929 = vmatpush.msra.mxu0 %v1907
        %1930 = vmatpush.msra.mxu0 %v1906
        %1931 = vmatpush.msra.mxu0 %v1905
        %1932 = vmatmul.f32.gmra.mxu0 %v1914
        %v1933 = vpop.f32.mrf.mxu0
        %v1934 = vadd.f32 0.0, %v1933
        %1935 = vdwg.mxu0
        %v1936 = vadd.f32 %v1726, %v1934
        %v1937 = vmax.f32 %v1936, 0.0
        %v1938 = vld [vmem:[%s13] sm:$0xff]
        %v1939 = vld [vmem:[%s13 + $0x8] sm:$0xff]
        %v1940 = vld [vmem:[%s13 + $0x10] sm:$0xff]
        %v1941 = vld [vmem:[%s13 + $0x18] sm:$0xff]
        %v1942 = vld [vmem:[%s13 + $0x20] sm:$0xff]
        %v1943 = vld [vmem:[%s13 + $0x28] sm:$0xff]
        %v1944 = vld [vmem:[%s13 + $0x30] sm:$0xff]
        %v1945 = vld [vmem:[%s13 + $0x38] sm:$0xff]
        %v1946 = vld [vmem:[%s13 + $0x40] sm:$0xff]
        %v1947 = vld [vmem:[%s13 + $0x48] sm:$0xff]
        %v1948 = vld [vmem:[%s13 + $0x50] sm:$0xff]
        %v1949 = vld [vmem:[%s13 + $0x58] sm:$0xff]
        %v1950 = vld [vmem:[%s13 + $0x60] sm:$0xff]
        %v1951 = vld [vmem:[%s13 + $0x68] sm:$0xff]
        %v1952 = vld [vmem:[%s13 + $0x70] sm:$0xff]
        %v1953 = vld [vmem:[%s13 + $0x78] sm:$0xff]
        %v1954 = vld [vmem:[%s14] sm:$0x1]
        %v1956 = vperm.slane %v1954, 0
        %1958 = vmatpush.msra.mxu0 %v1953
        %1959 = vmatpush.msra.mxu0 %v1952
        %1960 = vmatpush.msra.mxu0 %v1951
        %1961 = vmatpush.msra.mxu0 %v1950
        %1962 = vmatpush.msra.mxu0 %v1949
        %1963 = vmatpush.msra.mxu0 %v1948
        %1964 = vmatpush.msra.mxu0 %v1947
        %1965 = vmatpush.msra.mxu0 %v1946
        %1966 = vmatpush.msra.mxu0 %v1945
        %1967 = vmatpush.msra.mxu0 %v1944
        %1968 = vmatpush.msra.mxu0 %v1943
        %1969 = vmatpush.msra.mxu0 %v1942
        %1970 = vmatpush.msra.mxu0 %v1941
        %1971 = vmatpush.msra.mxu0 %v1940
        %1972 = vmatpush.msra.mxu0 %v1939
        %1973 = vmatpush.msra.mxu0 %v1938
        %1974 = vmatmul.f32.gmra.mxu0 %v1937
        %v1975 = vpop.f32.mrf.mxu0
        %v1976 = vadd.f32 %v1956, %v1975
        %1977 = vdwg.mxu0
        %v1978 = vld [vmem:[%s846] sm:$0xf]
        %v1979 = vmul.f32 %v1976, 0.5
        %v1980 = vmul.f32 %v1979, 1.442695
        %v1981 = vpow.pop %v1980
        %1983 = vrot.lane.b32.xlu0 %v1981, 96
        %v1984 = vpop.permute.xlu0 %1983
        %v1986 = vmul.f32 %v1978, %v1984
        %v1987 = vadd.f32 %v1976, %v1986
        %vm1988 = vcmask 257024
        %1989 = vst.msk [vmem:[%s850] sm:$0xf] %vm1988, %v1976
        %1991 = vrot.lane.b32.xlu0 %v1976, 96
        %v1992 = vpop.permute.xlu0 %1991
        %1994 = vst.msk [vmem:[%s854] sm:$0xf] %vm1988, %v1992
        %v1995 = vld [vmem:[%s8] sm:$0xf]
        %v1997 = vsel %vm1324, %v1995, 0
        %v2000 = vsel %vm1328, %v1987, 0
        %2002 = vmatpush.msra.mxu0 0.0
        %2003 = vmatpush.msra.mxu0 0.0
        %2004 = vmatpush.msra.mxu0 0.0
        %2005 = vmatpush.msra.mxu0 0.0
        %2006 = vmatpush.msra.mxu0 0.0
        %2007 = vmatpush.msra.mxu0 0.0
        %2008 = vmatpush.msra.mxu0 0.0
        %2009 = vmatpush.msra.mxu0 0.0
        %2010 = vmatpush.msra.mxu0 0.0
        %2011 = vmatpush.msra.mxu0 0.0
        %2012 = vmatpush.msra.mxu0 0.0
        %2013 = vmatpush.msra.mxu0 0.0
        %2014 = vmatpush.msra.mxu0 0.0
        %2015 = vmatpush.msra.mxu0 0.0
        %2016 = vmatpush.msra.mxu0 0.0
        %2017 = vmatpush.msra.mxu0 %v2000
        %2018 = vmatmul.f32.gmra.mxu0 %v1997
        %v2019 = vpop.f32.mrf.mxu0
        %v2020 = vadd.f32 0.0, %v2019
        %2021 = vdwg.mxu0
        %v2022 = vld [vmem:[%s15] sm:$0xff]
        %v2023 = vld [vmem:[%s15 + $0x8] sm:$0xff]
        %v2024 = vld [vmem:[%s15 + $0x10] sm:$0xff]
        %v2025 = vld [vmem:[%s15 + $0x18] sm:$0xff]
        %v2026 = vld [vmem:[%s1368] sm:$0xf]
        %v2028 = vsel %vm1324, %v2026, 0
        %2030 = vmatpush.msra.mxu0 0.0
        %2031 = vmatpush.msra.mxu0 0.0
        %2032 = vmatpush.msra.mxu0 0.0
        %2033 = vmatpush.msra.mxu0 0.0
        %2034 = vmatpush.msra.mxu0 0.0
        %2035 = vmatpush.msra.mxu0 0.0
        %2036 = vmatpush.msra.mxu0 0.0
        %2037 = vmatpush.msra.mxu0 0.0
        %2038 = vmatpush.msra.mxu0 0.0
        %2039 = vmatpush.msra.mxu0 0.0
        %2040 = vmatpush.msra.mxu0 0.0
        %2041 = vmatpush.msra.mxu0 0.0
        %2042 = vmatpush.msra.mxu0 0.0
        %2043 = vmatpush.msra.mxu0 0.0
        %2044 = vmatpush.msra.mxu0 0.0
        %2045 = vmatpush.msra.mxu0 %v2000
        %2046 = vmatmul.f32.gmra.mxu0 %v2028
        %v2047 = vpop.f32.mrf.mxu0
        %v2048 = vadd.f32 0.0, %v2047
        %2049 = vdwg.mxu0
        %s2050 = scalar_lea.vmem %s15, 32
        %v2051 = vld [vmem:[%s2050] sm:$0xff]
        %v2052 = vld [vmem:[%s2050 + $0x8] sm:$0xff]
        %v2053 = vld [vmem:[%s2050 + $0x10] sm:$0xff]
        %v2054 = vld [vmem:[%s2050 + $0x18] sm:$0xff]
        %vm2055 = vcmask 261120
        %v2057 = vsel %vm2055, %v2048, 0
        %2059 = vmatpush.msra.mxu0 0.0
        %2060 = vmatpush.msra.mxu0 0.0
        %2061 = vmatpush.msra.mxu0 0.0
        %2062 = vmatpush.msra.mxu0 0.0
        %2063 = vmatpush.msra.mxu0 0.0
        %2064 = vmatpush.msra.mxu0 0.0
        %2065 = vmatpush.msra.mxu0 0.0
        %2066 = vmatpush.msra.mxu0 0.0
        %2067 = vmatpush.msra.mxu0 0.0
        %2068 = vmatpush.msra.mxu0 0.0
        %2069 = vmatpush.msra.mxu0 0.0
        %2070 = vmatpush.msra.mxu0 0.0
        %2071 = vmatpush.msra.mxu0 %v2054
        %2072 = vmatpush.msra.mxu0 %v2053
        %2073 = vmatpush.msra.mxu0 %v2052
        %2074 = vmatpush.msra.mxu0 %v2051
        %2075 = vmatmul.f32.gmra.mxu0 %v2057
        %v2076 = vpop.f32.mrf.mxu0
        %v2077 = vadd.f32 0.0, %v2076
        %2078 = vdwg.mxu0
        %v2080 = vsel %vm2055, %v2020, 0
        %2082 = vmatpush.msra.mxu0 0.0
        %2083 = vmatpush.msra.mxu0 0.0
        %2084 = vmatpush.msra.mxu0 0.0
        %2085 = vmatpush.msra.mxu0 0.0
        %2086 = vmatpush.msra.mxu0 0.0
        %2087 = vmatpush.msra.mxu0 0.0
        %2088 = vmatpush.msra.mxu0 0.0
        %2089 = vmatpush.msra.mxu0 0.0
        %2090 = vmatpush.msra.mxu0 0.0
        %2091 = vmatpush.msra.mxu0 0.0
        %2092 = vmatpush.msra.mxu0 0.0
        %2093 = vmatpush.msra.mxu0 0.0
        %2094 = vmatpush.msra.mxu0 %v2025
        %2095 = vmatpush.msra.mxu0 %v2024
        %2096 = vmatpush.msra.mxu0 %v2023
        %2097 = vmatpush.msra.mxu0 %v2022
        %2098 = vmatmul.f32.gmra.mxu0 %v2080
        %v2099 = vpop.f32.mrf.mxu0
        %v2100 = vadd.f32 %v2077, %v2099
        %2101 = vdwg.mxu0
        %v2102 = vld [vmem:[%s1450] sm:$0xf]
        %v2104 = vsel %vm1324, %v2102, 0
        %2106 = vmatpush.msra.mxu0 0.0
        %2107 = vmatpush.msra.mxu0 0.0
        %2108 = vmatpush.msra.mxu0 0.0
        %2109 = vmatpush.msra.mxu0 0.0
        %2110 = vmatpush.msra.mxu0 0.0
        %2111 = vmatpush.msra.mxu0 0.0
        %2112 = vmatpush.msra.mxu0 0.0
        %2113 = vmatpush.msra.mxu0 0.0
        %2114 = vmatpush.msra.mxu0 0.0
        %2115 = vmatpush.msra.mxu0 0.0
        %2116 = vmatpush.msra.mxu0 0.0
        %2117 = vmatpush.msra.mxu0 0.0
        %2118 = vmatpush.msra.mxu0 0.0
        %2119 = vmatpush.msra.mxu0 0.0
        %2120 = vmatpush.msra.mxu0 0.0
        %2121 = vmatpush.msra.mxu0 %v2000
        %2122 = vmatmul.f32.gmra.mxu0 %v2104
        %v2123 = vpop.f32.mrf.mxu0
        %v2124 = vadd.f32 0.0, %v2123
        %2125 = vdwg.mxu0
        %s2126 = scalar_lea.vmem %s15, 64
        %v2127 = vld [vmem:[%s2126] sm:$0xff]
        %v2128 = vld [vmem:[%s2126 + $0x8] sm:$0xff]
        %v2129 = vld [vmem:[%s2126 + $0x10] sm:$0xff]
        %v2130 = vld [vmem:[%s2126 + $0x18] sm:$0xff]
        %v2132 = vsel %vm2055, %v2124, 0
        %2134 = vmatpush.msra.mxu0 0.0
        %2135 = vmatpush.msra.mxu0 0.0
        %2136 = vmatpush.msra.mxu0 0.0
        %2137 = vmatpush.msra.mxu0 0.0
        %2138 = vmatpush.msra.mxu0 0.0
        %2139 = vmatpush.msra.mxu0 0.0
        %2140 = vmatpush.msra.mxu0 0.0
        %2141 = vmatpush.msra.mxu0 0.0
        %2142 = vmatpush.msra.mxu0 0.0
        %2143 = vmatpush.msra.mxu0 0.0
        %2144 = vmatpush.msra.mxu0 0.0
        %2145 = vmatpush.msra.mxu0 0.0
        %2146 = vmatpush.msra.mxu0 %v2130
        %2147 = vmatpush.msra.mxu0 %v2129
        %2148 = vmatpush.msra.mxu0 %v2128
        %2149 = vmatpush.msra.mxu0 %v2127
        %2150 = vmatmul.f32.gmra.mxu0 %v2132
        %v2151 = vpop.f32.mrf.mxu0
        %v2152 = vadd.f32 0.0, %v2151
        %2153 = vdwg.mxu0
        %v2154 = vadd.f32 %v2100, %v2152
        %v2155 = vld [vmem:[%s16] sm:$0x1]
        %v2157 = vperm.slane %v2155, 0
        %v2159 = vadd.f32 %v2154, %v2157
        %v2160 = vmax.f32 %v2159, 0.0
        %v2162 = vsel %vm1328, %v2160, 0
        %2164 = vmatpush.msra.mxu0 0.0
        %2165 = vmatpush.msra.mxu0 0.0
        %2166 = vmatpush.msra.mxu0 0.0
        %2167 = vmatpush.msra.mxu0 0.0
        %2168 = vmatpush.msra.mxu0 0.0
        %2169 = vmatpush.msra.mxu0 0.0
        %2170 = vmatpush.msra.mxu0 0.0
        %2171 = vmatpush.msra.mxu0 0.0
        %2172 = vmatpush.msra.mxu0 0.0
        %2173 = vmatpush.msra.mxu0 0.0
        %2174 = vmatpush.msra.mxu0 0.0
        %2175 = vmatpush.msra.mxu0 0.0
        %2176 = vmatpush.msra.mxu0 0.0
        %2177 = vmatpush.msra.mxu0 0.0
        %2178 = vmatpush.msra.mxu0 0.0
        %2179 = vmatpush.msra.mxu0 %v2162
        %2180 = vmatmul.f32.gmra.mxu0 %v1997
        %v2181 = vpop.f32.mrf.mxu0
        %v2182 = vadd.f32 0.0, %v2181
        %2183 = vdwg.mxu0
        %v2184 = vld [vmem:[%s17] sm:$0xff]
        %v2185 = vld [vmem:[%s17 + $0x8] sm:$0xff]
        %v2186 = vld [vmem:[%s17 + $0x10] sm:$0xff]
        %v2187 = vld [vmem:[%s17 + $0x18] sm:$0xff]
        %v2188 = vld [vmem:[%s17 + $0x20] sm:$0xff]
        %v2189 = vld [vmem:[%s17 + $0x28] sm:$0xff]
        %v2190 = vld [vmem:[%s17 + $0x30] sm:$0xff]
        %v2191 = vld [vmem:[%s17 + $0x38] sm:$0xff]
        %v2192 = vld [vmem:[%s17 + $0x40] sm:$0xff]
        %v2193 = vld [vmem:[%s17 + $0x48] sm:$0xff]
        %v2194 = vld [vmem:[%s17 + $0x50] sm:$0xff]
        %v2195 = vld [vmem:[%s17 + $0x58] sm:$0xff]
        %v2196 = vld [vmem:[%s17 + $0x60] sm:$0xff]
        %v2197 = vld [vmem:[%s17 + $0x68] sm:$0xff]
        %v2198 = vld [vmem:[%s17 + $0x70] sm:$0xff]
        %v2199 = vld [vmem:[%s17 + $0x78] sm:$0xff]
        %2200 = vmatpush.msra.mxu0 0.0
        %2201 = vmatpush.msra.mxu0 0.0
        %2202 = vmatpush.msra.mxu0 0.0
        %2203 = vmatpush.msra.mxu0 0.0
        %2204 = vmatpush.msra.mxu0 0.0
        %2205 = vmatpush.msra.mxu0 0.0
        %2206 = vmatpush.msra.mxu0 0.0
        %2207 = vmatpush.msra.mxu0 0.0
        %2208 = vmatpush.msra.mxu0 0.0
        %2209 = vmatpush.msra.mxu0 0.0
        %2210 = vmatpush.msra.mxu0 0.0
        %2211 = vmatpush.msra.mxu0 0.0
        %2212 = vmatpush.msra.mxu0 0.0
        %2213 = vmatpush.msra.mxu0 0.0
        %2214 = vmatpush.msra.mxu0 0.0
        %2215 = vmatpush.msra.mxu0 %v2162
        %2216 = vmatmul.f32.gmra.mxu0 %v2028
        %v2217 = vpop.f32.mrf.mxu0
        %v2218 = vadd.f32 0.0, %v2217
        %2219 = vdwg.mxu0
        %s2220 = scalar_lea.vmem %s17, 128
        %v2221 = vld [vmem:[%s2220] sm:$0xff]
        %v2222 = vld [vmem:[%s2220 + $0x8] sm:$0xff]
        %v2223 = vld [vmem:[%s2220 + $0x10] sm:$0xff]
        %v2224 = vld [vmem:[%s2220 + $0x18] sm:$0xff]
        %v2225 = vld [vmem:[%s2220 + $0x20] sm:$0xff]
        %v2226 = vld [vmem:[%s2220 + $0x28] sm:$0xff]
        %v2227 = vld [vmem:[%s2220 + $0x30] sm:$0xff]
        %v2228 = vld [vmem:[%s2220 + $0x38] sm:$0xff]
        %v2229 = vld [vmem:[%s2220 + $0x40] sm:$0xff]
        %v2230 = vld [vmem:[%s2220 + $0x48] sm:$0xff]
        %v2231 = vld [vmem:[%s2220 + $0x50] sm:$0xff]
        %v2232 = vld [vmem:[%s2220 + $0x58] sm:$0xff]
        %v2233 = vld [vmem:[%s2220 + $0x60] sm:$0xff]
        %v2234 = vld [vmem:[%s2220 + $0x68] sm:$0xff]
        %v2235 = vld [vmem:[%s2220 + $0x70] sm:$0xff]
        %v2236 = vld [vmem:[%s2220 + $0x78] sm:$0xff]
        %2237 = vmatpush.msra.mxu0 %v2236
        %2238 = vmatpush.msra.mxu0 %v2235
        %2239 = vmatpush.msra.mxu0 %v2234
        %2240 = vmatpush.msra.mxu0 %v2233
        %2241 = vmatpush.msra.mxu0 %v2232
        %2242 = vmatpush.msra.mxu0 %v2231
        %2243 = vmatpush.msra.mxu0 %v2230
        %2244 = vmatpush.msra.mxu0 %v2229
        %2245 = vmatpush.msra.mxu0 %v2228
        %2246 = vmatpush.msra.mxu0 %v2227
        %2247 = vmatpush.msra.mxu0 %v2226
        %2248 = vmatpush.msra.mxu0 %v2225
        %2249 = vmatpush.msra.mxu0 %v2224
        %2250 = vmatpush.msra.mxu0 %v2223
        %2251 = vmatpush.msra.mxu0 %v2222
        %2252 = vmatpush.msra.mxu0 %v2221
        %2253 = vmatmul.f32.gmra.mxu0 %v2218
        %v2254 = vpop.f32.mrf.mxu0
        %v2255 = vadd.f32 0.0, %v2254
        %2256 = vdwg.mxu0
        %2257 = vmatpush.msra.mxu0 %v2199
        %2258 = vmatpush.msra.mxu0 %v2198
        %2259 = vmatpush.msra.mxu0 %v2197
        %2260 = vmatpush.msra.mxu0 %v2196
        %2261 = vmatpush.msra.mxu0 %v2195
        %2262 = vmatpush.msra.mxu0 %v2194
        %2263 = vmatpush.msra.mxu0 %v2193
        %2264 = vmatpush.msra.mxu0 %v2192
        %2265 = vmatpush.msra.mxu0 %v2191
        %2266 = vmatpush.msra.mxu0 %v2190
        %2267 = vmatpush.msra.mxu0 %v2189
        %2268 = vmatpush.msra.mxu0 %v2188
        %2269 = vmatpush.msra.mxu0 %v2187
        %2270 = vmatpush.msra.mxu0 %v2186
        %2271 = vmatpush.msra.mxu0 %v2185
        %2272 = vmatpush.msra.mxu0 %v2184
        %2273 = vmatmul.f32.gmra.mxu0 %v2182
        %v2274 = vpop.f32.mrf.mxu0
        %v2275 = vadd.f32 %v2255, %v2274
        %2276 = vdwg.mxu0
        %2277 = vmatpush.msra.mxu0 0.0
        %2278 = vmatpush.msra.mxu0 0.0
        %2279 = vmatpush.msra.mxu0 0.0
        %2280 = vmatpush.msra.mxu0 0.0
        %2281 = vmatpush.msra.mxu0 0.0
        %2282 = vmatpush.msra.mxu0 0.0
        %2283 = vmatpush.msra.mxu0 0.0
        %2284 = vmatpush.msra.mxu0 0.0
        %2285 = vmatpush.msra.mxu0 0.0
        %2286 = vmatpush.msra.mxu0 0.0
        %2287 = vmatpush.msra.mxu0 0.0
        %2288 = vmatpush.msra.mxu0 0.0
        %2289 = vmatpush.msra.mxu0 0.0
        %2290 = vmatpush.msra.mxu0 0.0
        %2291 = vmatpush.msra.mxu0 0.0
        %2292 = vmatpush.msra.mxu0 %v2162
        %2293 = vmatmul.f32.gmra.mxu0 %v2104
        %v2294 = vpop.f32.mrf.mxu0
        %v2295 = vadd.f32 0.0, %v2294
        %2296 = vdwg.mxu0
        %s2297 = scalar_lea.vmem %s17, 256
        %v2298 = vld [vmem:[%s2297] sm:$0xff]
        %v2299 = vld [vmem:[%s2297 + $0x8] sm:$0xff]
        %v2300 = vld [vmem:[%s2297 + $0x10] sm:$0xff]
        %v2301 = vld [vmem:[%s2297 + $0x18] sm:$0xff]
        %v2302 = vld [vmem:[%s2297 + $0x20] sm:$0xff]
        %v2303 = vld [vmem:[%s2297 + $0x28] sm:$0xff]
        %v2304 = vld [vmem:[%s2297 + $0x30] sm:$0xff]
        %v2305 = vld [vmem:[%s2297 + $0x38] sm:$0xff]
        %v2306 = vld [vmem:[%s2297 + $0x40] sm:$0xff]
        %v2307 = vld [vmem:[%s2297 + $0x48] sm:$0xff]
        %v2308 = vld [vmem:[%s2297 + $0x50] sm:$0xff]
        %v2309 = vld [vmem:[%s2297 + $0x58] sm:$0xff]
        %v2310 = vld [vmem:[%s2297 + $0x60] sm:$0xff]
        %v2311 = vld [vmem:[%s2297 + $0x68] sm:$0xff]
        %v2312 = vld [vmem:[%s2297 + $0x70] sm:$0xff]
        %v2313 = vld [vmem:[%s2297 + $0x78] sm:$0xff]
        %2314 = vmatpush.msra.mxu0 %v2313
        %2315 = vmatpush.msra.mxu0 %v2312
        %2316 = vmatpush.msra.mxu0 %v2311
        %2317 = vmatpush.msra.mxu0 %v2310
        %2318 = vmatpush.msra.mxu0 %v2309
        %2319 = vmatpush.msra.mxu0 %v2308
        %2320 = vmatpush.msra.mxu0 %v2307
        %2321 = vmatpush.msra.mxu0 %v2306
        %2322 = vmatpush.msra.mxu0 %v2305
        %2323 = vmatpush.msra.mxu0 %v2304
        %2324 = vmatpush.msra.mxu0 %v2303
        %2325 = vmatpush.msra.mxu0 %v2302
        %2326 = vmatpush.msra.mxu0 %v2301
        %2327 = vmatpush.msra.mxu0 %v2300
        %2328 = vmatpush.msra.mxu0 %v2299
        %2329 = vmatpush.msra.mxu0 %v2298
        %2330 = vmatmul.f32.gmra.mxu0 %v2295
        %v2331 = vpop.f32.mrf.mxu0
        %v2332 = vadd.f32 0.0, %v2331
        %2333 = vdwg.mxu0
        %v2334 = vadd.f32 %v2275, %v2332
        %v2335 = vmax.f32 %v2334, 0.0
        %v2336 = vld [vmem:[%s18] sm:$0xff]
        %v2337 = vld [vmem:[%s18 + $0x8] sm:$0xff]
        %v2338 = vld [vmem:[%s18 + $0x10] sm:$0xff]
        %v2339 = vld [vmem:[%s18 + $0x18] sm:$0xff]
        %v2340 = vld [vmem:[%s18 + $0x20] sm:$0xff]
        %v2341 = vld [vmem:[%s18 + $0x28] sm:$0xff]
        %v2342 = vld [vmem:[%s18 + $0x30] sm:$0xff]
        %v2343 = vld [vmem:[%s18 + $0x38] sm:$0xff]
        %v2345 = vsel %vm1702, %v2335, 0
        %2347 = vmatpush.msra.mxu0 0.0
        %2348 = vmatpush.msra.mxu0 0.0
        %2349 = vmatpush.msra.mxu0 0.0
        %2350 = vmatpush.msra.mxu0 0.0
        %2351 = vmatpush.msra.mxu0 0.0
        %2352 = vmatpush.msra.mxu0 0.0
        %2353 = vmatpush.msra.mxu0 0.0
        %2354 = vmatpush.msra.mxu0 0.0
        %2355 = vmatpush.msra.mxu0 %v2343
        %2356 = vmatpush.msra.mxu0 %v2342
        %2357 = vmatpush.msra.mxu0 %v2341
        %2358 = vmatpush.msra.mxu0 %v2340
        %2359 = vmatpush.msra.mxu0 %v2339
        %2360 = vmatpush.msra.mxu0 %v2338
        %2361 = vmatpush.msra.mxu0 %v2337
        %2362 = vmatpush.msra.mxu0 %v2336
        %2363 = vmatmul.f32.gmra.mxu0 %v2345
        %v2364 = vpop.f32.mrf.mxu0
        %v2365 = vadd.f32 0.0, %v2364
        %2366 = vdwg.mxu0
        %v2367 = vadd.f32 %v2159, %v2365
        %v2368 = vmax.f32 %v2367, 0.0
        %v2370 = vsel %vm1328, %v2368, 0
        %2372 = vmatpush.msra.mxu0 0.0
        %2373 = vmatpush.msra.mxu0 0.0
        %2374 = vmatpush.msra.mxu0 0.0
        %2375 = vmatpush.msra.mxu0 0.0
        %2376 = vmatpush.msra.mxu0 0.0
        %2377 = vmatpush.msra.mxu0 0.0
        %2378 = vmatpush.msra.mxu0 0.0
        %2379 = vmatpush.msra.mxu0 0.0
        %2380 = vmatpush.msra.mxu0 0.0
        %2381 = vmatpush.msra.mxu0 0.0
        %2382 = vmatpush.msra.mxu0 0.0
        %2383 = vmatpush.msra.mxu0 0.0
        %2384 = vmatpush.msra.mxu0 0.0
        %2385 = vmatpush.msra.mxu0 0.0
        %2386 = vmatpush.msra.mxu0 0.0
        %2387 = vmatpush.msra.mxu0 %v2370
        %2388 = vmatmul.f32.gmra.mxu0 %v1997
        %v2389 = vpop.f32.mrf.mxu0
        %v2390 = vadd.f32 0.0, %v2389
        %2391 = vdwg.mxu0
        %s2392 = scalar_lea.vmem %s17, 384
        %v2393 = vld [vmem:[%s2392] sm:$0xff]
        %v2394 = vld [vmem:[%s2392 + $0x8] sm:$0xff]
        %v2395 = vld [vmem:[%s2392 + $0x10] sm:$0xff]
        %v2396 = vld [vmem:[%s2392 + $0x18] sm:$0xff]
        %v2397 = vld [vmem:[%s2392 + $0x20] sm:$0xff]
        %v2398 = vld [vmem:[%s2392 + $0x28] sm:$0xff]
        %v2399 = vld [vmem:[%s2392 + $0x30] sm:$0xff]
        %v2400 = vld [vmem:[%s2392 + $0x38] sm:$0xff]
        %v2401 = vld [vmem:[%s2392 + $0x40] sm:$0xff]
        %v2402 = vld [vmem:[%s2392 + $0x48] sm:$0xff]
        %v2403 = vld [vmem:[%s2392 + $0x50] sm:$0xff]
        %v2404 = vld [vmem:[%s2392 + $0x58] sm:$0xff]
        %v2405 = vld [vmem:[%s2392 + $0x60] sm:$0xff]
        %v2406 = vld [vmem:[%s2392 + $0x68] sm:$0xff]
        %v2407 = vld [vmem:[%s2392 + $0x70] sm:$0xff]
        %v2408 = vld [vmem:[%s2392 + $0x78] sm:$0xff]
        %2409 = vmatpush.msra.mxu0 0.0
        %2410 = vmatpush.msra.mxu0 0.0
        %2411 = vmatpush.msra.mxu0 0.0
        %2412 = vmatpush.msra.mxu0 0.0
        %2413 = vmatpush.msra.mxu0 0.0
        %2414 = vmatpush.msra.mxu0 0.0
        %2415 = vmatpush.msra.mxu0 0.0
        %2416 = vmatpush.msra.mxu0 0.0
        %2417 = vmatpush.msra.mxu0 0.0
        %2418 = vmatpush.msra.mxu0 0.0
        %2419 = vmatpush.msra.mxu0 0.0
        %2420 = vmatpush.msra.mxu0 0.0
        %2421 = vmatpush.msra.mxu0 0.0
        %2422 = vmatpush.msra.mxu0 0.0
        %2423 = vmatpush.msra.mxu0 0.0
        %2424 = vmatpush.msra.mxu0 %v2370
        %2425 = vmatmul.f32.gmra.mxu0 %v2028
        %v2426 = vpop.f32.mrf.mxu0
        %v2427 = vadd.f32 0.0, %v2426
        %2428 = vdwg.mxu0
        %s2429 = scalar_lea.vmem %s17, 512
        %v2430 = vld [vmem:[%s2429] sm:$0xff]
        %v2431 = vld [vmem:[%s2429 + $0x8] sm:$0xff]
        %v2432 = vld [vmem:[%s2429 + $0x10] sm:$0xff]
        %v2433 = vld [vmem:[%s2429 + $0x18] sm:$0xff]
        %v2434 = vld [vmem:[%s2429 + $0x20] sm:$0xff]
        %v2435 = vld [vmem:[%s2429 + $0x28] sm:$0xff]
        %v2436 = vld [vmem:[%s2429 + $0x30] sm:$0xff]
        %v2437 = vld [vmem:[%s2429 + $0x38] sm:$0xff]
        %v2438 = vld [vmem:[%s2429 + $0x40] sm:$0xff]
        %v2439 = vld [vmem:[%s2429 + $0x48] sm:$0xff]
        %v2440 = vld [vmem:[%s2429 + $0x50] sm:$0xff]
        %v2441 = vld [vmem:[%s2429 + $0x58] sm:$0xff]
        %v2442 = vld [vmem:[%s2429 + $0x60] sm:$0xff]
        %v2443 = vld [vmem:[%s2429 + $0x68] sm:$0xff]
        %v2444 = vld [vmem:[%s2429 + $0x70] sm:$0xff]
        %v2445 = vld [vmem:[%s2429 + $0x78] sm:$0xff]
        %2446 = vmatpush.msra.mxu0 %v2445
        %2447 = vmatpush.msra.mxu0 %v2444
        %2448 = vmatpush.msra.mxu0 %v2443
        %2449 = vmatpush.msra.mxu0 %v2442
        %2450 = vmatpush.msra.mxu0 %v2441
        %2451 = vmatpush.msra.mxu0 %v2440
        %2452 = vmatpush.msra.mxu0 %v2439
        %2453 = vmatpush.msra.mxu0 %v2438
        %2454 = vmatpush.msra.mxu0 %v2437
        %2455 = vmatpush.msra.mxu0 %v2436
        %2456 = vmatpush.msra.mxu0 %v2435
        %2457 = vmatpush.msra.mxu0 %v2434
        %2458 = vmatpush.msra.mxu0 %v2433
        %2459 = vmatpush.msra.mxu0 %v2432
        %2460 = vmatpush.msra.mxu0 %v2431
        %2461 = vmatpush.msra.mxu0 %v2430
        %2462 = vmatmul.f32.gmra.mxu0 %v2427
        %v2463 = vpop.f32.mrf.mxu0
        %v2464 = vadd.f32 0.0, %v2463
        %2465 = vdwg.mxu0
        %2466 = vmatpush.msra.mxu0 %v2408
        %2467 = vmatpush.msra.mxu0 %v2407
        %2468 = vmatpush.msra.mxu0 %v2406
        %2469 = vmatpush.msra.mxu0 %v2405
        %2470 = vmatpush.msra.mxu0 %v2404
        %2471 = vmatpush.msra.mxu0 %v2403
        %2472 = vmatpush.msra.mxu0 %v2402
        %2473 = vmatpush.msra.mxu0 %v2401
        %2474 = vmatpush.msra.mxu0 %v2400
        %2475 = vmatpush.msra.mxu0 %v2399
        %2476 = vmatpush.msra.mxu0 %v2398
        %2477 = vmatpush.msra.mxu0 %v2397
        %2478 = vmatpush.msra.mxu0 %v2396
        %2479 = vmatpush.msra.mxu0 %v2395
        %2480 = vmatpush.msra.mxu0 %v2394
        %2481 = vmatpush.msra.mxu0 %v2393
        %2482 = vmatmul.f32.gmra.mxu0 %v2390
        %v2483 = vpop.f32.mrf.mxu0
        %v2484 = vadd.f32 %v2464, %v2483
        %2485 = vdwg.mxu0
        %2486 = vmatpush.msra.mxu0 0.0
        %2487 = vmatpush.msra.mxu0 0.0
        %2488 = vmatpush.msra.mxu0 0.0
        %2489 = vmatpush.msra.mxu0 0.0
        %2490 = vmatpush.msra.mxu0 0.0
        %2491 = vmatpush.msra.mxu0 0.0
        %2492 = vmatpush.msra.mxu0 0.0
        %2493 = vmatpush.msra.mxu0 0.0
        %2494 = vmatpush.msra.mxu0 0.0
        %2495 = vmatpush.msra.mxu0 0.0
        %2496 = vmatpush.msra.mxu0 0.0
        %2497 = vmatpush.msra.mxu0 0.0
        %2498 = vmatpush.msra.mxu0 0.0
        %2499 = vmatpush.msra.mxu0 0.0
        %2500 = vmatpush.msra.mxu0 0.0
        %2501 = vmatpush.msra.mxu0 %v2370
        %2502 = vmatmul.f32.gmra.mxu0 %v2104
        %v2503 = vpop.f32.mrf.mxu0
        %v2504 = vadd.f32 0.0, %v2503
        %2505 = vdwg.mxu0
        %s2506 = scalar_lea.vmem %s17, 640
        %v2507 = vld [vmem:[%s2506] sm:$0xff]
        %v2508 = vld [vmem:[%s2506 + $0x8] sm:$0xff]
        %v2509 = vld [vmem:[%s2506 + $0x10] sm:$0xff]
        %v2510 = vld [vmem:[%s2506 + $0x18] sm:$0xff]
        %v2511 = vld [vmem:[%s2506 + $0x20] sm:$0xff]
        %v2512 = vld [vmem:[%s2506 + $0x28] sm:$0xff]
        %v2513 = vld [vmem:[%s2506 + $0x30] sm:$0xff]
        %v2514 = vld [vmem:[%s2506 + $0x38] sm:$0xff]
        %v2515 = vld [vmem:[%s2506 + $0x40] sm:$0xff]
        %v2516 = vld [vmem:[%s2506 + $0x48] sm:$0xff]
        %v2517 = vld [vmem:[%s2506 + $0x50] sm:$0xff]
        %v2518 = vld [vmem:[%s2506 + $0x58] sm:$0xff]
        %v2519 = vld [vmem:[%s2506 + $0x60] sm:$0xff]
        %v2520 = vld [vmem:[%s2506 + $0x68] sm:$0xff]
        %v2521 = vld [vmem:[%s2506 + $0x70] sm:$0xff]
        %v2522 = vld [vmem:[%s2506 + $0x78] sm:$0xff]
        %2523 = vmatpush.msra.mxu0 %v2522
        %2524 = vmatpush.msra.mxu0 %v2521
        %2525 = vmatpush.msra.mxu0 %v2520
        %2526 = vmatpush.msra.mxu0 %v2519
        %2527 = vmatpush.msra.mxu0 %v2518
        %2528 = vmatpush.msra.mxu0 %v2517
        %2529 = vmatpush.msra.mxu0 %v2516
        %2530 = vmatpush.msra.mxu0 %v2515
        %2531 = vmatpush.msra.mxu0 %v2514
        %2532 = vmatpush.msra.mxu0 %v2513
        %2533 = vmatpush.msra.mxu0 %v2512
        %2534 = vmatpush.msra.mxu0 %v2511
        %2535 = vmatpush.msra.mxu0 %v2510
        %2536 = vmatpush.msra.mxu0 %v2509
        %2537 = vmatpush.msra.mxu0 %v2508
        %2538 = vmatpush.msra.mxu0 %v2507
        %2539 = vmatmul.f32.gmra.mxu0 %v2504
        %v2540 = vpop.f32.mrf.mxu0
        %v2541 = vadd.f32 0.0, %v2540
        %2542 = vdwg.mxu0
        %v2543 = vadd.f32 %v2484, %v2541
        %v2544 = vmax.f32 %v2543, 0.0
        %s2545 = scalar_lea.vmem %s18, 64
        %v2546 = vld [vmem:[%s2545] sm:$0xff]
        %v2547 = vld [vmem:[%s2545 + $0x8] sm:$0xff]
        %v2548 = vld [vmem:[%s2545 + $0x10] sm:$0xff]
        %v2549 = vld [vmem:[%s2545 + $0x18] sm:$0xff]
        %v2550 = vld [vmem:[%s2545 + $0x20] sm:$0xff]
        %v2551 = vld [vmem:[%s2545 + $0x28] sm:$0xff]
        %v2552 = vld [vmem:[%s2545 + $0x30] sm:$0xff]
        %v2553 = vld [vmem:[%s2545 + $0x38] sm:$0xff]
        %v2555 = vsel %vm1702, %v2544, 0
        %2557 = vmatpush.msra.mxu0 0.0
        %2558 = vmatpush.msra.mxu0 0.0
        %2559 = vmatpush.msra.mxu0 0.0
        %2560 = vmatpush.msra.mxu0 0.0
        %2561 = vmatpush.msra.mxu0 0.0
        %2562 = vmatpush.msra.mxu0 0.0
        %2563 = vmatpush.msra.mxu0 0.0
        %2564 = vmatpush.msra.mxu0 0.0
        %2565 = vmatpush.msra.mxu0 %v2553
        %2566 = vmatpush.msra.mxu0 %v2552
        %2567 = vmatpush.msra.mxu0 %v2551
        %2568 = vmatpush.msra.mxu0 %v2550
        %2569 = vmatpush.msra.mxu0 %v2549
        %2570 = vmatpush.msra.mxu0 %v2548
        %2571 = vmatpush.msra.mxu0 %v2547
        %2572 = vmatpush.msra.mxu0 %v2546
        %2573 = vmatmul.f32.gmra.mxu0 %v2555
        %v2574 = vpop.f32.mrf.mxu0
        %v2575 = vadd.f32 0.0, %v2574
        %2576 = vdwg.mxu0
        %v2577 = vadd.f32 %v2367, %v2575
        %v2578 = vmax.f32 %v2577, 0.0
        %v2579 = vld [vmem:[%s19] sm:$0xff]
        %v2581 = vsel %vm1324, %v2579, 0
        %v2584 = vsel %vm1328, %v2578, 0
        %2586 = vmatpush.msra.mxu0 0.0
        %2587 = vmatpush.msra.mxu0 0.0
        %2588 = vmatpush.msra.mxu0 0.0
        %2589 = vmatpush.msra.mxu0 0.0
        %2590 = vmatpush.msra.mxu0 0.0
        %2591 = vmatpush.msra.mxu0 0.0
        %2592 = vmatpush.msra.mxu0 0.0
        %2593 = vmatpush.msra.mxu0 0.0
        %2594 = vmatpush.msra.mxu0 0.0
        %2595 = vmatpush.msra.mxu0 0.0
        %2596 = vmatpush.msra.mxu0 0.0
        %2597 = vmatpush.msra.mxu0 0.0
        %2598 = vmatpush.msra.mxu0 0.0
        %2599 = vmatpush.msra.mxu0 0.0
        %2600 = vmatpush.msra.mxu0 0.0
        %2601 = vmatpush.msra.mxu0 %v2584
        %2602 = vmatmul.f32.gmra.mxu0 %v2581
        %v2603 = vpop.f32.mrf.mxu0
        %v2604 = vadd.f32 0.0, %v2603
        %2605 = vdwg.mxu0
        %v2606 = vld [vmem:[%s20] sm:$0xff]
        %v2607 = vld [vmem:[%s20 + $0x8] sm:$0xff]
        %v2608 = vld [vmem:[%s20 + $0x10] sm:$0xff]
        %v2609 = vld [vmem:[%s20 + $0x18] sm:$0xff]
        %v2610 = vld [vmem:[%s20 + $0x20] sm:$0xff]
        %v2611 = vld [vmem:[%s20 + $0x28] sm:$0xff]
        %v2612 = vld [vmem:[%s20 + $0x30] sm:$0xff]
        %v2613 = vld [vmem:[%s20 + $0x38] sm:$0xff]
        %v2614 = vld [vmem:[%s20 + $0x40] sm:$0xff]
        %v2615 = vld [vmem:[%s20 + $0x48] sm:$0xff]
        %v2616 = vld [vmem:[%s20 + $0x50] sm:$0xff]
        %v2617 = vld [vmem:[%s20 + $0x58] sm:$0xff]
        %v2618 = vld [vmem:[%s20 + $0x60] sm:$0xff]
        %v2619 = vld [vmem:[%s20 + $0x68] sm:$0xff]
        %v2620 = vld [vmem:[%s20 + $0x70] sm:$0xff]
        %v2621 = vld [vmem:[%s20 + $0x78] sm:$0xff]
        %s2622 = scalar_lea.vmem %s19, 8
        %v2623 = vld [vmem:[%s2622] sm:$0xff]
        %v2625 = vsel %vm1324, %v2623, 0
        %2627 = vmatpush.msra.mxu0 0.0
        %2628 = vmatpush.msra.mxu0 0.0
        %2629 = vmatpush.msra.mxu0 0.0
        %2630 = vmatpush.msra.mxu0 0.0
        %2631 = vmatpush.msra.mxu0 0.0
        %2632 = vmatpush.msra.mxu0 0.0
        %2633 = vmatpush.msra.mxu0 0.0
        %2634 = vmatpush.msra.mxu0 0.0
        %2635 = vmatpush.msra.mxu0 0.0
        %2636 = vmatpush.msra.mxu0 0.0
        %2637 = vmatpush.msra.mxu0 0.0
        %2638 = vmatpush.msra.mxu0 0.0
        %2639 = vmatpush.msra.mxu0 0.0
        %2640 = vmatpush.msra.mxu0 0.0
        %2641 = vmatpush.msra.mxu0 0.0
        %2642 = vmatpush.msra.mxu0 %v2584
        %2643 = vmatmul.f32.gmra.mxu0 %v2625
        %v2644 = vpop.f32.mrf.mxu0
        %v2645 = vadd.f32 0.0, %v2644
        %2646 = vdwg.mxu0
        %s2647 = scalar_lea.vmem %s20, 128
        %v2648 = vld [vmem:[%s2647] sm:$0xff]
        %v2649 = vld [vmem:[%s2647 + $0x8] sm:$0xff]
        %v2650 = vld [vmem:[%s2647 + $0x10] sm:$0xff]
        %v2651 = vld [vmem:[%s2647 + $0x18] sm:$0xff]
        %v2652 = vld [vmem:[%s2647 + $0x20] sm:$0xff]
        %v2653 = vld [vmem:[%s2647 + $0x28] sm:$0xff]
        %v2654 = vld [vmem:[%s2647 + $0x30] sm:$0xff]
        %v2655 = vld [vmem:[%s2647 + $0x38] sm:$0xff]
        %v2656 = vld [vmem:[%s2647 + $0x40] sm:$0xff]
        %v2657 = vld [vmem:[%s2647 + $0x48] sm:$0xff]
        %v2658 = vld [vmem:[%s2647 + $0x50] sm:$0xff]
        %v2659 = vld [vmem:[%s2647 + $0x58] sm:$0xff]
        %v2660 = vld [vmem:[%s2647 + $0x60] sm:$0xff]
        %v2661 = vld [vmem:[%s2647 + $0x68] sm:$0xff]
        %v2662 = vld [vmem:[%s2647 + $0x70] sm:$0xff]
        %v2663 = vld [vmem:[%s2647 + $0x78] sm:$0xff]
        %2664 = vmatpush.msra.mxu0 %v2663
        %2665 = vmatpush.msra.mxu0 %v2662
        %2666 = vmatpush.msra.mxu0 %v2661
        %2667 = vmatpush.msra.mxu0 %v2660
        %2668 = vmatpush.msra.mxu0 %v2659
        %2669 = vmatpush.msra.mxu0 %v2658
        %2670 = vmatpush.msra.mxu0 %v2657
        %2671 = vmatpush.msra.mxu0 %v2656
        %2672 = vmatpush.msra.mxu0 %v2655
        %2673 = vmatpush.msra.mxu0 %v2654
        %2674 = vmatpush.msra.mxu0 %v2653
        %2675 = vmatpush.msra.mxu0 %v2652
        %2676 = vmatpush.msra.mxu0 %v2651
        %2677 = vmatpush.msra.mxu0 %v2650
        %2678 = vmatpush.msra.mxu0 %v2649
        %2679 = vmatpush.msra.mxu0 %v2648
        %2680 = vmatmul.f32.gmra.mxu0 %v2645
        %v2681 = vpop.f32.mrf.mxu0
        %v2682 = vadd.f32 0.0, %v2681
        %2683 = vdwg.mxu0
        %2684 = vmatpush.msra.mxu0 %v2621
        %2685 = vmatpush.msra.mxu0 %v2620
        %2686 = vmatpush.msra.mxu0 %v2619
        %2687 = vmatpush.msra.mxu0 %v2618
        %2688 = vmatpush.msra.mxu0 %v2617
        %2689 = vmatpush.msra.mxu0 %v2616
        %2690 = vmatpush.msra.mxu0 %v2615
        %2691 = vmatpush.msra.mxu0 %v2614
        %2692 = vmatpush.msra.mxu0 %v2613
        %2693 = vmatpush.msra.mxu0 %v2612
        %2694 = vmatpush.msra.mxu0 %v2611
        %2695 = vmatpush.msra.mxu0 %v2610
        %2696 = vmatpush.msra.mxu0 %v2609
        %2697 = vmatpush.msra.mxu0 %v2608
        %2698 = vmatpush.msra.mxu0 %v2607
        %2699 = vmatpush.msra.mxu0 %v2606
        %2700 = vmatmul.f32.gmra.mxu0 %v2604
        %v2701 = vpop.f32.mrf.mxu0
        %v2702 = vadd.f32 %v2682, %v2701
        %2703 = vdwg.mxu0
        %s2704 = scalar_lea.vmem %s19, 16
        %v2705 = vld [vmem:[%s2704] sm:$0xff]
        %v2707 = vsel %vm1324, %v2705, 0
        %2709 = vmatpush.msra.mxu0 0.0
        %2710 = vmatpush.msra.mxu0 0.0
        %2711 = vmatpush.msra.mxu0 0.0
        %2712 = vmatpush.msra.mxu0 0.0
        %2713 = vmatpush.msra.mxu0 0.0
        %2714 = vmatpush.msra.mxu0 0.0
        %2715 = vmatpush.msra.mxu0 0.0
        %2716 = vmatpush.msra.mxu0 0.0
        %2717 = vmatpush.msra.mxu0 0.0
        %2718 = vmatpush.msra.mxu0 0.0
        %2719 = vmatpush.msra.mxu0 0.0
        %2720 = vmatpush.msra.mxu0 0.0
        %2721 = vmatpush.msra.mxu0 0.0
        %2722 = vmatpush.msra.mxu0 0.0
        %2723 = vmatpush.msra.mxu0 0.0
        %2724 = vmatpush.msra.mxu0 %v2584
        %2725 = vmatmul.f32.gmra.mxu0 %v2707
        %v2726 = vpop.f32.mrf.mxu0
        %v2727 = vadd.f32 0.0, %v2726
        %2728 = vdwg.mxu0
        %s2729 = scalar_lea.vmem %s20, 256
        %v2730 = vld [vmem:[%s2729] sm:$0xff]
        %v2731 = vld [vmem:[%s2729 + $0x8] sm:$0xff]
        %v2732 = vld [vmem:[%s2729 + $0x10] sm:$0xff]
        %v2733 = vld [vmem:[%s2729 + $0x18] sm:$0xff]
        %v2734 = vld [vmem:[%s2729 + $0x20] sm:$0xff]
        %v2735 = vld [vmem:[%s2729 + $0x28] sm:$0xff]
        %v2736 = vld [vmem:[%s2729 + $0x30] sm:$0xff]
        %v2737 = vld [vmem:[%s2729 + $0x38] sm:$0xff]
        %v2738 = vld [vmem:[%s2729 + $0x40] sm:$0xff]
        %v2739 = vld [vmem:[%s2729 + $0x48] sm:$0xff]
        %v2740 = vld [vmem:[%s2729 + $0x50] sm:$0xff]
        %v2741 = vld [vmem:[%s2729 + $0x58] sm:$0xff]
        %v2742 = vld [vmem:[%s2729 + $0x60] sm:$0xff]
        %v2743 = vld [vmem:[%s2729 + $0x68] sm:$0xff]
        %v2744 = vld [vmem:[%s2729 + $0x70] sm:$0xff]
        %v2745 = vld [vmem:[%s2729 + $0x78] sm:$0xff]
        %2746 = vmatpush.msra.mxu0 %v2745
        %2747 = vmatpush.msra.mxu0 %v2744
        %2748 = vmatpush.msra.mxu0 %v2743
        %2749 = vmatpush.msra.mxu0 %v2742
        %2750 = vmatpush.msra.mxu0 %v2741
        %2751 = vmatpush.msra.mxu0 %v2740
        %2752 = vmatpush.msra.mxu0 %v2739
        %2753 = vmatpush.msra.mxu0 %v2738
        %2754 = vmatpush.msra.mxu0 %v2737
        %2755 = vmatpush.msra.mxu0 %v2736
        %2756 = vmatpush.msra.mxu0 %v2735
        %2757 = vmatpush.msra.mxu0 %v2734
        %2758 = vmatpush.msra.mxu0 %v2733
        %2759 = vmatpush.msra.mxu0 %v2732
        %2760 = vmatpush.msra.mxu0 %v2731
        %2761 = vmatpush.msra.mxu0 %v2730
        %2762 = vmatmul.f32.gmra.mxu0 %v2727
        %v2763 = vpop.f32.mrf.mxu0
        %v2764 = vadd.f32 0.0, %v2763
        %2765 = vdwg.mxu0
        %v2766 = vadd.f32 %v2702, %v2764
        %s2767 = scalar_lea.vmem %s19, 24
        %v2768 = vld [vmem:[%s2767] sm:$0xff]
        %v2770 = vsel %vm1324, %v2768, 0
        %2772 = vmatpush.msra.mxu0 0.0
        %2773 = vmatpush.msra.mxu0 0.0
        %2774 = vmatpush.msra.mxu0 0.0
        %2775 = vmatpush.msra.mxu0 0.0
        %2776 = vmatpush.msra.mxu0 0.0
        %2777 = vmatpush.msra.mxu0 0.0
        %2778 = vmatpush.msra.mxu0 0.0
        %2779 = vmatpush.msra.mxu0 0.0
        %2780 = vmatpush.msra.mxu0 0.0
        %2781 = vmatpush.msra.mxu0 0.0
        %2782 = vmatpush.msra.mxu0 0.0
        %2783 = vmatpush.msra.mxu0 0.0
        %2784 = vmatpush.msra.mxu0 0.0
        %2785 = vmatpush.msra.mxu0 0.0
        %2786 = vmatpush.msra.mxu0 0.0
        %2787 = vmatpush.msra.mxu0 %v2584
        %2788 = vmatmul.f32.gmra.mxu0 %v2770
        %v2789 = vpop.f32.mrf.mxu0
        %v2790 = vadd.f32 0.0, %v2789
        %2791 = vdwg.mxu0
        %s2792 = scalar_lea.vmem %s20, 384
        %v2793 = vld [vmem:[%s2792] sm:$0xff]
        %v2794 = vld [vmem:[%s2792 + $0x8] sm:$0xff]
        %v2795 = vld [vmem:[%s2792 + $0x10] sm:$0xff]
        %v2796 = vld [vmem:[%s2792 + $0x18] sm:$0xff]
        %v2797 = vld [vmem:[%s2792 + $0x20] sm:$0xff]
        %v2798 = vld [vmem:[%s2792 + $0x28] sm:$0xff]
        %v2799 = vld [vmem:[%s2792 + $0x30] sm:$0xff]
        %v2800 = vld [vmem:[%s2792 + $0x38] sm:$0xff]
        %v2801 = vld [vmem:[%s2792 + $0x40] sm:$0xff]
        %v2802 = vld [vmem:[%s2792 + $0x48] sm:$0xff]
        %v2803 = vld [vmem:[%s2792 + $0x50] sm:$0xff]
        %v2804 = vld [vmem:[%s2792 + $0x58] sm:$0xff]
        %v2805 = vld [vmem:[%s2792 + $0x60] sm:$0xff]
        %v2806 = vld [vmem:[%s2792 + $0x68] sm:$0xff]
        %v2807 = vld [vmem:[%s2792 + $0x70] sm:$0xff]
        %v2808 = vld [vmem:[%s2792 + $0x78] sm:$0xff]
        %2809 = vmatpush.msra.mxu0 %v2808
        %2810 = vmatpush.msra.mxu0 %v2807
        %2811 = vmatpush.msra.mxu0 %v2806
        %2812 = vmatpush.msra.mxu0 %v2805
        %2813 = vmatpush.msra.mxu0 %v2804
        %2814 = vmatpush.msra.mxu0 %v2803
        %2815 = vmatpush.msra.mxu0 %v2802
        %2816 = vmatpush.msra.mxu0 %v2801
        %2817 = vmatpush.msra.mxu0 %v2800
        %2818 = vmatpush.msra.mxu0 %v2799
        %2819 = vmatpush.msra.mxu0 %v2798
        %2820 = vmatpush.msra.mxu0 %v2797
        %2821 = vmatpush.msra.mxu0 %v2796
        %2822 = vmatpush.msra.mxu0 %v2795
        %2823 = vmatpush.msra.mxu0 %v2794
        %2824 = vmatpush.msra.mxu0 %v2793
        %2825 = vmatmul.f32.gmra.mxu0 %v2790
        %v2826 = vpop.f32.mrf.mxu0
        %v2827 = vadd.f32 0.0, %v2826
        %2828 = vdwg.mxu0
        %v2829 = vadd.f32 %v2766, %v2827
        %v2830 = vld [vmem:[%s21] sm:$0x1]
        %v2832 = vperm.slane %v2830, 0
        %v2834 = vadd.f32 %v2829, %v2832
        %v2835 = vmax.f32 %v2834, 0.0
        %v2836 = vld [vmem:[%s22] sm:$0xff]
        %v2837 = vld [vmem:[%s22 + $0x8] sm:$0xff]
        %v2839 = vsel %vm1069, %v2836, 0
        %v2842 = vsel %vm1069, %v2837, 0
        %2844 = vmatpush.msra.mxu0 0.0
        %2845 = vmatpush.msra.mxu0 0.0
        %2846 = vmatpush.msra.mxu0 0.0
        %2847 = vmatpush.msra.mxu0 0.0
        %2848 = vmatpush.msra.mxu0 0.0
        %2849 = vmatpush.msra.mxu0 0.0
        %2850 = vmatpush.msra.mxu0 0.0
        %2851 = vmatpush.msra.mxu0 0.0
        %2852 = vmatpush.msra.mxu0 0.0
        %2853 = vmatpush.msra.mxu0 0.0
        %2854 = vmatpush.msra.mxu0 0.0
        %2855 = vmatpush.msra.mxu0 0.0
        %2856 = vmatpush.msra.mxu0 0.0
        %2857 = vmatpush.msra.mxu0 0.0
        %2858 = vmatpush.msra.mxu0 0.0
        %2859 = vmatpush.msra.mxu0 %v2835
        %2860 = vmatmul.f32.gmra.mxu0 %v2839
        %v2861 = vpop.f32.mrf.mxu0
        %v2862 = vadd.f32 0.0, %v2861
        %2863 = vmatmul.f32.gmra.mxu0 %v2842
        %v2864 = vpop.f32.mrf.mxu0
        %v2865 = vadd.f32 0.0, %v2864
        %2866 = vdwg.mxu0
        %v2867 = vld [vmem:[%s23] sm:$0xff]
        %v2868 = vld [vmem:[%s23 + $0x8] sm:$0xff]
        %v2869 = vld [vmem:[%s23 + $0x10] sm:$0xff]
        %v2870 = vld [vmem:[%s23 + $0x18] sm:$0xff]
        %v2871 = vld [vmem:[%s23 + $0x20] sm:$0xff]
        %v2872 = vld [vmem:[%s23 + $0x28] sm:$0xff]
        %v2873 = vld [vmem:[%s23 + $0x30] sm:$0xff]
        %v2874 = vld [vmem:[%s23 + $0x38] sm:$0xff]
        %v2875 = vld [vmem:[%s23 + $0x40] sm:$0xff]
        %v2876 = vld [vmem:[%s23 + $0x48] sm:$0xff]
        %v2877 = vld [vmem:[%s23 + $0x50] sm:$0xff]
        %v2878 = vld [vmem:[%s23 + $0x58] sm:$0xff]
        %v2879 = vld [vmem:[%s23 + $0x60] sm:$0xff]
        %v2880 = vld [vmem:[%s23 + $0x68] sm:$0xff]
        %v2881 = vld [vmem:[%s23 + $0x70] sm:$0xff]
        %v2882 = vld [vmem:[%s23 + $0x78] sm:$0xff]
        %s2883 = scalar_lea.vmem %s22, 16
        %v2884 = vld [vmem:[%s2883] sm:$0xff]
        %v2885 = vld [vmem:[%s2883 + $0x8] sm:$0xff]
        %v2887 = vsel %vm1069, %v2884, 0
        %v2890 = vsel %vm1069, %v2885, 0
        %2892 = vmatpush.msra.mxu0 0.0
        %2893 = vmatpush.msra.mxu0 0.0
        %2894 = vmatpush.msra.mxu0 0.0
        %2895 = vmatpush.msra.mxu0 0.0
        %2896 = vmatpush.msra.mxu0 0.0
        %2897 = vmatpush.msra.mxu0 0.0
        %2898 = vmatpush.msra.mxu0 0.0
        %2899 = vmatpush.msra.mxu0 0.0
        %2900 = vmatpush.msra.mxu0 0.0
        %2901 = vmatpush.msra.mxu0 0.0
        %2902 = vmatpush.msra.mxu0 0.0
        %2903 = vmatpush.msra.mxu0 0.0
        %2904 = vmatpush.msra.mxu0 0.0
        %2905 = vmatpush.msra.mxu0 0.0
        %2906 = vmatpush.msra.mxu0 0.0
        %2907 = vmatpush.msra.mxu0 %v2835
        %2908 = vmatmul.f32.gmra.mxu0 %v2887
        %v2909 = vpop.f32.mrf.mxu0
        %v2910 = vadd.f32 0.0, %v2909
        %2911 = vmatmul.f32.gmra.mxu0 %v2890
        %v2912 = vpop.f32.mrf.mxu0
        %v2913 = vadd.f32 0.0, %v2912
        %2914 = vdwg.mxu0
        %s2915 = scalar_lea.vmem %s23, 128
        %v2916 = vld [vmem:[%s2915] sm:$0xff]
        %v2917 = vld [vmem:[%s2915 + $0x8] sm:$0xff]
        %v2918 = vld [vmem:[%s2915 + $0x10] sm:$0xff]
        %v2919 = vld [vmem:[%s2915 + $0x18] sm:$0xff]
        %v2920 = vld [vmem:[%s2915 + $0x20] sm:$0xff]
        %v2921 = vld [vmem:[%s2915 + $0x28] sm:$0xff]
        %v2922 = vld [vmem:[%s2915 + $0x30] sm:$0xff]
        %v2923 = vld [vmem:[%s2915 + $0x38] sm:$0xff]
        %v2924 = vld [vmem:[%s2915 + $0x40] sm:$0xff]
        %v2925 = vld [vmem:[%s2915 + $0x48] sm:$0xff]
        %v2926 = vld [vmem:[%s2915 + $0x50] sm:$0xff]
        %v2927 = vld [vmem:[%s2915 + $0x58] sm:$0xff]
        %v2928 = vld [vmem:[%s2915 + $0x60] sm:$0xff]
        %v2929 = vld [vmem:[%s2915 + $0x68] sm:$0xff]
        %v2930 = vld [vmem:[%s2915 + $0x70] sm:$0xff]
        %v2931 = vld [vmem:[%s2915 + $0x78] sm:$0xff]
        %2932 = vmatpush.msra.mxu0 %v2931
        %2933 = vmatpush.msra.mxu0 %v2930
        %2934 = vmatpush.msra.mxu0 %v2929
        %2935 = vmatpush.msra.mxu0 %v2928
        %2936 = vmatpush.msra.mxu0 %v2927
        %2937 = vmatpush.msra.mxu0 %v2926
        %2938 = vmatpush.msra.mxu0 %v2925
        %2939 = vmatpush.msra.mxu0 %v2924
        %2940 = vmatpush.msra.mxu0 %v2923
        %2941 = vmatpush.msra.mxu0 %v2922
        %2942 = vmatpush.msra.mxu0 %v2921
        %2943 = vmatpush.msra.mxu0 %v2920
        %2944 = vmatpush.msra.mxu0 %v2919
        %2945 = vmatpush.msra.mxu0 %v2918
        %2946 = vmatpush.msra.mxu0 %v2917
        %2947 = vmatpush.msra.mxu0 %v2916
        %2948 = vmatmul.f32.gmra.mxu0 %v2910
        %v2949 = vpop.f32.mrf.mxu0
        %v2950 = vadd.f32 0.0, %v2949
        %2951 = vmatmul.f32.gmra.mxu0 %v2913
        %v2952 = vpop.f32.mrf.mxu0
        %v2953 = vadd.f32 0.0, %v2952
        %2954 = vdwg.mxu0
        %2955 = vmatpush.msra.mxu0 %v2882
        %2956 = vmatpush.msra.mxu0 %v2881
        %2957 = vmatpush.msra.mxu0 %v2880
        %2958 = vmatpush.msra.mxu0 %v2879
        %2959 = vmatpush.msra.mxu0 %v2878
        %2960 = vmatpush.msra.mxu0 %v2877
        %2961 = vmatpush.msra.mxu0 %v2876
        %2962 = vmatpush.msra.mxu0 %v2875
        %2963 = vmatpush.msra.mxu0 %v2874
        %2964 = vmatpush.msra.mxu0 %v2873
        %2965 = vmatpush.msra.mxu0 %v2872
        %2966 = vmatpush.msra.mxu0 %v2871
        %2967 = vmatpush.msra.mxu0 %v2870
        %2968 = vmatpush.msra.mxu0 %v2869
        %2969 = vmatpush.msra.mxu0 %v2868
        %2970 = vmatpush.msra.mxu0 %v2867
        %2971 = vmatmul.f32.gmra.mxu0 %v2862
        %v2972 = vpop.f32.mrf.mxu0
        %v2973 = vadd.f32 %v2950, %v2972
        %2974 = vmatmul.f32.gmra.mxu0 %v2865
        %v2975 = vpop.f32.mrf.mxu0
        %v2976 = vadd.f32 %v2953, %v2975
        %2977 = vdwg.mxu0
        %s2978 = scalar_lea.vmem %s22, 32
        %v2979 = vld [vmem:[%s2978] sm:$0xff]
        %v2980 = vld [vmem:[%s2978 + $0x8] sm:$0xff]
        %v2982 = vsel %vm1069, %v2979, 0
        %v2985 = vsel %vm1069, %v2980, 0
        %2987 = vmatpush.msra.mxu0 0.0
        %2988 = vmatpush.msra.mxu0 0.0
        %2989 = vmatpush.msra.mxu0 0.0
        %2990 = vmatpush.msra.mxu0 0.0
        %2991 = vmatpush.msra.mxu0 0.0
        %2992 = vmatpush.msra.mxu0 0.0
        %2993 = vmatpush.msra.mxu0 0.0
        %2994 = vmatpush.msra.mxu0 0.0
        %2995 = vmatpush.msra.mxu0 0.0
        %2996 = vmatpush.msra.mxu0 0.0
        %2997 = vmatpush.msra.mxu0 0.0
        %2998 = vmatpush.msra.mxu0 0.0
        %2999 = vmatpush.msra.mxu0 0.0
        %3000 = vmatpush.msra.mxu0 0.0
        %3001 = vmatpush.msra.mxu0 0.0
        %3002 = vmatpush.msra.mxu0 %v2835
        %3003 = vmatmul.f32.gmra.mxu0 %v2982
        %v3004 = vpop.f32.mrf.mxu0
        %v3005 = vadd.f32 0.0, %v3004
        %3006 = vmatmul.f32.gmra.mxu0 %v2985
        %v3007 = vpop.f32.mrf.mxu0
        %v3008 = vadd.f32 0.0, %v3007
        %3009 = vdwg.mxu0
        %s3010 = scalar_lea.vmem %s23, 256
        %v3011 = vld [vmem:[%s3010] sm:$0xff]
        %v3012 = vld [vmem:[%s3010 + $0x8] sm:$0xff]
        %v3013 = vld [vmem:[%s3010 + $0x10] sm:$0xff]
        %v3014 = vld [vmem:[%s3010 + $0x18] sm:$0xff]
        %v3015 = vld [vmem:[%s3010 + $0x20] sm:$0xff]
        %v3016 = vld [vmem:[%s3010 + $0x28] sm:$0xff]
        %v3017 = vld [vmem:[%s3010 + $0x30] sm:$0xff]
        %v3018 = vld [vmem:[%s3010 + $0x38] sm:$0xff]
        %v3019 = vld [vmem:[%s3010 + $0x40] sm:$0xff]
        %v3020 = vld [vmem:[%s3010 + $0x48] sm:$0xff]
        %v3021 = vld [vmem:[%s3010 + $0x50] sm:$0xff]
        %v3022 = vld [vmem:[%s3010 + $0x58] sm:$0xff]
        %v3023 = vld [vmem:[%s3010 + $0x60] sm:$0xff]
        %v3024 = vld [vmem:[%s3010 + $0x68] sm:$0xff]
        %v3025 = vld [vmem:[%s3010 + $0x70] sm:$0xff]
        %v3026 = vld [vmem:[%s3010 + $0x78] sm:$0xff]
        %3027 = vmatpush.msra.mxu0 %v3026
        %3028 = vmatpush.msra.mxu0 %v3025
        %3029 = vmatpush.msra.mxu0 %v3024
        %3030 = vmatpush.msra.mxu0 %v3023
        %3031 = vmatpush.msra.mxu0 %v3022
        %3032 = vmatpush.msra.mxu0 %v3021
        %3033 = vmatpush.msra.mxu0 %v3020
        %3034 = vmatpush.msra.mxu0 %v3019
        %3035 = vmatpush.msra.mxu0 %v3018
        %3036 = vmatpush.msra.mxu0 %v3017
        %3037 = vmatpush.msra.mxu0 %v3016
        %3038 = vmatpush.msra.mxu0 %v3015
        %3039 = vmatpush.msra.mxu0 %v3014
        %3040 = vmatpush.msra.mxu0 %v3013
        %3041 = vmatpush.msra.mxu0 %v3012
        %3042 = vmatpush.msra.mxu0 %v3011
        %3043 = vmatmul.f32.gmra.mxu0 %v3005
        %v3044 = vpop.f32.mrf.mxu0
        %v3045 = vadd.f32 0.0, %v3044
        %3046 = vmatmul.f32.gmra.mxu0 %v3008
        %v3047 = vpop.f32.mrf.mxu0
        %v3048 = vadd.f32 0.0, %v3047
        %3049 = vdwg.mxu0
        %v3050 = vadd.f32 %v2973, %v3045
        %v3051 = vadd.f32 %v2976, %v3048
        %s3052 = scalar_lea.vmem %s22, 48
        %v3053 = vld [vmem:[%s3052] sm:$0xff]
        %v3054 = vld [vmem:[%s3052 + $0x8] sm:$0xff]
        %v3056 = vsel %vm1069, %v3053, 0
        %v3059 = vsel %vm1069, %v3054, 0
        %3061 = vmatpush.msra.mxu0 0.0
        %3062 = vmatpush.msra.mxu0 0.0
        %3063 = vmatpush.msra.mxu0 0.0
        %3064 = vmatpush.msra.mxu0 0.0
        %3065 = vmatpush.msra.mxu0 0.0
        %3066 = vmatpush.msra.mxu0 0.0
        %3067 = vmatpush.msra.mxu0 0.0
        %3068 = vmatpush.msra.mxu0 0.0
        %3069 = vmatpush.msra.mxu0 0.0
        %3070 = vmatpush.msra.mxu0 0.0
        %3071 = vmatpush.msra.mxu0 0.0
        %3072 = vmatpush.msra.mxu0 0.0
        %3073 = vmatpush.msra.mxu0 0.0
        %3074 = vmatpush.msra.mxu0 0.0
        %3075 = vmatpush.msra.mxu0 0.0
        %3076 = vmatpush.msra.mxu0 %v2835
        %3077 = vmatmul.f32.gmra.mxu0 %v3056
        %v3078 = vpop.f32.mrf.mxu0
        %v3079 = vadd.f32 0.0, %v3078
        %3080 = vmatmul.f32.gmra.mxu0 %v3059
        %v3081 = vpop.f32.mrf.mxu0
        %v3082 = vadd.f32 0.0, %v3081
        %3083 = vdwg.mxu0
        %s3084 = scalar_lea.vmem %s23, 384
        %v3085 = vld [vmem:[%s3084] sm:$0xff]
        %v3086 = vld [vmem:[%s3084 + $0x8] sm:$0xff]
        %v3087 = vld [vmem:[%s3084 + $0x10] sm:$0xff]
        %v3088 = vld [vmem:[%s3084 + $0x18] sm:$0xff]
        %v3089 = vld [vmem:[%s3084 + $0x20] sm:$0xff]
        %v3090 = vld [vmem:[%s3084 + $0x28] sm:$0xff]
        %v3091 = vld [vmem:[%s3084 + $0x30] sm:$0xff]
        %v3092 = vld [vmem:[%s3084 + $0x38] sm:$0xff]
        %v3093 = vld [vmem:[%s3084 + $0x40] sm:$0xff]
        %v3094 = vld [vmem:[%s3084 + $0x48] sm:$0xff]
        %v3095 = vld [vmem:[%s3084 + $0x50] sm:$0xff]
        %v3096 = vld [vmem:[%s3084 + $0x58] sm:$0xff]
        %v3097 = vld [vmem:[%s3084 + $0x60] sm:$0xff]
        %v3098 = vld [vmem:[%s3084 + $0x68] sm:$0xff]
        %v3099 = vld [vmem:[%s3084 + $0x70] sm:$0xff]
        %v3100 = vld [vmem:[%s3084 + $0x78] sm:$0xff]
        %3101 = vmatpush.msra.mxu0 %v3100
        %3102 = vmatpush.msra.mxu0 %v3099
        %3103 = vmatpush.msra.mxu0 %v3098
        %3104 = vmatpush.msra.mxu0 %v3097
        %3105 = vmatpush.msra.mxu0 %v3096
        %3106 = vmatpush.msra.mxu0 %v3095
        %3107 = vmatpush.msra.mxu0 %v3094
        %3108 = vmatpush.msra.mxu0 %v3093
        %3109 = vmatpush.msra.mxu0 %v3092
        %3110 = vmatpush.msra.mxu0 %v3091
        %3111 = vmatpush.msra.mxu0 %v3090
        %3112 = vmatpush.msra.mxu0 %v3089
        %3113 = vmatpush.msra.mxu0 %v3088
        %3114 = vmatpush.msra.mxu0 %v3087
        %3115 = vmatpush.msra.mxu0 %v3086
        %3116 = vmatpush.msra.mxu0 %v3085
        %3117 = vmatmul.f32.gmra.mxu0 %v3079
        %v3118 = vpop.f32.mrf.mxu0
        %v3119 = vadd.f32 0.0, %v3118
        %3120 = vmatmul.f32.gmra.mxu0 %v3082
        %v3121 = vpop.f32.mrf.mxu0
        %v3122 = vadd.f32 0.0, %v3121
        %3123 = vdwg.mxu0
        %v3124 = vadd.f32 %v3050, %v3119
        %v3125 = vadd.f32 %v3051, %v3122
        %v3126 = vld [vmem:[%s24] sm:$0x1]
        %v3128 = vperm.slane %v3126, 0
        %v3130 = vadd.f32 %v3124, %v3128
        %v3131 = vadd.f32 %v3125, %v3128
        %3132 = vst.msk [vmem:[%s825] sm:$0xff] %vm858, %v3130
        %3133 = vst.msk [vmem:[%s825 + $0x8] sm:$0xff] %vm858, %v3131
        %s3134 = sand.u32 %s585, 1
        %s3135 = scalar_lea.sflag [#allocation3], %s3134
        %s3136 = sand.u32 %s585, 1
        %s3137 = smul.addr %s3136, 16
        %s3138 = scalar_lea.vmem [#allocation2], %s3137
        %p3139 = scmp.lt.s32.totalorder %s42, 1
        %s3140 = scalar_select %p3139, %s42, 1
        %s3141 = smul.addr %s3140, 4
        %s3142 = scalar_lea.vmem %s26, %s3141
        %p3143 = scmp.lt.s32.totalorder %s42, 1
        %s3144 = scalar_select %p3143, %s42, 1
        %s3145 = smul.addr %s3144, 4
        %s3146 = scalar_lea.vmem %s27, %s3145
        // Predicated region
        $region121: #{vae_forward.1} parent=119 // pred_check
          %p3147 = pneg %p595
        $region122: #{vae_forward.1} parent=119 // pred_check_branch
          %3149 = sbr.rel (%p3147) target = $region124
        $region123: #{vae_forward.1} parent=119 // pred_region
          %3151 = vsyncadd %s3135, 0
          %s3152 = smul.addr %s42, 2
          %s3153 = smul.addr %s3152, 8
          %s3154 = scalar_lea.hbm %s25, %s3153
          %s3155 = sshll.u32 %s3138, 4
          %s3156 = int_to_ptr.vmem [resolvable:$true] %s3155
          %s3157 = sshll.u32 %s3154, 4
          %s3158 = int_to_ptr.hbm [resolvable:$true] %s3157
          %3163 = dma.vmem_to_hbm [thread:$0]  %s3156, 256, %s3158, %s3135, 128, 128, 8
        $region124: #{vae_forward.1} parent=119 // pred_fallthru
          _
        // Predicated region
        $region125: #{vae_forward.1} parent=119 // pred_check
          %p3164 = pneg %p621
        $region126: #{vae_forward.1} parent=119 // pred_check_branch
          %3166 = sbr.rel (%p3164) target = $region128
        $region127: #{vae_forward.1} parent=119 // pred_region
          _
        $region128: #{vae_forward.1} parent=119 // pred_fallthru
          _
        // Predicated region
        $region129: #{vae_forward.1} parent=119 // pred_check
          %p3167 = pneg %p647
        $region130: #{vae_forward.1} parent=119 // pred_check_branch
          %3169 = sbr.rel (%p3167) target = $region132
        $region131: #{vae_forward.1} parent=119 // pred_region
          _
        $region132: #{vae_forward.1} parent=119 // pred_fallthru
          _
      $region120: #{vae_forward.1} parent=5 // pred_fallthru
        _
      %p3170 = scmp.le.s32.totalorder 2, %s37
      // Predicated region
      $region133: #{vae_forward.1} parent=5 // pred_check
        %p3171 = pneg %p3170
      $region134: #{vae_forward.1} parent=5 // pred_check_branch
        %3173 = sbr.rel (%p3171) target = $region136
      $region135: #{vae_forward.1} parent=5 // pred_region
        %s3174 = ssub.s32 %s37, 2
        // Predicated region
        $region137: #{vae_forward.1} parent=135 // pred_check
          %p3175 = pneg %p601
        $region138: #{vae_forward.1} parent=135 // pred_check_branch
          %3177 = sbr.rel (%p3175) target = $region140
        $region139: #{vae_forward.1} parent=135 // pred_region
          %s3178 = sand.u32 %s586, 1
          %s3179 = scalar_lea.sflag [#allocation3], %s3178
          %s3180 = sand.u32 %s586, 1
          %s3181 = smul.addr %s3180, 16
          %s3182 = scalar_lea.vmem [#allocation2], %s3181
          %3184 = dma.done %s3179, 256
        $region140: #{vae_forward.1} parent=135 // pred_fallthru
          _
        // Predicated region
        $region141: #{vae_forward.1} parent=135 // pred_check
          %p3185 = pneg %p627
        $region142: #{vae_forward.1} parent=135 // pred_check_branch
          %3187 = sbr.rel (%p3185) target = $region144
        $region143: #{vae_forward.1} parent=135 // pred_region
          %p3188 = scmp.lt.s32.totalorder %s43, 1
          %s3189 = scalar_select %p3188, %s43, 1
          %s3190 = smul.addr %s3189, 4
          %s3191 = scalar_lea.vmem %s26, %s3190
        $region144: #{vae_forward.1} parent=135 // pred_fallthru
          _
        // Predicated region
        $region145: #{vae_forward.1} parent=135 // pred_check
          %p3192 = pneg %p653
        $region146: #{vae_forward.1} parent=135 // pred_check_branch
          %3194 = sbr.rel (%p3192) target = $region148
        $region147: #{vae_forward.1} parent=135 // pred_region
          %p3195 = scmp.lt.s32.totalorder %s43, 1
          %s3196 = scalar_select %p3195, %s43, 1
          %s3197 = smul.addr %s3196, 4
          %s3198 = scalar_lea.vmem %s27, %s3197
        $region148: #{vae_forward.1} parent=135 // pred_fallthru
          _
      $region136: #{vae_forward.1} parent=5 // pred_fallthru
        _
    $region6: #{vae_forward.1} parent=1 // loop_footer
      %s41 = sadd.s32 1, %s37
    $region7: #{vae_forward.1} parent=1 // loop_footer_branch
      %36 = sbr.rel target = $region3
    $region8: #{vae_forward.1} parent=1 // loop_exit
      _
    %3199 = vsyncpa [#allocation3], 1
    %s3200 = scalar_lea.sflag [#allocation3], 1
    %3201 = vsyncpa %s3200, 1

</llo_original>
